<compile_context>
chip_gen: v7x
topology: tpu7x:2x2x1
jax: 0.10.0
libtpu: 0.0.40
codegen_flags: <defaults>
</compile_context>

<pallas_src>
import functools
from dataclasses import dataclass

import numpy as np
import jax
import jax.numpy as jnp
from jax.experimental import pallas as pl
from jax.experimental.pallas import tpu as pltpu


@dataclass
class GaussianAdapterCfg:
    gaussian_scale_min: float
    gaussian_scale_max: float
    color_sh_degree: int
    feature_sh_degree: int


def _sh_mask(degree: int) -> np.ndarray:
    d = (degree + 1) ** 2
    mask = np.ones((d,), np.float32)
    for deg in range(1, degree + 1):
        mask[deg ** 2:(deg + 1) ** 2] = 0.1 * 0.25 ** deg
    return mask


def _gaussian_adapter_kernel(ext_ref, intr_ref, coord_ref, depth_ref, raw_ref,
                             means_ref, cov_ref, scales_ref, rot_ref, csh_ref,
                             fsh_ref, *, scale_min, scale_max, px, py, eps,
                             d_color_sh, d_feature_sh, n_feature_channels,
                             color_mask, feature_mask, chunk, n_inner):
    c0 = 7
    nc = 3 * d_color_sh
    nf = n_feature_channels * d_feature_sh
    f0 = c0 + nc

    color_identity = bool(np.all(color_mask == 1.0))
    feature_identity = bool(np.all(feature_mask == 1.0))
    # Row t of the flattened (channel, d_sh) block uses mask[t % d_sh].
    # Hoisted out of the chunk loop (JAX does not CSE broadcast_in_dim).
    cmask_rows = (None if color_identity else
                  jnp.asarray(np.tile(color_mask, 3)
                              .reshape(nc, 1, 1).astype(np.float32)))
    fmask_rows = (None if feature_identity else
                  jnp.asarray(np.tile(feature_mask, n_feature_channels)
                              .reshape(nf, 1, 1).astype(np.float32)))

    def process(ds):
        depth = depth_ref[0, :, ds]                               # (8, chunk)

        # ---- pixel-size / depth scale multiplier (2x2 intrinsics inverse) --
        k00 = intr_ref[0, :, ds]; k01 = intr_ref[1, :, ds]
        k10 = intr_ref[3, :, ds]; k11 = intr_ref[4, :, ds]
        det2 = k00 * k11 - k01 * k10                              # shared with m22
        inv_det2 = 1.0 / det2                                     # one shared reciprocal
        multiplier = 0.1 * ((k11 - k10) * px + (k00 - k01) * py) * inv_det2

        # ---- scales: sigmoid squash, then depth * pixel-size multiplier ----
        s_act = scale_min + (scale_max - scale_min) * (
            1.0 / (1.0 + jnp.exp(-raw_ref[0:3, :, ds])))
        scales = s_act * (depth * multiplier)[None]
        scales_ref[:, :, ds] = scales

        # ---- rotations: quaternion normalisation (xyzw) ---------------------
        q_raw = raw_ref[3:7, :, ds]                               # (4, 8, chunk)
        q_sq = (q_raw[0] * q_raw[0] + q_raw[1] * q_raw[1]
                + q_raw[2] * q_raw[2] + q_raw[3] * q_raw[3])
        q = q_raw * (1.0 / (jnp.sqrt(q_sq) + eps))[None]          # 1 divide, 4 muls
        rot_ref[:, :, ds] = q

        # ---- SH coefficients (per-degree mask; identity at degree 0) --------
        # TODO(synk): rotate_sh (e3nn Wigner-D rotation) is only implemented for
        # SH degree 0 where it is the identity; higher degrees are not rotated.
        csh = raw_ref[c0:f0, :, ds]
        if not color_identity:
            csh = csh * cmask_rows
        csh_ref[:, :, ds] = csh
        fsh = raw_ref[f0:f0 + nf, :, ds]
        if not feature_identity:
            fsh = fsh * fmask_rows
        fsh_ref[:, :, ds] = fsh

        # ---- camera-to-world rotation rows ----------------------------------
        Rw = [[ext_ref[4 * a + b, :, ds] for b in range(3)] for a in range(3)]

        # ---- rays: K^-1 [u, v, 1], normalise, rotate to world, add origin ---
        k02 = intr_ref[2, :, ds]; k12 = intr_ref[5, :, ds]
        k20 = intr_ref[6, :, ds]; k21 = intr_ref[7, :, ds]; k22 = intr_ref[8, :, ds]
        m00 = k11 * k22 - k12 * k21
        m01 = k01 * k22 - k02 * k21
        m02 = k01 * k12 - k02 * k11
        m10 = k10 * k22 - k12 * k20
        m11 = k00 * k22 - k02 * k20
        m12 = k00 * k12 - k02 * k10
        m20 = k10 * k21 - k11 * k20
        m21 = k00 * k21 - k01 * k20
        m22 = det2                                                # reuse 2x2 det
        inv_det3 = 1.0 / (k00 * m00 - k01 * m10 + k02 * m20)      # one shared reciprocal
        u = coord_ref[0, :, ds]
        v = coord_ref[1, :, ds]
        dx = (m00 * u - m01 * v + m02) * inv_det3
        dy = (m11 * v - m10 * u - m12) * inv_det3
        dz = (m20 * u - m21 * v + m22) * inv_det3
        inv_n = jax.lax.rsqrt(dx * dx + dy * dy + dz * dz)        # rsqrt + 3 muls
        dx = dx * inv_n
        dy = dy * inv_n
        dz = dz * inv_n
        for a in range(3):
            d_world = Rw[a][0] * dx + Rw[a][1] * dy + Rw[a][2] * dz
            means_ref[a, :, ds] = ext_ref[4 * a + 3, :, ds] + d_world * depth

        # ---- covariance: Rw (R diag(s^2) R^T) Rw^T ---------------------------
        qi, qj, qk, qr = q[0], q[1], q[2], q[3]
        two_s = 2.0 / (qi * qi + qj * qj + qk * qk + qr * qr + eps)
        R = [[1.0 - two_s * (qj * qj + qk * qk), two_s * (qi * qj - qk * qr), two_s * (qi * qk + qj * qr)],
             [two_s * (qi * qj + qk * qr), 1.0 - two_s * (qi * qi + qk * qk), two_s * (qj * qk - qi * qr)],
             [two_s * (qi * qk - qj * qr), two_s * (qj * qk + qi * qr), 1.0 - two_s * (qi * qi + qj * qj)]]
        s2 = [scales[m] * scales[m] for m in range(3)]
        cov = [[None] * 3 for _ in range(3)]
        for a in range(3):                     # R S S^T R^T is symmetric: 6 entries
            for b in range(a, 3):
                cab = sum(R[a][m] * s2[m] * R[b][m] for m in range(3))
                cov[a][b] = cab
                cov[b][a] = cab
        T = [[sum(Rw[a][m] * cov[m][n] for m in range(3)) for n in range(3)]
             for a in range(3)]
        for a in range(3):                     # world covariance also symmetric
            for b in range(a, 3):
                cw = sum(T[a][n] * Rw[b][n] for n in range(3))
                cov_ref[3 * a + b, :, ds] = cw
                if a != b:
                    cov_ref[3 * b + a, :, ds] = cw

    if n_inner == 1:
        process(slice(None))
    else:
        def body(it, carry):
            start = pl.multiple_of(it * chunk, chunk)
            process(pl.ds(start, chunk))
            return carry
        jax.lax.fori_loop(0, n_inner, body, 0, unroll=2)


def gaussian_adapter_forward(cfg, n_feature_channels, extrinsics, intrinsics,
                             coordinates, depths, opacities, raw_gaussians,
                             image_shape, eps=1e-8, lane_tile=2048, chunk=128):
    assert lane_tile % 128 == 0, "lane_tile must be a multiple of 128"
    dc = (cfg.color_sh_degree + 1) ** 2
    df = (cfg.feature_sh_degree + 1) ** 2
    d_in = 7 + 3 * dc + n_feature_channels * df
    batch_shape = depths.shape
    G = int(np.prod(batch_shape))
    f32 = jnp.float32

    SUB = 8
    L = -(-G // SUB)            # lanes
    Gp = SUB * L                # sublane-aligned Gaussian count (pad <= 7)

    lane_block = lane_tile if L > lane_tile else L
    num_blocks = (L + lane_block - 1) // lane_block
    if chunk > 0 and chunk <= lane_block and lane_block % chunk == 0:
        chunk_eff = chunk
    else:
        chunk_eff = lane_block
    n_inner = lane_block // chunk_eff

    def to_soa(x, d):
        x = jnp.broadcast_to(x, (*batch_shape, d)).reshape(G, d).astype(f32)
        if Gp != G:
            x = jnp.pad(x, ((0, Gp - G), (0, 0)))
        return jnp.transpose(x.reshape(SUB, L, d), (2, 0, 1))     # (d, 8, L)

    ext = to_soa(extrinsics.reshape(*extrinsics.shape[:-2], 16), 16)
    intr = to_soa(intrinsics.reshape(*intrinsics.shape[:-2], 9), 9)
    uv = to_soa(coordinates, 2)
    dep = to_soa(depths[..., None], 1)
    raw = to_soa(raw_gaussians, d_in)

    kernel = functools.partial(
        _gaussian_adapter_kernel,
        scale_min=float(cfg.gaussian_scale_min),
        scale_max=float(cfg.gaussian_scale_max),
        px=1.0 / float(image_shape[1]), py=1.0 / float(image_shape[0]),
        eps=float(eps),
        d_color_sh=dc, d_feature_sh=df, n_feature_channels=n_feature_channels,
        color_mask=_sh_mask(cfg.color_sh_degree),
        feature_mask=_sh_mask(cfg.feature_sh_degree),
        chunk=chunk_eff, n_inner=n_inner)

    def spec(d0):
        return pl.BlockSpec((d0, SUB, lane_block), lambda i: (0, 0, i))

    out_dims = (3, 9, 3, 4, 3 * dc, n_feature_channels * df)
    in_rows = 16 + 9 + 2 + 1 + d_in
    cost = pl.CostEstimate(flops=300 * G, transcendentals=9 * G,
                           bytes_accessed=4 * (in_rows + sum(out_dims)) * G)

    outs = pl.pallas_call(
        kernel,
        out_shape=tuple(jax.ShapeDtypeStruct((d0, SUB, L), f32) for d0 in out_dims),
        grid_spec=pltpu.PrefetchScalarGridSpec(
            num_scalar_prefetch=0,
            grid=(num_blocks,),
            in_specs=[spec(16), spec(9), spec(2), spec(1), spec(d_in)],
            out_specs=tuple(spec(d0) for d0 in out_dims)),
        compiler_params=pltpu.CompilerParams(
            dimension_semantics=("parallel",),
            vmem_limit_bytes=32 * 1024 * 1024),
        cost_estimate=cost,
    )(ext, intr, uv, dep, raw)

    def from_soa(o, d):
        return jnp.transpose(o, (1, 2, 0)).reshape(Gp, d)[:G]

    means, cov, scales, rot, csh, fsh = (from_soa(o, d) for o, d in zip(outs, out_dims))
    return dict(
        means=means.reshape(*batch_shape, 3),
        covariances=cov.reshape(*batch_shape, 3, 3),
        scales=scales.reshape(*batch_shape, 3),
        rotations=rot.reshape(*batch_shape, 4),
        color_harmonics=csh.reshape(*batch_shape, 3, dc),
        feature_harmonics=fsh.reshape(*batch_shape, n_feature_channels, df),
        opacities=opacities,   # passthrough, no compute
    )


def reference_forward(cfg, C, extrinsics, intrinsics, coordinates, depths,
                      opacities, raw_gaussians, image_shape, eps=1e-8):
    """Pure-JAX mirror of the PyTorch module semantics (SH degree 0)."""
    dc = (cfg.color_sh_degree + 1) ** 2
    df = (cfg.feature_sh_degree + 1) ** 2
    scales = raw_gaussians[..., 0:3]
    rot = raw_gaussians[..., 3:7]
    csh = raw_gaussians[..., 7:7 + 3 * dc]
    fsh = raw_gaussians[..., 7 + 3 * dc:]
    smin, smax = cfg.gaussian_scale_min, cfg.gaussian_scale_max
    scales = smin + (smax - smin) * (1.0 / (1.0 + jnp.exp(-scales)))
    h, w = image_shape
    pixel_size = jnp.array([1.0 / w, 1.0 / h], jnp.float32)
    inv2 = jnp.linalg.inv(intrinsics[..., :2, :2])
    multiplier = 0.1 * jnp.einsum('...ij,j->...i', inv2, pixel_size).sum(-1)
    scales = scales * depths[..., None] * multiplier[..., None]
    rot = rot / (jnp.linalg.norm(rot, axis=-1, keepdims=True) + eps)
    cmask = jnp.asarray(_sh_mask(cfg.color_sh_degree))
    fmask = jnp.asarray(_sh_mask(cfg.feature_sh_degree))
    csh = csh.reshape(*csh.shape[:-1], 3, dc) * cmask
    fsh = fsh.reshape(*fsh.shape[:-1], C, df) * fmask
    i, j, k, r = rot[..., 0], rot[..., 1], rot[..., 2], rot[..., 3]
    two_s = 2.0 / (jnp.sum(rot * rot, axis=-1) + eps)
    R = jnp.stack([
        1 - two_s * (j * j + k * k), two_s * (i * j - k * r), two_s * (i * k + j * r),
        two_s * (i * j + k * r), 1 - two_s * (i * i + k * k), two_s * (j * k - i * r),
        two_s * (i * k - j * r), two_s * (j * k + i * r), 1 - two_s * (i * i + j * j),
    ], axis=-1).reshape(*rot.shape[:-1], 3, 3)
    S = jnp.einsum('...i,ij->...ij', scales, jnp.eye(3, dtype=jnp.float32))
    cov = R @ S @ jnp.swapaxes(S, -1, -2) @ jnp.swapaxes(R, -1, -2)
    Rw = extrinsics[..., :3, :3]
    cov = Rw @ cov @ jnp.swapaxes(Rw, -1, -2)
    ones = jnp.ones_like(coordinates[..., :1])
    dirs = jnp.einsum('...ij,...j->...i', jnp.linalg.inv(intrinsics),
                      jnp.concatenate([coordinates, ones], -1))
    dirs = dirs / jnp.linalg.norm(dirs, axis=-1, keepdims=True)
    dirs = jnp.einsum('...ij,...j->...i', Rw, dirs)
    origins = extrinsics[..., :3, 3]
    means = origins + dirs * depths[..., None]
    return dict(means=means, covariances=cov, scales=scales, rotations=rot,
                color_harmonics=csh, feature_harmonics=fsh, opacities=opacities)


def _make_inputs(key, B, N, d_in):
    k1, k2, k3, k4, k5, k6, k7, k8 = jax.random.split(key, 8)
    q = jax.random.normal(k1, (B, N, 4), jnp.float32)
    q = q / jnp.linalg.norm(q, axis=-1, keepdims=True)
    qi, qj, qk, qr = q[..., 0], q[..., 1], q[..., 2], q[..., 3]
    Rm = jnp.stack([
        1 - 2 * (qj * qj + qk * qk), 2 * (qi * qj - qk * qr), 2 * (qi * qk + qj * qr),
        2 * (qi * qj + qk * qr), 1 - 2 * (qi * qi + qk * qk), 2 * (qj * qk - qi * qr),
        2 * (qi * qk - qj * qr), 2 * (qj * qk + qi * qr), 1 - 2 * (qi * qi + qj * qj),
    ], axis=-1).reshape(B, N, 3, 3)
    t = jax.random.normal(k2, (B, N, 3), jnp.float32)
    extrinsics = jnp.zeros((B, N, 4, 4), jnp.float32)
    extrinsics = extrinsics.at[..., :3, :3].set(Rm)
    extrinsics = extrinsics.at[..., :3, 3].set(t)
    extrinsics = extrinsics.at[..., 3, 3].set(1.0)
    fx = jax.random.uniform(k3, (B, N), minval=0.8, maxval=1.2)
    fy = jax.random.uniform(k4, (B, N), minval=0.8, maxval=1.2)
    cx = jax.random.uniform(k5, (B, N), minval=0.4, maxval=0.6)
    cy = jax.random.uniform(k6, (B, N), minval=0.4, maxval=0.6)
    intrinsics = jnp.zeros((B, N, 3, 3), jnp.float32)
    intrinsics = intrinsics.at[..., 0, 0].set(fx).at[..., 1, 1].set(fy)
    intrinsics = intrinsics.at[..., 0, 2].set(cx).at[..., 1, 2].set(cy)
    intrinsics = intrinsics.at[..., 2, 2].set(1.0)
    coordinates = jax.random.uniform(k7, (B, N, 2), jnp.float32)
    k8a, k8b, k8c = jax.random.split(k8, 3)
    depths = jax.random.uniform(k8a, (B, N), minval=0.5, maxval=5.0)
    opacities = jax.random.uniform(k8b, (B, N))
    raw_gaussians = jax.random.normal(k8c, (B, N, d_in), jnp.float32)
    return extrinsics, intrinsics, coordinates, depths, opacities, raw_gaussians


if __name__ == "__main__":
    cfg = GaussianAdapterCfg(gaussian_scale_min=0.5, gaussian_scale_max=15.0,
                             color_sh_degree=0, feature_sh_degree=0)
    C = 4                                   # n_feature_channels
    dc = (cfg.color_sh_degree + 1) ** 2
    df = (cfg.feature_sh_degree + 1) ** 2
    d_in = 7 + 3 * dc + C * df              # = 14

    root = jax.random.PRNGKey(0)
    key0, key1, key2 = jax.random.split(root, 3)
    cases = [
        # Multi-block grid + inner 128-lane chunk loop:
        #   G = 4096 -> L = 512 -> 2 lane blocks x 2 chunks each.
        (key0, 2, 2048, (32, 32), 256, 128),
        # Ragged G: sublane zero-pad (1043 -> 1048) and a partial last lane
        # block handled by Pallas (no host-side lane padding).
        (key1, 1, 1043, (24, 40), 128, 128),
        # Default tiling path: G = 8192 -> L = 1024 -> one 1024-lane block,
        # 8 inner chunks walked by the unrolled fori_loop.
        (key2, 2, 4096, (32, 32), None, None),
    ]
    for key, B, N, image_shape, lane_tile, chunk in cases:
        inputs = _make_inputs(key, B, N, d_in)
        kwargs = {}
        if lane_tile is not None:
            kwargs["lane_tile"] = lane_tile
        if chunk is not None:
            kwargs["chunk"] = chunk
        out = gaussian_adapter_forward(cfg, C, *inputs, image_shape, **kwargs)
        out = jax.block_until_ready(out)
        ref = reference_forward(cfg, C, *inputs, image_shape)
        for name in out:
            np.testing.assert_allclose(np.asarray(out[name]), np.asarray(ref[name]),
                                       rtol=1e-3, atol=1e-4, err_msg=name)
    print("KERNEL_OK")
</pallas_src>

<mosaic_0001>
module attributes {stable_mosaic.version = 11 : i64} {
  func.func @_gaussian_adapter_kernel(%arg0: i32, %arg1: memref<16x8x256xf32, #tpu.memory_space<vmem>>, %arg2: memref<9x8x256xf32, #tpu.memory_space<vmem>>, %arg3: memref<2x8x256xf32, #tpu.memory_space<vmem>>, %arg4: memref<1x8x256xf32, #tpu.memory_space<vmem>>, %arg5: memref<14x8x256xf32, #tpu.memory_space<vmem>>, %arg6: memref<3x8x256xf32, #tpu.memory_space<vmem>>, %arg7: memref<9x8x256xf32, #tpu.memory_space<vmem>>, %arg8: memref<3x8x256xf32, #tpu.memory_space<vmem>>, %arg9: memref<4x8x256xf32, #tpu.memory_space<vmem>>, %arg10: memref<3x8x256xf32, #tpu.memory_space<vmem>>, %arg11: memref<4x8x256xf32, #tpu.memory_space<vmem>>) attributes {dimension_semantics = [#tpu.dimension_semantics<parallel>], iteration_bounds = array<i64: 2>, scalar_prefetch = 0 : i64, scratch_operands = 0 : i64, tpu.core_type = #tpu.core_type<tc>, window_params = [{transform_indices = @transform_0, window_bounds = array<i64: 16, 8, 256>}, {transform_indices = @transform_1, window_bounds = array<i64: 9, 8, 256>}, {transform_indices = @transform_2, window_bounds = array<i64: 2, 8, 256>}, {transform_indices = @transform_3, window_bounds = array<i64: 1, 8, 256>}, {transform_indices = @transform_4, window_bounds = array<i64: 14, 8, 256>}, {transform_indices = @transform_5, window_bounds = array<i64: 3, 8, 256>}, {transform_indices = @transform_6, window_bounds = array<i64: 9, 8, 256>}, {transform_indices = @transform_7, window_bounds = array<i64: 3, 8, 256>}, {transform_indices = @transform_8, window_bounds = array<i64: 4, 8, 256>}, {transform_indices = @transform_9, window_bounds = array<i64: 3, 8, 256>}, {transform_indices = @transform_10, window_bounds = array<i64: 4, 8, 256>}]} {
    %c0_i32 = arith.constant 0 : i32
    %c128_i32 = arith.constant 128 : i32
    %0 = arith.muli %c0_i32, %c128_i32 : i32
    %1 = tpu.assume_multiple %0, 128 : i32
    %c0 = arith.constant 0 : index
    %c0_0 = arith.constant 0 : index
    %2 = arith.index_cast %1 : i32 to index
    %3 = vector.load %arg4[%c0, %c0_0, %2] : memref<1x8x256xf32, #tpu.memory_space<vmem>>, vector<1x8x128xf32>
    %4 = vector.shape_cast %3 : vector<1x8x128xf32> to vector<8x128xf32>
    %c0_1 = arith.constant 0 : index
    %c0_2 = arith.constant 0 : index
    %5 = arith.index_cast %1 : i32 to index
    %6 = vector.load %arg2[%c0_1, %c0_2, %5] : memref<9x8x256xf32, #tpu.memory_space<vmem>>, vector<1x8x128xf32>
    %7 = vector.shape_cast %6 : vector<1x8x128xf32> to vector<8x128xf32>
    %c1 = arith.constant 1 : index
    %c0_3 = arith.constant 0 : index
    %8 = arith.index_cast %1 : i32 to index
    %9 = vector.load %arg2[%c1, %c0_3, %8] : memref<9x8x256xf32, #tpu.memory_space<vmem>>, vector<1x8x128xf32>
    %10 = vector.shape_cast %9 : vector<1x8x128xf32> to vector<8x128xf32>
    %c3 = arith.constant 3 : index
    %c0_4 = arith.constant 0 : index
    %11 = arith.index_cast %1 : i32 to index
    %12 = vector.load %arg2[%c3, %c0_4, %11] : memref<9x8x256xf32, #tpu.memory_space<vmem>>, vector<1x8x128xf32>
    %13 = vector.shape_cast %12 : vector<1x8x128xf32> to vector<8x128xf32>
    %c4 = arith.constant 4 : index
    %c0_5 = arith.constant 0 : index
    %14 = arith.index_cast %1 : i32 to index
    %15 = vector.load %arg2[%c4, %c0_5, %14] : memref<9x8x256xf32, #tpu.memory_space<vmem>>, vector<1x8x128xf32>
    %16 = vector.shape_cast %15 : vector<1x8x128xf32> to vector<8x128xf32>
    %17 = arith.mulf %7, %16 : vector<8x128xf32>
    %18 = arith.mulf %10, %13 : vector<8x128xf32>
    %19 = arith.subf %17, %18 : vector<8x128xf32>
    %cst = arith.constant 1.000000e+00 : f32
    %20 = vector.broadcast %cst : f32 to vector<8x128xf32>
    %21 = arith.divf %20, %19 : vector<8x128xf32>
    %22 = arith.subf %16, %13 : vector<8x128xf32>
    %cst_6 = arith.constant 3.125000e-02 : f32
    %23 = vector.broadcast %cst_6 : f32 to vector<8x128xf32>
    %24 = arith.mulf %22, %23 : vector<8x128xf32>
    %25 = arith.subf %7, %10 : vector<8x128xf32>
    %cst_7 = arith.constant 3.125000e-02 : f32
    %26 = vector.broadcast %cst_7 : f32 to vector<8x128xf32>
    %27 = arith.mulf %25, %26 : vector<8x128xf32>
    %28 = arith.addf %24, %27 : vector<8x128xf32>
    %cst_8 = arith.constant 1.000000e-01 : f32
    %29 = vector.broadcast %cst_8 : f32 to vector<8x128xf32>
    %30 = arith.mulf %29, %28 : vector<8x128xf32>
    %31 = arith.mulf %30, %21 : vector<8x128xf32>
    %c0_9 = arith.constant 0 : index
    %c0_10 = arith.constant 0 : index
    %32 = arith.index_cast %1 : i32 to index
    %33 = vector.load %arg5[%c0_9, %c0_10, %32] : memref<14x8x256xf32, #tpu.memory_space<vmem>>, vector<3x8x128xf32>
    %cst_11 = arith.constant 0.000000e+00 : f32
    %34 = vector.broadcast %cst_11 : f32 to vector<3x8x128xf32>
    %35 = arith.subf %34, %33 : vector<3x8x128xf32>
    %36 = math.exp %35 : vector<3x8x128xf32>
    %cst_12 = arith.constant 1.000000e+00 : f32
    %37 = vector.broadcast %cst_12 : f32 to vector<3x8x128xf32>
    %38 = arith.addf %37, %36 : vector<3x8x128xf32>
    %cst_13 = arith.constant 1.000000e+00 : f32
    %39 = vector.broadcast %cst_13 : f32 to vector<3x8x128xf32>
    %40 = arith.divf %39, %38 : vector<3x8x128xf32>
    %cst_14 = arith.constant 1.450000e+01 : f32
    %41 = vector.broadcast %cst_14 : f32 to vector<3x8x128xf32>
    %42 = arith.mulf %41, %40 : vector<3x8x128xf32>
    %cst_15 = arith.constant 5.000000e-01 : f32
    %43 = vector.broadcast %cst_15 : f32 to vector<3x8x128xf32>
    %44 = arith.addf %43, %42 : vector<3x8x128xf32>
    %45 = arith.mulf %4, %31 : vector<8x128xf32>
    %46 = vector.shape_cast %45 : vector<8x128xf32> to vector<1x8x128xf32>
    %47 = vector.broadcast %46 : vector<1x8x128xf32> to vector<3x8x128xf32>
    %48 = arith.mulf %44, %47 : vector<3x8x128xf32>
    %c0_16 = arith.constant 0 : index
    %c0_17 = arith.constant 0 : index
    %49 = arith.index_cast %1 : i32 to index
    %50 = vector.load %arg8[%c0_16, %c0_17, %49] : memref<3x8x256xf32, #tpu.memory_space<vmem>>, vector<3x8x128xf32>
    tpu.vector_store %arg8[%c0_16, %c0_17, %49], %48 {strides = array<i32>} : memref<3x8x256xf32, #tpu.memory_space<vmem>>, vector<3x8x128xf32>,
    %c3_18 = arith.constant 3 : index
    %c0_19 = arith.constant 0 : index
    %51 = arith.index_cast %1 : i32 to index
    %52 = vector.load %arg5[%c3_18, %c0_19, %51] : memref<14x8x256xf32, #tpu.memory_space<vmem>>, vector<4x8x128xf32>
    %53 = vector.extract_strided_slice %52 {offsets = [0, 0, 0], sizes = [1, 8, 128], strides = [1, 1, 1]} : vector<4x8x128xf32> to vector<1x8x128xf32>
    %54 = vector.shape_cast %53 : vector<1x8x128xf32> to vector<8x128xf32>
    %55 = vector.extract_strided_slice %52 {offsets = [0, 0, 0], sizes = [1, 8, 128], strides = [1, 1, 1]} : vector<4x8x128xf32> to vector<1x8x128xf32>
    %56 = vector.shape_cast %55 : vector<1x8x128xf32> to vector<8x128xf32>
    %57 = arith.mulf %54, %56 : vector<8x128xf32>
    %58 = vector.extract_strided_slice %52 {offsets = [1, 0, 0], sizes = [1, 8, 128], strides = [1, 1, 1]} : vector<4x8x128xf32> to vector<1x8x128xf32>
    %59 = vector.shape_cast %58 : vector<1x8x128xf32> to vector<8x128xf32>
    %60 = vector.extract_strided_slice %52 {offsets = [1, 0, 0], sizes = [1, 8, 128], strides = [1, 1, 1]} : vector<4x8x128xf32> to vector<1x8x128xf32>
    %61 = vector.shape_cast %60 : vector<1x8x128xf32> to vector<8x128xf32>
    %62 = arith.mulf %59, %61 : vector<8x128xf32>
    %63 = arith.addf %57, %62 : vector<8x128xf32>
    %64 = vector.extract_strided_slice %52 {offsets = [2, 0, 0], sizes = [1, 8, 128], strides = [1, 1, 1]} : vector<4x8x128xf32> to vector<1x8x128xf32>
    %65 = vector.shape_cast %64 : vector<1x8x128xf32> to vector<8x128xf32>
    %66 = vector.extract_strided_slice %52 {offsets = [2, 0, 0], sizes = [1, 8, 128], strides = [1, 1, 1]} : vector<4x8x128xf32> to vector<1x8x128xf32>
    %67 = vector.shape_cast %66 : vector<1x8x128xf32> to vector<8x128xf32>
    %68 = arith.mulf %65, %67 : vector<8x128xf32>
    %69 = arith.addf %63, %68 : vector<8x128xf32>
    %70 = vector.extract_strided_slice %52 {offsets = [3, 0, 0], sizes = [1, 8, 128], strides = [1, 1, 1]} : vector<4x8x128xf32> to vector<1x8x128xf32>
    %71 = vector.shape_cast %70 : vector<1x8x128xf32> to vector<8x128xf32>
    %72 = vector.extract_strided_slice %52 {offsets = [3, 0, 0], sizes = [1, 8, 128], strides = [1, 1, 1]} : vector<4x8x128xf32> to vector<1x8x128xf32>
    %73 = vector.shape_cast %72 : vector<1x8x128xf32> to vector<8x128xf32>
    %74 = arith.mulf %71, %73 : vector<8x128xf32>
    %75 = arith.addf %69, %74 : vector<8x128xf32>
    %76 = math.sqrt %75 : vector<8x128xf32>
    %cst_20 = arith.constant 9.99999993E-9 : f32
    %77 = vector.broadcast %cst_20 : f32 to vector<8x128xf32>
    %78 = arith.addf %76, %77 : vector<8x128xf32>
    %cst_21 = arith.constant 1.000000e+00 : f32
    %79 = vector.broadcast %cst_21 : f32 to vector<8x128xf32>
    %80 = arith.divf %79, %78 : vector<8x128xf32>
    %81 = vector.shape_cast %80 : vector<8x128xf32> to vector<1x8x128xf32>
    %82 = vector.broadcast %81 : vector<1x8x128xf32> to vector<4x8x128xf32>
    %83 = arith.mulf %52, %82 : vector<4x8x128xf32>
    %c0_22 = arith.constant 0 : index
    %c0_23 = arith.constant 0 : index
    %84 = arith.index_cast %1 : i32 to index
    %85 = vector.load %arg9[%c0_22, %c0_23, %84] : memref<4x8x256xf32, #tpu.memory_space<vmem>>, vector<4x8x128xf32>
    tpu.vector_store %arg9[%c0_22, %c0_23, %84], %83 {strides = array<i32>} : memref<4x8x256xf32, #tpu.memory_space<vmem>>, vector<4x8x128xf32>,
    %c7 = arith.constant 7 : index
    %c0_24 = arith.constant 0 : index
    %86 = arith.index_cast %1 : i32 to index
    %87 = vector.load %arg5[%c7, %c0_24, %86] : memref<14x8x256xf32, #tpu.memory_space<vmem>>, vector<3x8x128xf32>
    %c0_25 = arith.constant 0 : index
    %c0_26 = arith.constant 0 : index
    %88 = arith.index_cast %1 : i32 to index
    %89 = vector.load %arg10[%c0_25, %c0_26, %88] : memref<3x8x256xf32, #tpu.memory_space<vmem>>, vector<3x8x128xf32>
    tpu.vector_store %arg10[%c0_25, %c0_26, %88], %87 {strides = array<i32>} : memref<3x8x256xf32, #tpu.memory_space<vmem>>, vector<3x8x128xf32>,
    %c10 = arith.constant 10 : index
    %c0_27 = arith.constant 0 : index
    %90 = arith.index_cast %1 : i32 to index
    %91 = vector.load %arg5[%c10, %c0_27, %90] : memref<14x8x256xf32, #tpu.memory_space<vmem>>, vector<4x8x128xf32>
    %c0_28 = arith.constant 0 : index
    %c0_29 = arith.constant 0 : index
    %92 = arith.index_cast %1 : i32 to index
    %93 = vector.load %arg11[%c0_28, %c0_29, %92] : memref<4x8x256xf32, #tpu.memory_space<vmem>>, vector<4x8x128xf32>
    tpu.vector_store %arg11[%c0_28, %c0_29, %92], %91 {strides = array<i32>} : memref<4x8x256xf32, #tpu.memory_space<vmem>>, vector<4x8x128xf32>,
    %c0_30 = arith.constant 0 : index
    %c0_31 = arith.constant 0 : index
    %94 = arith.index_cast %1 : i32 to index
    %95 = vector.load %arg1[%c0_30, %c0_31, %94] : memref<16x8x256xf32, #tpu.memory_space<vmem>>, vector<1x8x128xf32>
    %96 = vector.shape_cast %95 : vector<1x8x128xf32> to vector<8x128xf32>
    %c1_32 = arith.constant 1 : index
    %c0_33 = arith.constant 0 : index
    %97 = arith.index_cast %1 : i32 to index
    %98 = vector.load %arg1[%c1_32, %c0_33, %97] : memref<16x8x256xf32, #tpu.memory_space<vmem>>, vector<1x8x128xf32>
    %99 = vector.shape_cast %98 : vector<1x8x128xf32> to vector<8x128xf32>
    %c2 = arith.constant 2 : index
    %c0_34 = arith.constant 0 : index
    %100 = arith.index_cast %1 : i32 to index
    %101 = vector.load %arg1[%c2, %c0_34, %100] : memref<16x8x256xf32, #tpu.memory_space<vmem>>, vector<1x8x128xf32>
    %102 = vector.shape_cast %101 : vector<1x8x128xf32> to vector<8x128xf32>
    %c4_35 = arith.constant 4 : index
    %c0_36 = arith.constant 0 : index
    %103 = arith.index_cast %1 : i32 to index
    %104 = vector.load %arg1[%c4_35, %c0_36, %103] : memref<16x8x256xf32, #tpu.memory_space<vmem>>, vector<1x8x128xf32>
    %105 = vector.shape_cast %104 : vector<1x8x128xf32> to vector<8x128xf32>
    %c5 = arith.constant 5 : index
    %c0_37 = arith.constant 0 : index
    %106 = arith.index_cast %1 : i32 to index
    %107 = vector.load %arg1[%c5, %c0_37, %106] : memref<16x8x256xf32, #tpu.memory_space<vmem>>, vector<1x8x128xf32>
    %108 = vector.shape_cast %107 : vector<1x8x128xf32> to vector<8x128xf32>
    %c6 = arith.constant 6 : index
    %c0_38 = arith.constant 0 : index
    %109 = arith.index_cast %1 : i32 to index
    %110 = vector.load %arg1[%c6, %c0_38, %109] : memref<16x8x256xf32, #tpu.memory_space<vmem>>, vector<1x8x128xf32>
    %111 = vector.shape_cast %110 : vector<1x8x128xf32> to vector<8x128xf32>
    %c8 = arith.constant 8 : index
    %c0_39 = arith.constant 0 : index
    %112 = arith.index_cast %1 : i32 to index
    %113 = vector.load %arg1[%c8, %c0_39, %112] : memref<16x8x256xf32, #tpu.memory_space<vmem>>, vector<1x8x128xf32>
    %114 = vector.shape_cast %113 : vector<1x8x128xf32> to vector<8x128xf32>
    %c9 = arith.constant 9 : index
    %c0_40 = arith.constant 0 : index
    %115 = arith.index_cast %1 : i32 to index
    %116 = vector.load %arg1[%c9, %c0_40, %115] : memref<16x8x256xf32, #tpu.memory_space<vmem>>, vector<1x8x128xf32>
    %117 = vector.shape_cast %116 : vector<1x8x128xf32> to vector<8x128xf32>
    %c10_41 = arith.constant 10 : index
    %c0_42 = arith.constant 0 : index
    %118 = arith.index_cast %1 : i32 to index
    %119 = vector.load %arg1[%c10_41, %c0_42, %118] : memref<16x8x256xf32, #tpu.memory_space<vmem>>, vector<1x8x128xf32>
    %120 = vector.shape_cast %119 : vector<1x8x128xf32> to vector<8x128xf32>
    %c2_43 = arith.constant 2 : index
    %c0_44 = arith.constant 0 : index
    %121 = arith.index_cast %1 : i32 to index
    %122 = vector.load %arg2[%c2_43, %c0_44, %121] : memref<9x8x256xf32, #tpu.memory_space<vmem>>, vector<1x8x128xf32>
    %123 = vector.shape_cast %122 : vector<1x8x128xf32> to vector<8x128xf32>
    %c5_45 = arith.constant 5 : index
    %c0_46 = arith.constant 0 : index
    %124 = arith.index_cast %1 : i32 to index
    %125 = vector.load %arg2[%c5_45, %c0_46, %124] : memref<9x8x256xf32, #tpu.memory_space<vmem>>, vector<1x8x128xf32>
    %126 = vector.shape_cast %125 : vector<1x8x128xf32> to vector<8x128xf32>
    %c6_47 = arith.constant 6 : index
    %c0_48 = arith.constant 0 : index
    %127 = arith.index_cast %1 : i32 to index
    %128 = vector.load %arg2[%c6_47, %c0_48, %127] : memref<9x8x256xf32, #tpu.memory_space<vmem>>, vector<1x8x128xf32>
    %129 = vector.shape_cast %128 : vector<1x8x128xf32> to vector<8x128xf32>
    %c7_49 = arith.constant 7 : index
    %c0_50 = arith.constant 0 : index
    %130 = arith.index_cast %1 : i32 to index
    %131 = vector.load %arg2[%c7_49, %c0_50, %130] : memref<9x8x256xf32, #tpu.memory_space<vmem>>, vector<1x8x128xf32>
    %132 = vector.shape_cast %131 : vector<1x8x128xf32> to vector<8x128xf32>
    %c8_51 = arith.constant 8 : index
    %c0_52 = arith.constant 0 : index
    %133 = arith.index_cast %1 : i32 to index
    %134 = vector.load %arg2[%c8_51, %c0_52, %133] : memref<9x8x256xf32, #tpu.memory_space<vmem>>, vector<1x8x128xf32>
    %135 = vector.shape_cast %134 : vector<1x8x128xf32> to vector<8x128xf32>
    %136 = arith.mulf %16, %135 : vector<8x128xf32>
    %137 = arith.mulf %126, %132 : vector<8x128xf32>
    %138 = arith.subf %136, %137 : vector<8x128xf32>
    %139 = arith.mulf %10, %135 : vector<8x128xf32>
    %140 = arith.mulf %123, %132 : vector<8x128xf32>
    %141 = arith.subf %139, %140 : vector<8x128xf32>
    %142 = arith.mulf %10, %126 : vector<8x128xf32>
    %143 = arith.mulf %123, %16 : vector<8x128xf32>
    %144 = arith.subf %142, %143 : vector<8x128xf32>
    %145 = arith.mulf %13, %135 : vector<8x128xf32>
    %146 = arith.mulf %126, %129 : vector<8x128xf32>
    %147 = arith.subf %145, %146 : vector<8x128xf32>
    %148 = arith.mulf %7, %135 : vector<8x128xf32>
    %149 = arith.mulf %123, %129 : vector<8x128xf32>
    %150 = arith.subf %148, %149 : vector<8x128xf32>
    %151 = arith.mulf %7, %126 : vector<8x128xf32>
    %152 = arith.mulf %123, %13 : vector<8x128xf32>
    %153 = arith.subf %151, %152 : vector<8x128xf32>
    %154 = arith.mulf %13, %132 : vector<8x128xf32>
    %155 = arith.mulf %16, %129 : vector<8x128xf32>
    %156 = arith.subf %154, %155 : vector<8x128xf32>
    %157 = arith.mulf %7, %132 : vector<8x128xf32>
    %158 = arith.mulf %10, %129 : vector<8x128xf32>
    %159 = arith.subf %157, %158 : vector<8x128xf32>
    %160 = arith.mulf %7, %138 : vector<8x128xf32>
    %161 = arith.mulf %10, %147 : vector<8x128xf32>
    %162 = arith.subf %160, %161 : vector<8x128xf32>
    %163 = arith.mulf %123, %156 : vector<8x128xf32>
    %164 = arith.addf %162, %163 : vector<8x128xf32>
    %cst_53 = arith.constant 1.000000e+00 : f32
    %165 = vector.broadcast %cst_53 : f32 to vector<8x128xf32>
    %166 = arith.divf %165, %164 : vector<8x128xf32>
    %c0_54 = arith.constant 0 : index
    %c0_55 = arith.constant 0 : index
    %167 = arith.index_cast %1 : i32 to index
    %168 = vector.load %arg3[%c0_54, %c0_55, %167] : memref<2x8x256xf32, #tpu.memory_space<vmem>>, vector<1x8x128xf32>
    %169 = vector.shape_cast %168 : vector<1x8x128xf32> to vector<8x128xf32>
    %c1_56 = arith.constant 1 : index
    %c0_57 = arith.constant 0 : index
    %170 = arith.index_cast %1 : i32 to index
    %171 = vector.load %arg3[%c1_56, %c0_57, %170] : memref<2x8x256xf32, #tpu.memory_space<vmem>>, vector<1x8x128xf32>
    %172 = vector.shape_cast %171 : vector<1x8x128xf32> to vector<8x128xf32>
    %173 = arith.mulf %138, %169 : vector<8x128xf32>
    %174 = arith.mulf %141, %172 : vector<8x128xf32>
    %175 = arith.subf %173, %174 : vector<8x128xf32>
    %176 = arith.addf %175, %144 : vector<8x128xf32>
    %177 = arith.mulf %176, %166 : vector<8x128xf32>
    %178 = arith.mulf %150, %172 : vector<8x128xf32>
    %179 = arith.mulf %147, %169 : vector<8x128xf32>
    %180 = arith.subf %178, %179 : vector<8x128xf32>
    %181 = arith.subf %180, %153 : vector<8x128xf32>
    %182 = arith.mulf %181, %166 : vector<8x128xf32>
    %183 = arith.mulf %156, %169 : vector<8x128xf32>
    %184 = arith.mulf %159, %172 : vector<8x128xf32>
    %185 = arith.subf %183, %184 : vector<8x128xf32>
    %186 = arith.addf %185, %19 : vector<8x128xf32>
    %187 = arith.mulf %186, %166 : vector<8x128xf32>
    %188 = arith.mulf %177, %177 : vector<8x128xf32>
    %189 = arith.mulf %182, %182 : vector<8x128xf32>
    %190 = arith.addf %188, %189 : vector<8x128xf32>
    %191 = arith.mulf %187, %187 : vector<8x128xf32>
    %192 = arith.addf %190, %191 : vector<8x128xf32>
    %193 = math.rsqrt %192 : vector<8x128xf32>
    %194 = arith.mulf %177, %193 : vector<8x128xf32>
    %195 = arith.mulf %182, %193 : vector<8x128xf32>
    %196 = arith.mulf %187, %193 : vector<8x128xf32>
    %197 = arith.mulf %96, %194 : vector<8x128xf32>
    %198 = arith.mulf %99, %195 : vector<8x128xf32>
    %199 = arith.addf %197, %198 : vector<8x128xf32>
    %200 = arith.mulf %102, %196 : vector<8x128xf32>
    %201 = arith.addf %199, %200 : vector<8x128xf32>
    %c3_58 = arith.constant 3 : index
    %c0_59 = arith.constant 0 : index
    %202 = arith.index_cast %1 : i32 to index
    %203 = vector.load %arg1[%c3_58, %c0_59, %202] : memref<16x8x256xf32, #tpu.memory_space<vmem>>, vector<1x8x128xf32>
    %204 = vector.shape_cast %203 : vector<1x8x128xf32> to vector<8x128xf32>
    %205 = arith.mulf %201, %4 : vector<8x128xf32>
    %206 = arith.addf %204, %205 : vector<8x128xf32>
    %c0_60 = arith.constant 0 : index
    %c0_61 = arith.constant 0 : index
    %207 = arith.index_cast %1 : i32 to index
    %208 = vector.load %arg6[%c0_60, %c0_61, %207] : memref<3x8x256xf32, #tpu.memory_space<vmem>>, vector<1x8x128xf32>
    %209 = vector.shape_cast %208 : vector<1x8x128xf32> to vector<8x128xf32>
    %210 = vector.shape_cast %206 : vector<8x128xf32> to vector<1x8x128xf32>
    tpu.vector_store %arg6[%c0_60, %c0_61, %207], %210 {strides = array<i32>} : memref<3x8x256xf32, #tpu.memory_space<vmem>>, vector<1x8x128xf32>,
    %211 = arith.mulf %105, %194 : vector<8x128xf32>
    %212 = arith.mulf %108, %195 : vector<8x128xf32>
    %213 = arith.addf %211, %212 : vector<8x128xf32>
    %214 = arith.mulf %111, %196 : vector<8x128xf32>
    %215 = arith.addf %213, %214 : vector<8x128xf32>
    %c7_62 = arith.constant 7 : index
    %c0_63 = arith.constant 0 : index
    %216 = arith.index_cast %1 : i32 to index
    %217 = vector.load %arg1[%c7_62, %c0_63, %216] : memref<16x8x256xf32, #tpu.memory_space<vmem>>, vector<1x8x128xf32>
    %218 = vector.shape_cast %217 : vector<1x8x128xf32> to vector<8x128xf32>
    %219 = arith.mulf %215, %4 : vector<8x128xf32>
    %220 = arith.addf %218, %219 : vector<8x128xf32>
    %c1_64 = arith.constant 1 : index
    %c0_65 = arith.constant 0 : index
    %221 = arith.index_cast %1 : i32 to index
    %222 = vector.load %arg6[%c1_64, %c0_65, %221] : memref<3x8x256xf32, #tpu.memory_space<vmem>>, vector<1x8x128xf32>
    %223 = vector.shape_cast %222 : vector<1x8x128xf32> to vector<8x128xf32>
    %224 = vector.shape_cast %220 : vector<8x128xf32> to vector<1x8x128xf32>
    tpu.vector_store %arg6[%c1_64, %c0_65, %221], %224 {strides = array<i32>} : memref<3x8x256xf32, #tpu.memory_space<vmem>>, vector<1x8x128xf32>,
    %225 = arith.mulf %114, %194 : vector<8x128xf32>
    %226 = arith.mulf %117, %195 : vector<8x128xf32>
    %227 = arith.addf %225, %226 : vector<8x128xf32>
    %228 = arith.mulf %120, %196 : vector<8x128xf32>
    %229 = arith.addf %227, %228 : vector<8x128xf32>
    %c11 = arith.constant 11 : index
    %c0_66 = arith.constant 0 : index
    %230 = arith.index_cast %1 : i32 to index
    %231 = vector.load %arg1[%c11, %c0_66, %230] : memref<16x8x256xf32, #tpu.memory_space<vmem>>, vector<1x8x128xf32>
    %232 = vector.shape_cast %231 : vector<1x8x128xf32> to vector<8x128xf32>
    %233 = arith.mulf %229, %4 : vector<8x128xf32>
    %234 = arith.addf %232, %233 : vector<8x128xf32>
    %c2_67 = arith.constant 2 : index
    %c0_68 = arith.constant 0 : index
    %235 = arith.index_cast %1 : i32 to index
    %236 = vector.load %arg6[%c2_67, %c0_68, %235] : memref<3x8x256xf32, #tpu.memory_space<vmem>>, vector<1x8x128xf32>
    %237 = vector.shape_cast %236 : vector<1x8x128xf32> to vector<8x128xf32>
    %238 = vector.shape_cast %234 : vector<8x128xf32> to vector<1x8x128xf32>
    tpu.vector_store %arg6[%c2_67, %c0_68, %235], %238 {strides = array<i32>} : memref<3x8x256xf32, #tpu.memory_space<vmem>>, vector<1x8x128xf32>,
    %239 = vector.extract_strided_slice %83 {offsets = [0, 0, 0], sizes = [1, 8, 128], strides = [1, 1, 1]} : vector<4x8x128xf32> to vector<1x8x128xf32>
    %240 = vector.shape_cast %239 : vector<1x8x128xf32> to vector<8x128xf32>
    %241 = vector.extract_strided_slice %83 {offsets = [1, 0, 0], sizes = [1, 8, 128], strides = [1, 1, 1]} : vector<4x8x128xf32> to vector<1x8x128xf32>
    %242 = vector.shape_cast %241 : vector<1x8x128xf32> to vector<8x128xf32>
    %243 = vector.extract_strided_slice %83 {offsets = [2, 0, 0], sizes = [1, 8, 128], strides = [1, 1, 1]} : vector<4x8x128xf32> to vector<1x8x128xf32>
    %244 = vector.shape_cast %243 : vector<1x8x128xf32> to vector<8x128xf32>
    %245 = vector.extract_strided_slice %83 {offsets = [3, 0, 0], sizes = [1, 8, 128], strides = [1, 1, 1]} : vector<4x8x128xf32> to vector<1x8x128xf32>
    %246 = vector.shape_cast %245 : vector<1x8x128xf32> to vector<8x128xf32>
    %247 = arith.mulf %240, %240 : vector<8x128xf32>
    %248 = arith.mulf %242, %242 : vector<8x128xf32>
    %249 = arith.addf %247, %248 : vector<8x128xf32>
    %250 = arith.mulf %244, %244 : vector<8x128xf32>
    %251 = arith.addf %249, %250 : vector<8x128xf32>
    %252 = arith.mulf %246, %246 : vector<8x128xf32>
    %253 = arith.addf %251, %252 : vector<8x128xf32>
    %cst_69 = arith.constant 9.99999993E-9 : f32
    %254 = vector.broadcast %cst_69 : f32 to vector<8x128xf32>
    %255 = arith.addf %253, %254 : vector<8x128xf32>
    %cst_70 = arith.constant 2.000000e+00 : f32
    %256 = vector.broadcast %cst_70 : f32 to vector<8x128xf32>
    %257 = arith.divf %256, %255 : vector<8x128xf32>
    %258 = arith.mulf %242, %242 : vector<8x128xf32>
    %259 = arith.mulf %244, %244 : vector<8x128xf32>
    %260 = arith.addf %258, %259 : vector<8x128xf32>
    %261 = arith.mulf %257, %260 : vector<8x128xf32>
    %cst_71 = arith.constant 1.000000e+00 : f32
    %262 = vector.broadcast %cst_71 : f32 to vector<8x128xf32>
    %263 = arith.subf %262, %261 : vector<8x128xf32>
    %264 = arith.mulf %240, %242 : vector<8x128xf32>
    %265 = arith.mulf %244, %246 : vector<8x128xf32>
    %266 = arith.subf %264, %265 : vector<8x128xf32>
    %267 = arith.mulf %257, %266 : vector<8x128xf32>
    %268 = arith.mulf %240, %244 : vector<8x128xf32>
    %269 = arith.mulf %242, %246 : vector<8x128xf32>
    %270 = arith.addf %268, %269 : vector<8x128xf32>
    %271 = arith.mulf %257, %270 : vector<8x128xf32>
    %272 = arith.mulf %240, %242 : vector<8x128xf32>
    %273 = arith.mulf %244, %246 : vector<8x128xf32>
    %274 = arith.addf %272, %273 : vector<8x128xf32>
    %275 = arith.mulf %257, %274 : vector<8x128xf32>
    %276 = arith.mulf %240, %240 : vector<8x128xf32>
    %277 = arith.mulf %244, %244 : vector<8x128xf32>
    %278 = arith.addf %276, %277 : vector<8x128xf32>
    %279 = arith.mulf %257, %278 : vector<8x128xf32>
    %cst_72 = arith.constant 1.000000e+00 : f32
    %280 = vector.broadcast %cst_72 : f32 to vector<8x128xf32>
    %281 = arith.subf %280, %279 : vector<8x128xf32>
    %282 = arith.mulf %242, %244 : vector<8x128xf32>
    %283 = arith.mulf %240, %246 : vector<8x128xf32>
    %284 = arith.subf %282, %283 : vector<8x128xf32>
    %285 = arith.mulf %257, %284 : vector<8x128xf32>
    %286 = arith.mulf %240, %244 : vector<8x128xf32>
    %287 = arith.mulf %242, %246 : vector<8x128xf32>
    %288 = arith.subf %286, %287 : vector<8x128xf32>
    %289 = arith.mulf %257, %288 : vector<8x128xf32>
    %290 = arith.mulf %242, %244 : vector<8x128xf32>
    %291 = arith.mulf %240, %246 : vector<8x128xf32>
    %292 = arith.addf %290, %291 : vector<8x128xf32>
    %293 = arith.mulf %257, %292 : vector<8x128xf32>
    %294 = arith.mulf %240, %240 : vector<8x128xf32>
    %295 = arith.mulf %242, %242 : vector<8x128xf32>
    %296 = arith.addf %294, %295 : vector<8x128xf32>
    %297 = arith.mulf %257, %296 : vector<8x128xf32>
    %cst_73 = arith.constant 1.000000e+00 : f32
    %298 = vector.broadcast %cst_73 : f32 to vector<8x128xf32>
    %299 = arith.subf %298, %297 : vector<8x128xf32>
    %300 = vector.extract_strided_slice %48 {offsets = [0, 0, 0], sizes = [1, 8, 128], strides = [1, 1, 1]} : vector<3x8x128xf32> to vector<1x8x128xf32>
    %301 = vector.shape_cast %300 : vector<1x8x128xf32> to vector<8x128xf32>
    %302 = vector.extract_strided_slice %48 {offsets = [0, 0, 0], sizes = [1, 8, 128], strides = [1, 1, 1]} : vector<3x8x128xf32> to vector<1x8x128xf32>
    %303 = vector.shape_cast %302 : vector<1x8x128xf32> to vector<8x128xf32>
    %304 = arith.mulf %301, %303 : vector<8x128xf32>
    %305 = vector.extract_strided_slice %48 {offsets = [1, 0, 0], sizes = [1, 8, 128], strides = [1, 1, 1]} : vector<3x8x128xf32> to vector<1x8x128xf32>
    %306 = vector.shape_cast %305 : vector<1x8x128xf32> to vector<8x128xf32>
    %307 = vector.extract_strided_slice %48 {offsets = [1, 0, 0], sizes = [1, 8, 128], strides = [1, 1, 1]} : vector<3x8x128xf32> to vector<1x8x128xf32>
    %308 = vector.shape_cast %307 : vector<1x8x128xf32> to vector<8x128xf32>
    %309 = arith.mulf %306, %308 : vector<8x128xf32>
    %310 = vector.extract_strided_slice %48 {offsets = [2, 0, 0], sizes = [1, 8, 128], strides = [1, 1, 1]} : vector<3x8x128xf32> to vector<1x8x128xf32>
    %311 = vector.shape_cast %310 : vector<1x8x128xf32> to vector<8x128xf32>
    %312 = vector.extract_strided_slice %48 {offsets = [2, 0, 0], sizes = [1, 8, 128], strides = [1, 1, 1]} : vector<3x8x128xf32> to vector<1x8x128xf32>
    %313 = vector.shape_cast %312 : vector<1x8x128xf32> to vector<8x128xf32>
    %314 = arith.mulf %311, %313 : vector<8x128xf32>
    %315 = arith.mulf %263, %304 : vector<8x128xf32>
    %316 = arith.mulf %315, %263 : vector<8x128xf32>
    %cst_74 = arith.constant 0.000000e+00 : f32
    %317 = vector.broadcast %cst_74 : f32 to vector<8x128xf32>
    %318 = arith.addf %317, %316 : vector<8x128xf32>
    %319 = arith.mulf %267, %309 : vector<8x128xf32>
    %320 = arith.mulf %319, %267 : vector<8x128xf32>
    %321 = arith.addf %318, %320 : vector<8x128xf32>
    %322 = arith.mulf %271, %314 : vector<8x128xf32>
    %323 = arith.mulf %322, %271 : vector<8x128xf32>
    %324 = arith.addf %321, %323 : vector<8x128xf32>
    %325 = arith.mulf %263, %304 : vector<8x128xf32>
    %326 = arith.mulf %325, %275 : vector<8x128xf32>
    %cst_75 = arith.constant 0.000000e+00 : f32
    %327 = vector.broadcast %cst_75 : f32 to vector<8x128xf32>
    %328 = arith.addf %327, %326 : vector<8x128xf32>
    %329 = arith.mulf %267, %309 : vector<8x128xf32>
    %330 = arith.mulf %329, %281 : vector<8x128xf32>
    %331 = arith.addf %328, %330 : vector<8x128xf32>
    %332 = arith.mulf %271, %314 : vector<8x128xf32>
    %333 = arith.mulf %332, %285 : vector<8x128xf32>
    %334 = arith.addf %331, %333 : vector<8x128xf32>
    %335 = arith.mulf %263, %304 : vector<8x128xf32>
    %336 = arith.mulf %335, %289 : vector<8x128xf32>
    %cst_76 = arith.constant 0.000000e+00 : f32
    %337 = vector.broadcast %cst_76 : f32 to vector<8x128xf32>
    %338 = arith.addf %337, %336 : vector<8x128xf32>
    %339 = arith.mulf %267, %309 : vector<8x128xf32>
    %340 = arith.mulf %339, %293 : vector<8x128xf32>
    %341 = arith.addf %338, %340 : vector<8x128xf32>
    %342 = arith.mulf %271, %314 : vector<8x128xf32>
    %343 = arith.mulf %342, %299 : vector<8x128xf32>
    %344 = arith.addf %341, %343 : vector<8x128xf32>
    %345 = arith.mulf %275, %304 : vector<8x128xf32>
    %346 = arith.mulf %345, %275 : vector<8x128xf32>
    %cst_77 = arith.constant 0.000000e+00 : f32
    %347 = vector.broadcast %cst_77 : f32 to vector<8x128xf32>
    %348 = arith.addf %347, %346 : vector<8x128xf32>
    %349 = arith.mulf %281, %309 : vector<8x128xf32>
    %350 = arith.mulf %349, %281 : vector<8x128xf32>
    %351 = arith.addf %348, %350 : vector<8x128xf32>
    %352 = arith.mulf %285, %314 : vector<8x128xf32>
    %353 = arith.mulf %352, %285 : vector<8x128xf32>
    %354 = arith.addf %351, %353 : vector<8x128xf32>
    %355 = arith.mulf %275, %304 : vector<8x128xf32>
    %356 = arith.mulf %355, %289 : vector<8x128xf32>
    %cst_78 = arith.constant 0.000000e+00 : f32
    %357 = vector.broadcast %cst_78 : f32 to vector<8x128xf32>
    %358 = arith.addf %357, %356 : vector<8x128xf32>
    %359 = arith.mulf %281, %309 : vector<8x128xf32>
    %360 = arith.mulf %359, %293 : vector<8x128xf32>
    %361 = arith.addf %358, %360 : vector<8x128xf32>
    %362 = arith.mulf %285, %314 : vector<8x128xf32>
    %363 = arith.mulf %362, %299 : vector<8x128xf32>
    %364 = arith.addf %361, %363 : vector<8x128xf32>
    %365 = arith.mulf %289, %304 : vector<8x128xf32>
    %366 = arith.mulf %365, %289 : vector<8x128xf32>
    %cst_79 = arith.constant 0.000000e+00 : f32
    %367 = vector.broadcast %cst_79 : f32 to vector<8x128xf32>
    %368 = arith.addf %367, %366 : vector<8x128xf32>
    %369 = arith.mulf %293, %309 : vector<8x128xf32>
    %370 = arith.mulf %369, %293 : vector<8x128xf32>
    %371 = arith.addf %368, %370 : vector<8x128xf32>
    %372 = arith.mulf %299, %314 : vector<8x128xf32>
    %373 = arith.mulf %372, %299 : vector<8x128xf32>
    %374 = arith.addf %371, %373 : vector<8x128xf32>
    %375 = arith.mulf %96, %324 : vector<8x128xf32>
    %cst_80 = arith.constant 0.000000e+00 : f32
    %376 = vector.broadcast %cst_80 : f32 to vector<8x128xf32>
    %377 = arith.addf %376, %375 : vector<8x128xf32>
    %378 = arith.mulf %99, %334 : vector<8x128xf32>
    %379 = arith.addf %377, %378 : vector<8x128xf32>
    %380 = arith.mulf %102, %344 : vector<8x128xf32>
    %381 = arith.addf %379, %380 : vector<8x128xf32>
    %382 = arith.mulf %96, %334 : vector<8x128xf32>
    %cst_81 = arith.constant 0.000000e+00 : f32
    %383 = vector.broadcast %cst_81 : f32 to vector<8x128xf32>
    %384 = arith.addf %383, %382 : vector<8x128xf32>
    %385 = arith.mulf %99, %354 : vector<8x128xf32>
    %386 = arith.addf %384, %385 : vector<8x128xf32>
    %387 = arith.mulf %102, %364 : vector<8x128xf32>
    %388 = arith.addf %386, %387 : vector<8x128xf32>
    %389 = arith.mulf %96, %344 : vector<8x128xf32>
    %cst_82 = arith.constant 0.000000e+00 : f32
    %390 = vector.broadcast %cst_82 : f32 to vector<8x128xf32>
    %391 = arith.addf %390, %389 : vector<8x128xf32>
    %392 = arith.mulf %99, %364 : vector<8x128xf32>
    %393 = arith.addf %391, %392 : vector<8x128xf32>
    %394 = arith.mulf %102, %374 : vector<8x128xf32>
    %395 = arith.addf %393, %394 : vector<8x128xf32>
    %396 = arith.mulf %105, %324 : vector<8x128xf32>
    %cst_83 = arith.constant 0.000000e+00 : f32
    %397 = vector.broadcast %cst_83 : f32 to vector<8x128xf32>
    %398 = arith.addf %397, %396 : vector<8x128xf32>
    %399 = arith.mulf %108, %334 : vector<8x128xf32>
    %400 = arith.addf %398, %399 : vector<8x128xf32>
    %401 = arith.mulf %111, %344 : vector<8x128xf32>
    %402 = arith.addf %400, %401 : vector<8x128xf32>
    %403 = arith.mulf %105, %334 : vector<8x128xf32>
    %cst_84 = arith.constant 0.000000e+00 : f32
    %404 = vector.broadcast %cst_84 : f32 to vector<8x128xf32>
    %405 = arith.addf %404, %403 : vector<8x128xf32>
    %406 = arith.mulf %108, %354 : vector<8x128xf32>
    %407 = arith.addf %405, %406 : vector<8x128xf32>
    %408 = arith.mulf %111, %364 : vector<8x128xf32>
    %409 = arith.addf %407, %408 : vector<8x128xf32>
    %410 = arith.mulf %105, %344 : vector<8x128xf32>
    %cst_85 = arith.constant 0.000000e+00 : f32
    %411 = vector.broadcast %cst_85 : f32 to vector<8x128xf32>
    %412 = arith.addf %411, %410 : vector<8x128xf32>
    %413 = arith.mulf %108, %364 : vector<8x128xf32>
    %414 = arith.addf %412, %413 : vector<8x128xf32>
    %415 = arith.mulf %111, %374 : vector<8x128xf32>
    %416 = arith.addf %414, %415 : vector<8x128xf32>
    %417 = arith.mulf %114, %324 : vector<8x128xf32>
    %cst_86 = arith.constant 0.000000e+00 : f32
    %418 = vector.broadcast %cst_86 : f32 to vector<8x128xf32>
    %419 = arith.addf %418, %417 : vector<8x128xf32>
    %420 = arith.mulf %117, %334 : vector<8x128xf32>
    %421 = arith.addf %419, %420 : vector<8x128xf32>
    %422 = arith.mulf %120, %344 : vector<8x128xf32>
    %423 = arith.addf %421, %422 : vector<8x128xf32>
    %424 = arith.mulf %114, %334 : vector<8x128xf32>
    %cst_87 = arith.constant 0.000000e+00 : f32
    %425 = vector.broadcast %cst_87 : f32 to vector<8x128xf32>
    %426 = arith.addf %425, %424 : vector<8x128xf32>
    %427 = arith.mulf %117, %354 : vector<8x128xf32>
    %428 = arith.addf %426, %427 : vector<8x128xf32>
    %429 = arith.mulf %120, %364 : vector<8x128xf32>
    %430 = arith.addf %428, %429 : vector<8x128xf32>
    %431 = arith.mulf %114, %344 : vector<8x128xf32>
    %cst_88 = arith.constant 0.000000e+00 : f32
    %432 = vector.broadcast %cst_88 : f32 to vector<8x128xf32>
    %433 = arith.addf %432, %431 : vector<8x128xf32>
    %434 = arith.mulf %117, %364 : vector<8x128xf32>
    %435 = arith.addf %433, %434 : vector<8x128xf32>
    %436 = arith.mulf %120, %374 : vector<8x128xf32>
    %437 = arith.addf %435, %436 : vector<8x128xf32>
    %438 = arith.mulf %381, %96 : vector<8x128xf32>
    %cst_89 = arith.constant 0.000000e+00 : f32
    %439 = vector.broadcast %cst_89 : f32 to vector<8x128xf32>
    %440 = arith.addf %439, %438 : vector<8x128xf32>
    %441 = arith.mulf %388, %99 : vector<8x128xf32>
    %442 = arith.addf %440, %441 : vector<8x128xf32>
    %443 = arith.mulf %395, %102 : vector<8x128xf32>
    %444 = arith.addf %442, %443 : vector<8x128xf32>
    %c0_90 = arith.constant 0 : index
    %c0_91 = arith.constant 0 : index
    %445 = arith.index_cast %1 : i32 to index
    %446 = vector.load %arg7[%c0_90, %c0_91, %445] : memref<9x8x256xf32, #tpu.memory_space<vmem>>, vector<1x8x128xf32>
    %447 = vector.shape_cast %446 : vector<1x8x128xf32> to vector<8x128xf32>
    %448 = vector.shape_cast %444 : vector<8x128xf32> to vector<1x8x128xf32>
    tpu.vector_store %arg7[%c0_90, %c0_91, %445], %448 {strides = array<i32>} : memref<9x8x256xf32, #tpu.memory_space<vmem>>, vector<1x8x128xf32>,
    %449 = arith.mulf %381, %105 : vector<8x128xf32>
    %cst_92 = arith.constant 0.000000e+00 : f32
    %450 = vector.broadcast %cst_92 : f32 to vector<8x128xf32>
    %451 = arith.addf %450, %449 : vector<8x128xf32>
    %452 = arith.mulf %388, %108 : vector<8x128xf32>
    %453 = arith.addf %451, %452 : vector<8x128xf32>
    %454 = arith.mulf %395, %111 : vector<8x128xf32>
    %455 = arith.addf %453, %454 : vector<8x128xf32>
    %c1_93 = arith.constant 1 : index
    %c0_94 = arith.constant 0 : index
    %456 = arith.index_cast %1 : i32 to index
    %457 = vector.load %arg7[%c1_93, %c0_94, %456] : memref<9x8x256xf32, #tpu.memory_space<vmem>>, vector<1x8x128xf32>
    %458 = vector.shape_cast %457 : vector<1x8x128xf32> to vector<8x128xf32>
    %459 = vector.shape_cast %455 : vector<8x128xf32> to vector<1x8x128xf32>
    tpu.vector_store %arg7[%c1_93, %c0_94, %456], %459 {strides = array<i32>} : memref<9x8x256xf32, #tpu.memory_space<vmem>>, vector<1x8x128xf32>,
    %c3_95 = arith.constant 3 : index
    %c0_96 = arith.constant 0 : index
    %460 = arith.index_cast %1 : i32 to index
    %461 = vector.load %arg7[%c3_95, %c0_96, %460] : memref<9x8x256xf32, #tpu.memory_space<vmem>>, vector<1x8x128xf32>
    %462 = vector.shape_cast %461 : vector<1x8x128xf32> to vector<8x128xf32>
    %463 = vector.shape_cast %455 : vector<8x128xf32> to vector<1x8x128xf32>
    tpu.vector_store %arg7[%c3_95, %c0_96, %460], %463 {strides = array<i32>} : memref<9x8x256xf32, #tpu.memory_space<vmem>>, vector<1x8x128xf32>,
    %464 = arith.mulf %381, %114 : vector<8x128xf32>
    %cst_97 = arith.constant 0.000000e+00 : f32
    %465 = vector.broadcast %cst_97 : f32 to vector<8x128xf32>
    %466 = arith.addf %465, %464 : vector<8x128xf32>
    %467 = arith.mulf %388, %117 : vector<8x128xf32>
    %468 = arith.addf %466, %467 : vector<8x128xf32>
    %469 = arith.mulf %395, %120 : vector<8x128xf32>
    %470 = arith.addf %468, %469 : vector<8x128xf32>
    %c2_98 = arith.constant 2 : index
    %c0_99 = arith.constant 0 : index
    %471 = arith.index_cast %1 : i32 to index
    %472 = vector.load %arg7[%c2_98, %c0_99, %471] : memref<9x8x256xf32, #tpu.memory_space<vmem>>, vector<1x8x128xf32>
    %473 = vector.shape_cast %472 : vector<1x8x128xf32> to vector<8x128xf32>
    %474 = vector.shape_cast %470 : vector<8x128xf32> to vector<1x8x128xf32>
    tpu.vector_store %arg7[%c2_98, %c0_99, %471], %474 {strides = array<i32>} : memref<9x8x256xf32, #tpu.memory_space<vmem>>, vector<1x8x128xf32>,
    %c6_100 = arith.constant 6 : index
    %c0_101 = arith.constant 0 : index
    %475 = arith.index_cast %1 : i32 to index
    %476 = vector.load %arg7[%c6_100, %c0_101, %475] : memref<9x8x256xf32, #tpu.memory_space<vmem>>, vector<1x8x128xf32>
    %477 = vector.shape_cast %476 : vector<1x8x128xf32> to vector<8x128xf32>
    %478 = vector.shape_cast %470 : vector<8x128xf32> to vector<1x8x128xf32>
    tpu.vector_store %arg7[%c6_100, %c0_101, %475], %478 {strides = array<i32>} : memref<9x8x256xf32, #tpu.memory_space<vmem>>, vector<1x8x128xf32>,
    %479 = arith.mulf %402, %105 : vector<8x128xf32>
    %cst_102 = arith.constant 0.000000e+00 : f32
    %480 = vector.broadcast %cst_102 : f32 to vector<8x128xf32>
    %481 = arith.addf %480, %479 : vector<8x128xf32>
    %482 = arith.mulf %409, %108 : vector<8x128xf32>
    %483 = arith.addf %481, %482 : vector<8x128xf32>
    %484 = arith.mulf %416, %111 : vector<8x128xf32>
    %485 = arith.addf %483, %484 : vector<8x128xf32>
    %c4_103 = arith.constant 4 : index
    %c0_104 = arith.constant 0 : index
    %486 = arith.index_cast %1 : i32 to index
    %487 = vector.load %arg7[%c4_103, %c0_104, %486] : memref<9x8x256xf32, #tpu.memory_space<vmem>>, vector<1x8x128xf32>
    %488 = vector.shape_cast %487 : vector<1x8x128xf32> to vector<8x128xf32>
    %489 = vector.shape_cast %485 : vector<8x128xf32> to vector<1x8x128xf32>
    tpu.vector_store %arg7[%c4_103, %c0_104, %486], %489 {strides = array<i32>} : memref<9x8x256xf32, #tpu.memory_space<vmem>>, vector<1x8x128xf32>,
    %490 = arith.mulf %402, %114 : vector<8x128xf32>
    %cst_105 = arith.constant 0.000000e+00 : f32
    %491 = vector.broadcast %cst_105 : f32 to vector<8x128xf32>
    %492 = arith.addf %491, %490 : vector<8x128xf32>
    %493 = arith.mulf %409, %117 : vector<8x128xf32>
    %494 = arith.addf %492, %493 : vector<8x128xf32>
    %495 = arith.mulf %416, %120 : vector<8x128xf32>
    %496 = arith.addf %494, %495 : vector<8x128xf32>
    %c5_106 = arith.constant 5 : index
    %c0_107 = arith.constant 0 : index
    %497 = arith.index_cast %1 : i32 to index
    %498 = vector.load %arg7[%c5_106, %c0_107, %497] : memref<9x8x256xf32, #tpu.memory_space<vmem>>, vector<1x8x128xf32>
    %499 = vector.shape_cast %498 : vector<1x8x128xf32> to vector<8x128xf32>
    %500 = vector.shape_cast %496 : vector<8x128xf32> to vector<1x8x128xf32>
    tpu.vector_store %arg7[%c5_106, %c0_107, %497], %500 {strides = array<i32>} : memref<9x8x256xf32, #tpu.memory_space<vmem>>, vector<1x8x128xf32>,
    %c7_108 = arith.constant 7 : index
    %c0_109 = arith.constant 0 : index
    %501 = arith.index_cast %1 : i32 to index
    %502 = vector.load %arg7[%c7_108, %c0_109, %501] : memref<9x8x256xf32, #tpu.memory_space<vmem>>, vector<1x8x128xf32>
    %503 = vector.shape_cast %502 : vector<1x8x128xf32> to vector<8x128xf32>
    %504 = vector.shape_cast %496 : vector<8x128xf32> to vector<1x8x128xf32>
    tpu.vector_store %arg7[%c7_108, %c0_109, %501], %504 {strides = array<i32>} : memref<9x8x256xf32, #tpu.memory_space<vmem>>, vector<1x8x128xf32>,
    %505 = arith.mulf %423, %114 : vector<8x128xf32>
    %cst_110 = arith.constant 0.000000e+00 : f32
    %506 = vector.broadcast %cst_110 : f32 to vector<8x128xf32>
    %507 = arith.addf %506, %505 : vector<8x128xf32>
    %508 = arith.mulf %430, %117 : vector<8x128xf32>
    %509 = arith.addf %507, %508 : vector<8x128xf32>
    %510 = arith.mulf %437, %120 : vector<8x128xf32>
    %511 = arith.addf %509, %510 : vector<8x128xf32>
    %c8_111 = arith.constant 8 : index
    %c0_112 = arith.constant 0 : index
    %512 = arith.index_cast %1 : i32 to index
    %513 = vector.load %arg7[%c8_111, %c0_112, %512] : memref<9x8x256xf32, #tpu.memory_space<vmem>>, vector<1x8x128xf32>
    %514 = vector.shape_cast %513 : vector<1x8x128xf32> to vector<8x128xf32>
    %515 = vector.shape_cast %511 : vector<8x128xf32> to vector<1x8x128xf32>
    tpu.vector_store %arg7[%c8_111, %c0_112, %512], %515 {strides = array<i32>} : memref<9x8x256xf32, #tpu.memory_space<vmem>>, vector<1x8x128xf32>,
    %c1_i32 = arith.constant 1 : i32
    %c128_i32_113 = arith.constant 128 : i32
    %516 = arith.muli %c1_i32, %c128_i32_113 : i32
    %517 = tpu.assume_multiple %516, 128 : i32
    %c0_114 = arith.constant 0 : index
    %c0_115 = arith.constant 0 : index
    %518 = arith.index_cast %517 : i32 to index
    %519 = vector.load %arg4[%c0_114, %c0_115, %518] : memref<1x8x256xf32, #tpu.memory_space<vmem>>, vector<1x8x128xf32>
    %520 = vector.shape_cast %519 : vector<1x8x128xf32> to vector<8x128xf32>
    %c0_116 = arith.constant 0 : index
    %c0_117 = arith.constant 0 : index
    %521 = arith.index_cast %517 : i32 to index
    %522 = vector.load %arg2[%c0_116, %c0_117, %521] : memref<9x8x256xf32, #tpu.memory_space<vmem>>, vector<1x8x128xf32>
    %523 = vector.shape_cast %522 : vector<1x8x128xf32> to vector<8x128xf32>
    %c1_118 = arith.constant 1 : index
    %c0_119 = arith.constant 0 : index
    %524 = arith.index_cast %517 : i32 to index
    %525 = vector.load %arg2[%c1_118, %c0_119, %524] : memref<9x8x256xf32, #tpu.memory_space<vmem>>, vector<1x8x128xf32>
    %526 = vector.shape_cast %525 : vector<1x8x128xf32> to vector<8x128xf32>
    %c3_120 = arith.constant 3 : index
    %c0_121 = arith.constant 0 : index
    %527 = arith.index_cast %517 : i32 to index
    %528 = vector.load %arg2[%c3_120, %c0_121, %527] : memref<9x8x256xf32, #tpu.memory_space<vmem>>, vector<1x8x128xf32>
    %529 = vector.shape_cast %528 : vector<1x8x128xf32> to vector<8x128xf32>
    %c4_122 = arith.constant 4 : index
    %c0_123 = arith.constant 0 : index
    %530 = arith.index_cast %517 : i32 to index
    %531 = vector.load %arg2[%c4_122, %c0_123, %530] : memref<9x8x256xf32, #tpu.memory_space<vmem>>, vector<1x8x128xf32>
    %532 = vector.shape_cast %531 : vector<1x8x128xf32> to vector<8x128xf32>
    %533 = arith.mulf %523, %532 : vector<8x128xf32>
    %534 = arith.mulf %526, %529 : vector<8x128xf32>
    %535 = arith.subf %533, %534 : vector<8x128xf32>
    %cst_124 = arith.constant 1.000000e+00 : f32
    %536 = vector.broadcast %cst_124 : f32 to vector<8x128xf32>
    %537 = arith.divf %536, %535 : vector<8x128xf32>
    %538 = arith.subf %532, %529 : vector<8x128xf32>
    %cst_125 = arith.constant 3.125000e-02 : f32
    %539 = vector.broadcast %cst_125 : f32 to vector<8x128xf32>
    %540 = arith.mulf %538, %539 : vector<8x128xf32>
    %541 = arith.subf %523, %526 : vector<8x128xf32>
    %cst_126 = arith.constant 3.125000e-02 : f32
    %542 = vector.broadcast %cst_126 : f32 to vector<8x128xf32>
    %543 = arith.mulf %541, %542 : vector<8x128xf32>
    %544 = arith.addf %540, %543 : vector<8x128xf32>
    %cst_127 = arith.constant 1.000000e-01 : f32
    %545 = vector.broadcast %cst_127 : f32 to vector<8x128xf32>
    %546 = arith.mulf %545, %544 : vector<8x128xf32>
    %547 = arith.mulf %546, %537 : vector<8x128xf32>
    %c0_128 = arith.constant 0 : index
    %c0_129 = arith.constant 0 : index
    %548 = arith.index_cast %517 : i32 to index
    %549 = vector.load %arg5[%c0_128, %c0_129, %548] : memref<14x8x256xf32, #tpu.memory_space<vmem>>, vector<3x8x128xf32>
    %cst_130 = arith.constant 0.000000e+00 : f32
    %550 = vector.broadcast %cst_130 : f32 to vector<3x8x128xf32>
    %551 = arith.subf %550, %549 : vector<3x8x128xf32>
    %552 = math.exp %551 : vector<3x8x128xf32>
    %cst_131 = arith.constant 1.000000e+00 : f32
    %553 = vector.broadcast %cst_131 : f32 to vector<3x8x128xf32>
    %554 = arith.addf %553, %552 : vector<3x8x128xf32>
    %cst_132 = arith.constant 1.000000e+00 : f32
    %555 = vector.broadcast %cst_132 : f32 to vector<3x8x128xf32>
    %556 = arith.divf %555, %554 : vector<3x8x128xf32>
    %cst_133 = arith.constant 1.450000e+01 : f32
    %557 = vector.broadcast %cst_133 : f32 to vector<3x8x128xf32>
    %558 = arith.mulf %557, %556 : vector<3x8x128xf32>
    %cst_134 = arith.constant 5.000000e-01 : f32
    %559 = vector.broadcast %cst_134 : f32 to vector<3x8x128xf32>
    %560 = arith.addf %559, %558 : vector<3x8x128xf32>
    %561 = arith.mulf %520, %547 : vector<8x128xf32>
    %562 = vector.shape_cast %561 : vector<8x128xf32> to vector<1x8x128xf32>
    %563 = vector.broadcast %562 : vector<1x8x128xf32> to vector<3x8x128xf32>
    %564 = arith.mulf %560, %563 : vector<3x8x128xf32>
    %c0_135 = arith.constant 0 : index
    %c0_136 = arith.constant 0 : index
    %565 = arith.index_cast %517 : i32 to index
    %566 = vector.load %arg8[%c0_135, %c0_136, %565] : memref<3x8x256xf32, #tpu.memory_space<vmem>>, vector<3x8x128xf32>
    tpu.vector_store %arg8[%c0_135, %c0_136, %565], %564 {strides = array<i32>} : memref<3x8x256xf32, #tpu.memory_space<vmem>>, vector<3x8x128xf32>,
    %c3_137 = arith.constant 3 : index
    %c0_138 = arith.constant 0 : index
    %567 = arith.index_cast %517 : i32 to index
    %568 = vector.load %arg5[%c3_137, %c0_138, %567] : memref<14x8x256xf32, #tpu.memory_space<vmem>>, vector<4x8x128xf32>
    %569 = vector.extract_strided_slice %568 {offsets = [0, 0, 0], sizes = [1, 8, 128], strides = [1, 1, 1]} : vector<4x8x128xf32> to vector<1x8x128xf32>
    %570 = vector.shape_cast %569 : vector<1x8x128xf32> to vector<8x128xf32>
    %571 = vector.extract_strided_slice %568 {offsets = [0, 0, 0], sizes = [1, 8, 128], strides = [1, 1, 1]} : vector<4x8x128xf32> to vector<1x8x128xf32>
    %572 = vector.shape_cast %571 : vector<1x8x128xf32> to vector<8x128xf32>
    %573 = arith.mulf %570, %572 : vector<8x128xf32>
    %574 = vector.extract_strided_slice %568 {offsets = [1, 0, 0], sizes = [1, 8, 128], strides = [1, 1, 1]} : vector<4x8x128xf32> to vector<1x8x128xf32>
    %575 = vector.shape_cast %574 : vector<1x8x128xf32> to vector<8x128xf32>
    %576 = vector.extract_strided_slice %568 {offsets = [1, 0, 0], sizes = [1, 8, 128], strides = [1, 1, 1]} : vector<4x8x128xf32> to vector<1x8x128xf32>
    %577 = vector.shape_cast %576 : vector<1x8x128xf32> to vector<8x128xf32>
    %578 = arith.mulf %575, %577 : vector<8x128xf32>
    %579 = arith.addf %573, %578 : vector<8x128xf32>
    %580 = vector.extract_strided_slice %568 {offsets = [2, 0, 0], sizes = [1, 8, 128], strides = [1, 1, 1]} : vector<4x8x128xf32> to vector<1x8x128xf32>
    %581 = vector.shape_cast %580 : vector<1x8x128xf32> to vector<8x128xf32>
    %582 = vector.extract_strided_slice %568 {offsets = [2, 0, 0], sizes = [1, 8, 128], strides = [1, 1, 1]} : vector<4x8x128xf32> to vector<1x8x128xf32>
    %583 = vector.shape_cast %582 : vector<1x8x128xf32> to vector<8x128xf32>
    %584 = arith.mulf %581, %583 : vector<8x128xf32>
    %585 = arith.addf %579, %584 : vector<8x128xf32>
    %586 = vector.extract_strided_slice %568 {offsets = [3, 0, 0], sizes = [1, 8, 128], strides = [1, 1, 1]} : vector<4x8x128xf32> to vector<1x8x128xf32>
    %587 = vector.shape_cast %586 : vector<1x8x128xf32> to vector<8x128xf32>
    %588 = vector.extract_strided_slice %568 {offsets = [3, 0, 0], sizes = [1, 8, 128], strides = [1, 1, 1]} : vector<4x8x128xf32> to vector<1x8x128xf32>
    %589 = vector.shape_cast %588 : vector<1x8x128xf32> to vector<8x128xf32>
    %590 = arith.mulf %587, %589 : vector<8x128xf32>
    %591 = arith.addf %585, %590 : vector<8x128xf32>
    %592 = math.sqrt %591 : vector<8x128xf32>
    %cst_139 = arith.constant 9.99999993E-9 : f32
    %593 = vector.broadcast %cst_139 : f32 to vector<8x128xf32>
    %594 = arith.addf %592, %593 : vector<8x128xf32>
    %cst_140 = arith.constant 1.000000e+00 : f32
    %595 = vector.broadcast %cst_140 : f32 to vector<8x128xf32>
    %596 = arith.divf %595, %594 : vector<8x128xf32>
    %597 = vector.shape_cast %596 : vector<8x128xf32> to vector<1x8x128xf32>
    %598 = vector.broadcast %597 : vector<1x8x128xf32> to vector<4x8x128xf32>
    %599 = arith.mulf %568, %598 : vector<4x8x128xf32>
    %c0_141 = arith.constant 0 : index
    %c0_142 = arith.constant 0 : index
    %600 = arith.index_cast %517 : i32 to index
    %601 = vector.load %arg9[%c0_141, %c0_142, %600] : memref<4x8x256xf32, #tpu.memory_space<vmem>>, vector<4x8x128xf32>
    tpu.vector_store %arg9[%c0_141, %c0_142, %600], %599 {strides = array<i32>} : memref<4x8x256xf32, #tpu.memory_space<vmem>>, vector<4x8x128xf32>,
    %c7_143 = arith.constant 7 : index
    %c0_144 = arith.constant 0 : index
    %602 = arith.index_cast %517 : i32 to index
    %603 = vector.load %arg5[%c7_143, %c0_144, %602] : memref<14x8x256xf32, #tpu.memory_space<vmem>>, vector<3x8x128xf32>
    %c0_145 = arith.constant 0 : index
    %c0_146 = arith.constant 0 : index
    %604 = arith.index_cast %517 : i32 to index
    %605 = vector.load %arg10[%c0_145, %c0_146, %604] : memref<3x8x256xf32, #tpu.memory_space<vmem>>, vector<3x8x128xf32>
    tpu.vector_store %arg10[%c0_145, %c0_146, %604], %603 {strides = array<i32>} : memref<3x8x256xf32, #tpu.memory_space<vmem>>, vector<3x8x128xf32>,
    %c10_147 = arith.constant 10 : index
    %c0_148 = arith.constant 0 : index
    %606 = arith.index_cast %517 : i32 to index
    %607 = vector.load %arg5[%c10_147, %c0_148, %606] : memref<14x8x256xf32, #tpu.memory_space<vmem>>, vector<4x8x128xf32>
    %c0_149 = arith.constant 0 : index
    %c0_150 = arith.constant 0 : index
    %608 = arith.index_cast %517 : i32 to index
    %609 = vector.load %arg11[%c0_149, %c0_150, %608] : memref<4x8x256xf32, #tpu.memory_space<vmem>>, vector<4x8x128xf32>
    tpu.vector_store %arg11[%c0_149, %c0_150, %608], %607 {strides = array<i32>} : memref<4x8x256xf32, #tpu.memory_space<vmem>>, vector<4x8x128xf32>,
    %c0_151 = arith.constant 0 : index
    %c0_152 = arith.constant 0 : index
    %610 = arith.index_cast %517 : i32 to index
    %611 = vector.load %arg1[%c0_151, %c0_152, %610] : memref<16x8x256xf32, #tpu.memory_space<vmem>>, vector<1x8x128xf32>
    %612 = vector.shape_cast %611 : vector<1x8x128xf32> to vector<8x128xf32>
    %c1_153 = arith.constant 1 : index
    %c0_154 = arith.constant 0 : index
    %613 = arith.index_cast %517 : i32 to index
    %614 = vector.load %arg1[%c1_153, %c0_154, %613] : memref<16x8x256xf32, #tpu.memory_space<vmem>>, vector<1x8x128xf32>
    %615 = vector.shape_cast %614 : vector<1x8x128xf32> to vector<8x128xf32>
    %c2_155 = arith.constant 2 : index
    %c0_156 = arith.constant 0 : index
    %616 = arith.index_cast %517 : i32 to index
    %617 = vector.load %arg1[%c2_155, %c0_156, %616] : memref<16x8x256xf32, #tpu.memory_space<vmem>>, vector<1x8x128xf32>
    %618 = vector.shape_cast %617 : vector<1x8x128xf32> to vector<8x128xf32>
    %c4_157 = arith.constant 4 : index
    %c0_158 = arith.constant 0 : index
    %619 = arith.index_cast %517 : i32 to index
    %620 = vector.load %arg1[%c4_157, %c0_158, %619] : memref<16x8x256xf32, #tpu.memory_space<vmem>>, vector<1x8x128xf32>
    %621 = vector.shape_cast %620 : vector<1x8x128xf32> to vector<8x128xf32>
    %c5_159 = arith.constant 5 : index
    %c0_160 = arith.constant 0 : index
    %622 = arith.index_cast %517 : i32 to index
    %623 = vector.load %arg1[%c5_159, %c0_160, %622] : memref<16x8x256xf32, #tpu.memory_space<vmem>>, vector<1x8x128xf32>
    %624 = vector.shape_cast %623 : vector<1x8x128xf32> to vector<8x128xf32>
    %c6_161 = arith.constant 6 : index
    %c0_162 = arith.constant 0 : index
    %625 = arith.index_cast %517 : i32 to index
    %626 = vector.load %arg1[%c6_161, %c0_162, %625] : memref<16x8x256xf32, #tpu.memory_space<vmem>>, vector<1x8x128xf32>
    %627 = vector.shape_cast %626 : vector<1x8x128xf32> to vector<8x128xf32>
    %c8_163 = arith.constant 8 : index
    %c0_164 = arith.constant 0 : index
    %628 = arith.index_cast %517 : i32 to index
    %629 = vector.load %arg1[%c8_163, %c0_164, %628] : memref<16x8x256xf32, #tpu.memory_space<vmem>>, vector<1x8x128xf32>
    %630 = vector.shape_cast %629 : vector<1x8x128xf32> to vector<8x128xf32>
    %c9_165 = arith.constant 9 : index
    %c0_166 = arith.constant 0 : index
    %631 = arith.index_cast %517 : i32 to index
    %632 = vector.load %arg1[%c9_165, %c0_166, %631] : memref<16x8x256xf32, #tpu.memory_space<vmem>>, vector<1x8x128xf32>
    %633 = vector.shape_cast %632 : vector<1x8x128xf32> to vector<8x128xf32>
    %c10_167 = arith.constant 10 : index
    %c0_168 = arith.constant 0 : index
    %634 = arith.index_cast %517 : i32 to index
    %635 = vector.load %arg1[%c10_167, %c0_168, %634] : memref<16x8x256xf32, #tpu.memory_space<vmem>>, vector<1x8x128xf32>
    %636 = vector.shape_cast %635 : vector<1x8x128xf32> to vector<8x128xf32>
    %c2_169 = arith.constant 2 : index
    %c0_170 = arith.constant 0 : index
    %637 = arith.index_cast %517 : i32 to index
    %638 = vector.load %arg2[%c2_169, %c0_170, %637] : memref<9x8x256xf32, #tpu.memory_space<vmem>>, vector<1x8x128xf32>
    %639 = vector.shape_cast %638 : vector<1x8x128xf32> to vector<8x128xf32>
    %c5_171 = arith.constant 5 : index
    %c0_172 = arith.constant 0 : index
    %640 = arith.index_cast %517 : i32 to index
    %641 = vector.load %arg2[%c5_171, %c0_172, %640] : memref<9x8x256xf32, #tpu.memory_space<vmem>>, vector<1x8x128xf32>
    %642 = vector.shape_cast %641 : vector<1x8x128xf32> to vector<8x128xf32>
    %c6_173 = arith.constant 6 : index
    %c0_174 = arith.constant 0 : index
    %643 = arith.index_cast %517 : i32 to index
    %644 = vector.load %arg2[%c6_173, %c0_174, %643] : memref<9x8x256xf32, #tpu.memory_space<vmem>>, vector<1x8x128xf32>
    %645 = vector.shape_cast %644 : vector<1x8x128xf32> to vector<8x128xf32>
    %c7_175 = arith.constant 7 : index
    %c0_176 = arith.constant 0 : index
    %646 = arith.index_cast %517 : i32 to index
    %647 = vector.load %arg2[%c7_175, %c0_176, %646] : memref<9x8x256xf32, #tpu.memory_space<vmem>>, vector<1x8x128xf32>
    %648 = vector.shape_cast %647 : vector<1x8x128xf32> to vector<8x128xf32>
    %c8_177 = arith.constant 8 : index
    %c0_178 = arith.constant 0 : index
    %649 = arith.index_cast %517 : i32 to index
    %650 = vector.load %arg2[%c8_177, %c0_178, %649] : memref<9x8x256xf32, #tpu.memory_space<vmem>>, vector<1x8x128xf32>
    %651 = vector.shape_cast %650 : vector<1x8x128xf32> to vector<8x128xf32>
    %652 = arith.mulf %532, %651 : vector<8x128xf32>
    %653 = arith.mulf %642, %648 : vector<8x128xf32>
    %654 = arith.subf %652, %653 : vector<8x128xf32>
    %655 = arith.mulf %526, %651 : vector<8x128xf32>
    %656 = arith.mulf %639, %648 : vector<8x128xf32>
    %657 = arith.subf %655, %656 : vector<8x128xf32>
    %658 = arith.mulf %526, %642 : vector<8x128xf32>
    %659 = arith.mulf %639, %532 : vector<8x128xf32>
    %660 = arith.subf %658, %659 : vector<8x128xf32>
    %661 = arith.mulf %529, %651 : vector<8x128xf32>
    %662 = arith.mulf %642, %645 : vector<8x128xf32>
    %663 = arith.subf %661, %662 : vector<8x128xf32>
    %664 = arith.mulf %523, %651 : vector<8x128xf32>
    %665 = arith.mulf %639, %645 : vector<8x128xf32>
    %666 = arith.subf %664, %665 : vector<8x128xf32>
    %667 = arith.mulf %523, %642 : vector<8x128xf32>
    %668 = arith.mulf %639, %529 : vector<8x128xf32>
    %669 = arith.subf %667, %668 : vector<8x128xf32>
    %670 = arith.mulf %529, %648 : vector<8x128xf32>
    %671 = arith.mulf %532, %645 : vector<8x128xf32>
    %672 = arith.subf %670, %671 : vector<8x128xf32>
    %673 = arith.mulf %523, %648 : vector<8x128xf32>
    %674 = arith.mulf %526, %645 : vector<8x128xf32>
    %675 = arith.subf %673, %674 : vector<8x128xf32>
    %676 = arith.mulf %523, %654 : vector<8x128xf32>
    %677 = arith.mulf %526, %663 : vector<8x128xf32>
    %678 = arith.subf %676, %677 : vector<8x128xf32>
    %679 = arith.mulf %639, %672 : vector<8x128xf32>
    %680 = arith.addf %678, %679 : vector<8x128xf32>
    %cst_179 = arith.constant 1.000000e+00 : f32
    %681 = vector.broadcast %cst_179 : f32 to vector<8x128xf32>
    %682 = arith.divf %681, %680 : vector<8x128xf32>
    %c0_180 = arith.constant 0 : index
    %c0_181 = arith.constant 0 : index
    %683 = arith.index_cast %517 : i32 to index
    %684 = vector.load %arg3[%c0_180, %c0_181, %683] : memref<2x8x256xf32, #tpu.memory_space<vmem>>, vector<1x8x128xf32>
    %685 = vector.shape_cast %684 : vector<1x8x128xf32> to vector<8x128xf32>
    %c1_182 = arith.constant 1 : index
    %c0_183 = arith.constant 0 : index
    %686 = arith.index_cast %517 : i32 to index
    %687 = vector.load %arg3[%c1_182, %c0_183, %686] : memref<2x8x256xf32, #tpu.memory_space<vmem>>, vector<1x8x128xf32>
    %688 = vector.shape_cast %687 : vector<1x8x128xf32> to vector<8x128xf32>
    %689 = arith.mulf %654, %685 : vector<8x128xf32>
    %690 = arith.mulf %657, %688 : vector<8x128xf32>
    %691 = arith.subf %689, %690 : vector<8x128xf32>
    %692 = arith.addf %691, %660 : vector<8x128xf32>
    %693 = arith.mulf %692, %682 : vector<8x128xf32>
    %694 = arith.mulf %666, %688 : vector<8x128xf32>
    %695 = arith.mulf %663, %685 : vector<8x128xf32>
    %696 = arith.subf %694, %695 : vector<8x128xf32>
    %697 = arith.subf %696, %669 : vector<8x128xf32>
    %698 = arith.mulf %697, %682 : vector<8x128xf32>
    %699 = arith.mulf %672, %685 : vector<8x128xf32>
    %700 = arith.mulf %675, %688 : vector<8x128xf32>
    %701 = arith.subf %699, %700 : vector<8x128xf32>
    %702 = arith.addf %701, %535 : vector<8x128xf32>
    %703 = arith.mulf %702, %682 : vector<8x128xf32>
    %704 = arith.mulf %693, %693 : vector<8x128xf32>
    %705 = arith.mulf %698, %698 : vector<8x128xf32>
    %706 = arith.addf %704, %705 : vector<8x128xf32>
    %707 = arith.mulf %703, %703 : vector<8x128xf32>
    %708 = arith.addf %706, %707 : vector<8x128xf32>
    %709 = math.rsqrt %708 : vector<8x128xf32>
    %710 = arith.mulf %693, %709 : vector<8x128xf32>
    %711 = arith.mulf %698, %709 : vector<8x128xf32>
    %712 = arith.mulf %703, %709 : vector<8x128xf32>
    %713 = arith.mulf %612, %710 : vector<8x128xf32>
    %714 = arith.mulf %615, %711 : vector<8x128xf32>
    %715 = arith.addf %713, %714 : vector<8x128xf32>
    %716 = arith.mulf %618, %712 : vector<8x128xf32>
    %717 = arith.addf %715, %716 : vector<8x128xf32>
    %c3_184 = arith.constant 3 : index
    %c0_185 = arith.constant 0 : index
    %718 = arith.index_cast %517 : i32 to index
    %719 = vector.load %arg1[%c3_184, %c0_185, %718] : memref<16x8x256xf32, #tpu.memory_space<vmem>>, vector<1x8x128xf32>
    %720 = vector.shape_cast %719 : vector<1x8x128xf32> to vector<8x128xf32>
    %721 = arith.mulf %717, %520 : vector<8x128xf32>
    %722 = arith.addf %720, %721 : vector<8x128xf32>
    %c0_186 = arith.constant 0 : index
    %c0_187 = arith.constant 0 : index
    %723 = arith.index_cast %517 : i32 to index
    %724 = vector.load %arg6[%c0_186, %c0_187, %723] : memref<3x8x256xf32, #tpu.memory_space<vmem>>, vector<1x8x128xf32>
    %725 = vector.shape_cast %724 : vector<1x8x128xf32> to vector<8x128xf32>
    %726 = vector.shape_cast %722 : vector<8x128xf32> to vector<1x8x128xf32>
    tpu.vector_store %arg6[%c0_186, %c0_187, %723], %726 {strides = array<i32>} : memref<3x8x256xf32, #tpu.memory_space<vmem>>, vector<1x8x128xf32>,
    %727 = arith.mulf %621, %710 : vector<8x128xf32>
    %728 = arith.mulf %624, %711 : vector<8x128xf32>
    %729 = arith.addf %727, %728 : vector<8x128xf32>
    %730 = arith.mulf %627, %712 : vector<8x128xf32>
    %731 = arith.addf %729, %730 : vector<8x128xf32>
    %c7_188 = arith.constant 7 : index
    %c0_189 = arith.constant 0 : index
    %732 = arith.index_cast %517 : i32 to index
    %733 = vector.load %arg1[%c7_188, %c0_189, %732] : memref<16x8x256xf32, #tpu.memory_space<vmem>>, vector<1x8x128xf32>
    %734 = vector.shape_cast %733 : vector<1x8x128xf32> to vector<8x128xf32>
    %735 = arith.mulf %731, %520 : vector<8x128xf32>
    %736 = arith.addf %734, %735 : vector<8x128xf32>
    %c1_190 = arith.constant 1 : index
    %c0_191 = arith.constant 0 : index
    %737 = arith.index_cast %517 : i32 to index
    %738 = vector.load %arg6[%c1_190, %c0_191, %737] : memref<3x8x256xf32, #tpu.memory_space<vmem>>, vector<1x8x128xf32>
    %739 = vector.shape_cast %738 : vector<1x8x128xf32> to vector<8x128xf32>
    %740 = vector.shape_cast %736 : vector<8x128xf32> to vector<1x8x128xf32>
    tpu.vector_store %arg6[%c1_190, %c0_191, %737], %740 {strides = array<i32>} : memref<3x8x256xf32, #tpu.memory_space<vmem>>, vector<1x8x128xf32>,
    %741 = arith.mulf %630, %710 : vector<8x128xf32>
    %742 = arith.mulf %633, %711 : vector<8x128xf32>
    %743 = arith.addf %741, %742 : vector<8x128xf32>
    %744 = arith.mulf %636, %712 : vector<8x128xf32>
    %745 = arith.addf %743, %744 : vector<8x128xf32>
    %c11_192 = arith.constant 11 : index
    %c0_193 = arith.constant 0 : index
    %746 = arith.index_cast %517 : i32 to index
    %747 = vector.load %arg1[%c11_192, %c0_193, %746] : memref<16x8x256xf32, #tpu.memory_space<vmem>>, vector<1x8x128xf32>
    %748 = vector.shape_cast %747 : vector<1x8x128xf32> to vector<8x128xf32>
    %749 = arith.mulf %745, %520 : vector<8x128xf32>
    %750 = arith.addf %748, %749 : vector<8x128xf32>
    %c2_194 = arith.constant 2 : index
    %c0_195 = arith.constant 0 : index
    %751 = arith.index_cast %517 : i32 to index
    %752 = vector.load %arg6[%c2_194, %c0_195, %751] : memref<3x8x256xf32, #tpu.memory_space<vmem>>, vector<1x8x128xf32>
    %753 = vector.shape_cast %752 : vector<1x8x128xf32> to vector<8x128xf32>
    %754 = vector.shape_cast %750 : vector<8x128xf32> to vector<1x8x128xf32>
    tpu.vector_store %arg6[%c2_194, %c0_195, %751], %754 {strides = array<i32>} : memref<3x8x256xf32, #tpu.memory_space<vmem>>, vector<1x8x128xf32>,
    %755 = vector.extract_strided_slice %599 {offsets = [0, 0, 0], sizes = [1, 8, 128], strides = [1, 1, 1]} : vector<4x8x128xf32> to vector<1x8x128xf32>
    %756 = vector.shape_cast %755 : vector<1x8x128xf32> to vector<8x128xf32>
    %757 = vector.extract_strided_slice %599 {offsets = [1, 0, 0], sizes = [1, 8, 128], strides = [1, 1, 1]} : vector<4x8x128xf32> to vector<1x8x128xf32>
    %758 = vector.shape_cast %757 : vector<1x8x128xf32> to vector<8x128xf32>
    %759 = vector.extract_strided_slice %599 {offsets = [2, 0, 0], sizes = [1, 8, 128], strides = [1, 1, 1]} : vector<4x8x128xf32> to vector<1x8x128xf32>
    %760 = vector.shape_cast %759 : vector<1x8x128xf32> to vector<8x128xf32>
    %761 = vector.extract_strided_slice %599 {offsets = [3, 0, 0], sizes = [1, 8, 128], strides = [1, 1, 1]} : vector<4x8x128xf32> to vector<1x8x128xf32>
    %762 = vector.shape_cast %761 : vector<1x8x128xf32> to vector<8x128xf32>
    %763 = arith.mulf %756, %756 : vector<8x128xf32>
    %764 = arith.mulf %758, %758 : vector<8x128xf32>
    %765 = arith.addf %763, %764 : vector<8x128xf32>
    %766 = arith.mulf %760, %760 : vector<8x128xf32>
    %767 = arith.addf %765, %766 : vector<8x128xf32>
    %768 = arith.mulf %762, %762 : vector<8x128xf32>
    %769 = arith.addf %767, %768 : vector<8x128xf32>
    %cst_196 = arith.constant 9.99999993E-9 : f32
    %770 = vector.broadcast %cst_196 : f32 to vector<8x128xf32>
    %771 = arith.addf %769, %770 : vector<8x128xf32>
    %cst_197 = arith.constant 2.000000e+00 : f32
    %772 = vector.broadcast %cst_197 : f32 to vector<8x128xf32>
    %773 = arith.divf %772, %771 : vector<8x128xf32>
    %774 = arith.mulf %758, %758 : vector<8x128xf32>
    %775 = arith.mulf %760, %760 : vector<8x128xf32>
    %776 = arith.addf %774, %775 : vector<8x128xf32>
    %777 = arith.mulf %773, %776 : vector<8x128xf32>
    %cst_198 = arith.constant 1.000000e+00 : f32
    %778 = vector.broadcast %cst_198 : f32 to vector<8x128xf32>
    %779 = arith.subf %778, %777 : vector<8x128xf32>
    %780 = arith.mulf %756, %758 : vector<8x128xf32>
    %781 = arith.mulf %760, %762 : vector<8x128xf32>
    %782 = arith.subf %780, %781 : vector<8x128xf32>
    %783 = arith.mulf %773, %782 : vector<8x128xf32>
    %784 = arith.mulf %756, %760 : vector<8x128xf32>
    %785 = arith.mulf %758, %762 : vector<8x128xf32>
    %786 = arith.addf %784, %785 : vector<8x128xf32>
    %787 = arith.mulf %773, %786 : vector<8x128xf32>
    %788 = arith.mulf %756, %758 : vector<8x128xf32>
    %789 = arith.mulf %760, %762 : vector<8x128xf32>
    %790 = arith.addf %788, %789 : vector<8x128xf32>
    %791 = arith.mulf %773, %790 : vector<8x128xf32>
    %792 = arith.mulf %756, %756 : vector<8x128xf32>
    %793 = arith.mulf %760, %760 : vector<8x128xf32>
    %794 = arith.addf %792, %793 : vector<8x128xf32>
    %795 = arith.mulf %773, %794 : vector<8x128xf32>
    %cst_199 = arith.constant 1.000000e+00 : f32
    %796 = vector.broadcast %cst_199 : f32 to vector<8x128xf32>
    %797 = arith.subf %796, %795 : vector<8x128xf32>
    %798 = arith.mulf %758, %760 : vector<8x128xf32>
    %799 = arith.mulf %756, %762 : vector<8x128xf32>
    %800 = arith.subf %798, %799 : vector<8x128xf32>
    %801 = arith.mulf %773, %800 : vector<8x128xf32>
    %802 = arith.mulf %756, %760 : vector<8x128xf32>
    %803 = arith.mulf %758, %762 : vector<8x128xf32>
    %804 = arith.subf %802, %803 : vector<8x128xf32>
    %805 = arith.mulf %773, %804 : vector<8x128xf32>
    %806 = arith.mulf %758, %760 : vector<8x128xf32>
    %807 = arith.mulf %756, %762 : vector<8x128xf32>
    %808 = arith.addf %806, %807 : vector<8x128xf32>
    %809 = arith.mulf %773, %808 : vector<8x128xf32>
    %810 = arith.mulf %756, %756 : vector<8x128xf32>
    %811 = arith.mulf %758, %758 : vector<8x128xf32>
    %812 = arith.addf %810, %811 : vector<8x128xf32>
    %813 = arith.mulf %773, %812 : vector<8x128xf32>
    %cst_200 = arith.constant 1.000000e+00 : f32
    %814 = vector.broadcast %cst_200 : f32 to vector<8x128xf32>
    %815 = arith.subf %814, %813 : vector<8x128xf32>
    %816 = vector.extract_strided_slice %564 {offsets = [0, 0, 0], sizes = [1, 8, 128], strides = [1, 1, 1]} : vector<3x8x128xf32> to vector<1x8x128xf32>
    %817 = vector.shape_cast %816 : vector<1x8x128xf32> to vector<8x128xf32>
    %818 = vector.extract_strided_slice %564 {offsets = [0, 0, 0], sizes = [1, 8, 128], strides = [1, 1, 1]} : vector<3x8x128xf32> to vector<1x8x128xf32>
    %819 = vector.shape_cast %818 : vector<1x8x128xf32> to vector<8x128xf32>
    %820 = arith.mulf %817, %819 : vector<8x128xf32>
    %821 = vector.extract_strided_slice %564 {offsets = [1, 0, 0], sizes = [1, 8, 128], strides = [1, 1, 1]} : vector<3x8x128xf32> to vector<1x8x128xf32>
    %822 = vector.shape_cast %821 : vector<1x8x128xf32> to vector<8x128xf32>
    %823 = vector.extract_strided_slice %564 {offsets = [1, 0, 0], sizes = [1, 8, 128], strides = [1, 1, 1]} : vector<3x8x128xf32> to vector<1x8x128xf32>
    %824 = vector.shape_cast %823 : vector<1x8x128xf32> to vector<8x128xf32>
    %825 = arith.mulf %822, %824 : vector<8x128xf32>
    %826 = vector.extract_strided_slice %564 {offsets = [2, 0, 0], sizes = [1, 8, 128], strides = [1, 1, 1]} : vector<3x8x128xf32> to vector<1x8x128xf32>
    %827 = vector.shape_cast %826 : vector<1x8x128xf32> to vector<8x128xf32>
    %828 = vector.extract_strided_slice %564 {offsets = [2, 0, 0], sizes = [1, 8, 128], strides = [1, 1, 1]} : vector<3x8x128xf32> to vector<1x8x128xf32>
    %829 = vector.shape_cast %828 : vector<1x8x128xf32> to vector<8x128xf32>
    %830 = arith.mulf %827, %829 : vector<8x128xf32>
    %831 = arith.mulf %779, %820 : vector<8x128xf32>
    %832 = arith.mulf %831, %779 : vector<8x128xf32>
    %cst_201 = arith.constant 0.000000e+00 : f32
    %833 = vector.broadcast %cst_201 : f32 to vector<8x128xf32>
    %834 = arith.addf %833, %832 : vector<8x128xf32>
    %835 = arith.mulf %783, %825 : vector<8x128xf32>
    %836 = arith.mulf %835, %783 : vector<8x128xf32>
    %837 = arith.addf %834, %836 : vector<8x128xf32>
    %838 = arith.mulf %787, %830 : vector<8x128xf32>
    %839 = arith.mulf %838, %787 : vector<8x128xf32>
    %840 = arith.addf %837, %839 : vector<8x128xf32>
    %841 = arith.mulf %779, %820 : vector<8x128xf32>
    %842 = arith.mulf %841, %791 : vector<8x128xf32>
    %cst_202 = arith.constant 0.000000e+00 : f32
    %843 = vector.broadcast %cst_202 : f32 to vector<8x128xf32>
    %844 = arith.addf %843, %842 : vector<8x128xf32>
    %845 = arith.mulf %783, %825 : vector<8x128xf32>
    %846 = arith.mulf %845, %797 : vector<8x128xf32>
    %847 = arith.addf %844, %846 : vector<8x128xf32>
    %848 = arith.mulf %787, %830 : vector<8x128xf32>
    %849 = arith.mulf %848, %801 : vector<8x128xf32>
    %850 = arith.addf %847, %849 : vector<8x128xf32>
    %851 = arith.mulf %779, %820 : vector<8x128xf32>
    %852 = arith.mulf %851, %805 : vector<8x128xf32>
    %cst_203 = arith.constant 0.000000e+00 : f32
    %853 = vector.broadcast %cst_203 : f32 to vector<8x128xf32>
    %854 = arith.addf %853, %852 : vector<8x128xf32>
    %855 = arith.mulf %783, %825 : vector<8x128xf32>
    %856 = arith.mulf %855, %809 : vector<8x128xf32>
    %857 = arith.addf %854, %856 : vector<8x128xf32>
    %858 = arith.mulf %787, %830 : vector<8x128xf32>
    %859 = arith.mulf %858, %815 : vector<8x128xf32>
    %860 = arith.addf %857, %859 : vector<8x128xf32>
    %861 = arith.mulf %791, %820 : vector<8x128xf32>
    %862 = arith.mulf %861, %791 : vector<8x128xf32>
    %cst_204 = arith.constant 0.000000e+00 : f32
    %863 = vector.broadcast %cst_204 : f32 to vector<8x128xf32>
    %864 = arith.addf %863, %862 : vector<8x128xf32>
    %865 = arith.mulf %797, %825 : vector<8x128xf32>
    %866 = arith.mulf %865, %797 : vector<8x128xf32>
    %867 = arith.addf %864, %866 : vector<8x128xf32>
    %868 = arith.mulf %801, %830 : vector<8x128xf32>
    %869 = arith.mulf %868, %801 : vector<8x128xf32>
    %870 = arith.addf %867, %869 : vector<8x128xf32>
    %871 = arith.mulf %791, %820 : vector<8x128xf32>
    %872 = arith.mulf %871, %805 : vector<8x128xf32>
    %cst_205 = arith.constant 0.000000e+00 : f32
    %873 = vector.broadcast %cst_205 : f32 to vector<8x128xf32>
    %874 = arith.addf %873, %872 : vector<8x128xf32>
    %875 = arith.mulf %797, %825 : vector<8x128xf32>
    %876 = arith.mulf %875, %809 : vector<8x128xf32>
    %877 = arith.addf %874, %876 : vector<8x128xf32>
    %878 = arith.mulf %801, %830 : vector<8x128xf32>
    %879 = arith.mulf %878, %815 : vector<8x128xf32>
    %880 = arith.addf %877, %879 : vector<8x128xf32>
    %881 = arith.mulf %805, %820 : vector<8x128xf32>
    %882 = arith.mulf %881, %805 : vector<8x128xf32>
    %cst_206 = arith.constant 0.000000e+00 : f32
    %883 = vector.broadcast %cst_206 : f32 to vector<8x128xf32>
    %884 = arith.addf %883, %882 : vector<8x128xf32>
    %885 = arith.mulf %809, %825 : vector<8x128xf32>
    %886 = arith.mulf %885, %809 : vector<8x128xf32>
    %887 = arith.addf %884, %886 : vector<8x128xf32>
    %888 = arith.mulf %815, %830 : vector<8x128xf32>
    %889 = arith.mulf %888, %815 : vector<8x128xf32>
    %890 = arith.addf %887, %889 : vector<8x128xf32>
    %891 = arith.mulf %612, %840 : vector<8x128xf32>
    %cst_207 = arith.constant 0.000000e+00 : f32
    %892 = vector.broadcast %cst_207 : f32 to vector<8x128xf32>
    %893 = arith.addf %892, %891 : vector<8x128xf32>
    %894 = arith.mulf %615, %850 : vector<8x128xf32>
    %895 = arith.addf %893, %894 : vector<8x128xf32>
    %896 = arith.mulf %618, %860 : vector<8x128xf32>
    %897 = arith.addf %895, %896 : vector<8x128xf32>
    %898 = arith.mulf %612, %850 : vector<8x128xf32>
    %cst_208 = arith.constant 0.000000e+00 : f32
    %899 = vector.broadcast %cst_208 : f32 to vector<8x128xf32>
    %900 = arith.addf %899, %898 : vector<8x128xf32>
    %901 = arith.mulf %615, %870 : vector<8x128xf32>
    %902 = arith.addf %900, %901 : vector<8x128xf32>
    %903 = arith.mulf %618, %880 : vector<8x128xf32>
    %904 = arith.addf %902, %903 : vector<8x128xf32>
    %905 = arith.mulf %612, %860 : vector<8x128xf32>
    %cst_209 = arith.constant 0.000000e+00 : f32
    %906 = vector.broadcast %cst_209 : f32 to vector<8x128xf32>
    %907 = arith.addf %906, %905 : vector<8x128xf32>
    %908 = arith.mulf %615, %880 : vector<8x128xf32>
    %909 = arith.addf %907, %908 : vector<8x128xf32>
    %910 = arith.mulf %618, %890 : vector<8x128xf32>
    %911 = arith.addf %909, %910 : vector<8x128xf32>
    %912 = arith.mulf %621, %840 : vector<8x128xf32>
    %cst_210 = arith.constant 0.000000e+00 : f32
    %913 = vector.broadcast %cst_210 : f32 to vector<8x128xf32>
    %914 = arith.addf %913, %912 : vector<8x128xf32>
    %915 = arith.mulf %624, %850 : vector<8x128xf32>
    %916 = arith.addf %914, %915 : vector<8x128xf32>
    %917 = arith.mulf %627, %860 : vector<8x128xf32>
    %918 = arith.addf %916, %917 : vector<8x128xf32>
    %919 = arith.mulf %621, %850 : vector<8x128xf32>
    %cst_211 = arith.constant 0.000000e+00 : f32
    %920 = vector.broadcast %cst_211 : f32 to vector<8x128xf32>
    %921 = arith.addf %920, %919 : vector<8x128xf32>
    %922 = arith.mulf %624, %870 : vector<8x128xf32>
    %923 = arith.addf %921, %922 : vector<8x128xf32>
    %924 = arith.mulf %627, %880 : vector<8x128xf32>
    %925 = arith.addf %923, %924 : vector<8x128xf32>
    %926 = arith.mulf %621, %860 : vector<8x128xf32>
    %cst_212 = arith.constant 0.000000e+00 : f32
    %927 = vector.broadcast %cst_212 : f32 to vector<8x128xf32>
    %928 = arith.addf %927, %926 : vector<8x128xf32>
    %929 = arith.mulf %624, %880 : vector<8x128xf32>
    %930 = arith.addf %928, %929 : vector<8x128xf32>
    %931 = arith.mulf %627, %890 : vector<8x128xf32>
    %932 = arith.addf %930, %931 : vector<8x128xf32>
    %933 = arith.mulf %630, %840 : vector<8x128xf32>
    %cst_213 = arith.constant 0.000000e+00 : f32
    %934 = vector.broadcast %cst_213 : f32 to vector<8x128xf32>
    %935 = arith.addf %934, %933 : vector<8x128xf32>
    %936 = arith.mulf %633, %850 : vector<8x128xf32>
    %937 = arith.addf %935, %936 : vector<8x128xf32>
    %938 = arith.mulf %636, %860 : vector<8x128xf32>
    %939 = arith.addf %937, %938 : vector<8x128xf32>
    %940 = arith.mulf %630, %850 : vector<8x128xf32>
    %cst_214 = arith.constant 0.000000e+00 : f32
    %941 = vector.broadcast %cst_214 : f32 to vector<8x128xf32>
    %942 = arith.addf %941, %940 : vector<8x128xf32>
    %943 = arith.mulf %633, %870 : vector<8x128xf32>
    %944 = arith.addf %942, %943 : vector<8x128xf32>
    %945 = arith.mulf %636, %880 : vector<8x128xf32>
    %946 = arith.addf %944, %945 : vector<8x128xf32>
    %947 = arith.mulf %630, %860 : vector<8x128xf32>
    %cst_215 = arith.constant 0.000000e+00 : f32
    %948 = vector.broadcast %cst_215 : f32 to vector<8x128xf32>
    %949 = arith.addf %948, %947 : vector<8x128xf32>
    %950 = arith.mulf %633, %880 : vector<8x128xf32>
    %951 = arith.addf %949, %950 : vector<8x128xf32>
    %952 = arith.mulf %636, %890 : vector<8x128xf32>
    %953 = arith.addf %951, %952 : vector<8x128xf32>
    %954 = arith.mulf %897, %612 : vector<8x128xf32>
    %cst_216 = arith.constant 0.000000e+00 : f32
    %955 = vector.broadcast %cst_216 : f32 to vector<8x128xf32>
    %956 = arith.addf %955, %954 : vector<8x128xf32>
    %957 = arith.mulf %904, %615 : vector<8x128xf32>
    %958 = arith.addf %956, %957 : vector<8x128xf32>
    %959 = arith.mulf %911, %618 : vector<8x128xf32>
    %960 = arith.addf %958, %959 : vector<8x128xf32>
    %c0_217 = arith.constant 0 : index
    %c0_218 = arith.constant 0 : index
    %961 = arith.index_cast %517 : i32 to index
    %962 = vector.load %arg7[%c0_217, %c0_218, %961] : memref<9x8x256xf32, #tpu.memory_space<vmem>>, vector<1x8x128xf32>
    %963 = vector.shape_cast %962 : vector<1x8x128xf32> to vector<8x128xf32>
    %964 = vector.shape_cast %960 : vector<8x128xf32> to vector<1x8x128xf32>
    tpu.vector_store %arg7[%c0_217, %c0_218, %961], %964 {strides = array<i32>} : memref<9x8x256xf32, #tpu.memory_space<vmem>>, vector<1x8x128xf32>,
    %965 = arith.mulf %897, %621 : vector<8x128xf32>
    %cst_219 = arith.constant 0.000000e+00 : f32
    %966 = vector.broadcast %cst_219 : f32 to vector<8x128xf32>
    %967 = arith.addf %966, %965 : vector<8x128xf32>
    %968 = arith.mulf %904, %624 : vector<8x128xf32>
    %969 = arith.addf %967, %968 : vector<8x128xf32>
    %970 = arith.mulf %911, %627 : vector<8x128xf32>
    %971 = arith.addf %969, %970 : vector<8x128xf32>
    %c1_220 = arith.constant 1 : index
    %c0_221 = arith.constant 0 : index
    %972 = arith.index_cast %517 : i32 to index
    %973 = vector.load %arg7[%c1_220, %c0_221, %972] : memref<9x8x256xf32, #tpu.memory_space<vmem>>, vector<1x8x128xf32>
    %974 = vector.shape_cast %973 : vector<1x8x128xf32> to vector<8x128xf32>
    %975 = vector.shape_cast %971 : vector<8x128xf32> to vector<1x8x128xf32>
    tpu.vector_store %arg7[%c1_220, %c0_221, %972], %975 {strides = array<i32>} : memref<9x8x256xf32, #tpu.memory_space<vmem>>, vector<1x8x128xf32>,
    %c3_222 = arith.constant 3 : index
    %c0_223 = arith.constant 0 : index
    %976 = arith.index_cast %517 : i32 to index
    %977 = vector.load %arg7[%c3_222, %c0_223, %976] : memref<9x8x256xf32, #tpu.memory_space<vmem>>, vector<1x8x128xf32>
    %978 = vector.shape_cast %977 : vector<1x8x128xf32> to vector<8x128xf32>
    %979 = vector.shape_cast %971 : vector<8x128xf32> to vector<1x8x128xf32>
    tpu.vector_store %arg7[%c3_222, %c0_223, %976], %979 {strides = array<i32>} : memref<9x8x256xf32, #tpu.memory_space<vmem>>, vector<1x8x128xf32>,
    %980 = arith.mulf %897, %630 : vector<8x128xf32>
    %cst_224 = arith.constant 0.000000e+00 : f32
    %981 = vector.broadcast %cst_224 : f32 to vector<8x128xf32>
    %982 = arith.addf %981, %980 : vector<8x128xf32>
    %983 = arith.mulf %904, %633 : vector<8x128xf32>
    %984 = arith.addf %982, %983 : vector<8x128xf32>
    %985 = arith.mulf %911, %636 : vector<8x128xf32>
    %986 = arith.addf %984, %985 : vector<8x128xf32>
    %c2_225 = arith.constant 2 : index
    %c0_226 = arith.constant 0 : index
    %987 = arith.index_cast %517 : i32 to index
    %988 = vector.load %arg7[%c2_225, %c0_226, %987] : memref<9x8x256xf32, #tpu.memory_space<vmem>>, vector<1x8x128xf32>
    %989 = vector.shape_cast %988 : vector<1x8x128xf32> to vector<8x128xf32>
    %990 = vector.shape_cast %986 : vector<8x128xf32> to vector<1x8x128xf32>
    tpu.vector_store %arg7[%c2_225, %c0_226, %987], %990 {strides = array<i32>} : memref<9x8x256xf32, #tpu.memory_space<vmem>>, vector<1x8x128xf32>,
    %c6_227 = arith.constant 6 : index
    %c0_228 = arith.constant 0 : index
    %991 = arith.index_cast %517 : i32 to index
    %992 = vector.load %arg7[%c6_227, %c0_228, %991] : memref<9x8x256xf32, #tpu.memory_space<vmem>>, vector<1x8x128xf32>
    %993 = vector.shape_cast %992 : vector<1x8x128xf32> to vector<8x128xf32>
    %994 = vector.shape_cast %986 : vector<8x128xf32> to vector<1x8x128xf32>
    tpu.vector_store %arg7[%c6_227, %c0_228, %991], %994 {strides = array<i32>} : memref<9x8x256xf32, #tpu.memory_space<vmem>>, vector<1x8x128xf32>,
    %995 = arith.mulf %918, %621 : vector<8x128xf32>
    %cst_229 = arith.constant 0.000000e+00 : f32
    %996 = vector.broadcast %cst_229 : f32 to vector<8x128xf32>
    %997 = arith.addf %996, %995 : vector<8x128xf32>
    %998 = arith.mulf %925, %624 : vector<8x128xf32>
    %999 = arith.addf %997, %998 : vector<8x128xf32>
    %1000 = arith.mulf %932, %627 : vector<8x128xf32>
    %1001 = arith.addf %999, %1000 : vector<8x128xf32>
    %c4_230 = arith.constant 4 : index
    %c0_231 = arith.constant 0 : index
    %1002 = arith.index_cast %517 : i32 to index
    %1003 = vector.load %arg7[%c4_230, %c0_231, %1002] : memref<9x8x256xf32, #tpu.memory_space<vmem>>, vector<1x8x128xf32>
    %1004 = vector.shape_cast %1003 : vector<1x8x128xf32> to vector<8x128xf32>
    %1005 = vector.shape_cast %1001 : vector<8x128xf32> to vector<1x8x128xf32>
    tpu.vector_store %arg7[%c4_230, %c0_231, %1002], %1005 {strides = array<i32>} : memref<9x8x256xf32, #tpu.memory_space<vmem>>, vector<1x8x128xf32>,
    %1006 = arith.mulf %918, %630 : vector<8x128xf32>
    %cst_232 = arith.constant 0.000000e+00 : f32
    %1007 = vector.broadcast %cst_232 : f32 to vector<8x128xf32>
    %1008 = arith.addf %1007, %1006 : vector<8x128xf32>
    %1009 = arith.mulf %925, %633 : vector<8x128xf32>
    %1010 = arith.addf %1008, %1009 : vector<8x128xf32>
    %1011 = arith.mulf %932, %636 : vector<8x128xf32>
    %1012 = arith.addf %1010, %1011 : vector<8x128xf32>
    %c5_233 = arith.constant 5 : index
    %c0_234 = arith.constant 0 : index
    %1013 = arith.index_cast %517 : i32 to index
    %1014 = vector.load %arg7[%c5_233, %c0_234, %1013] : memref<9x8x256xf32, #tpu.memory_space<vmem>>, vector<1x8x128xf32>
    %1015 = vector.shape_cast %1014 : vector<1x8x128xf32> to vector<8x128xf32>
    %1016 = vector.shape_cast %1012 : vector<8x128xf32> to vector<1x8x128xf32>
    tpu.vector_store %arg7[%c5_233, %c0_234, %1013], %1016 {strides = array<i32>} : memref<9x8x256xf32, #tpu.memory_space<vmem>>, vector<1x8x128xf32>,
    %c7_235 = arith.constant 7 : index
    %c0_236 = arith.constant 0 : index
    %1017 = arith.index_cast %517 : i32 to index
    %1018 = vector.load %arg7[%c7_235, %c0_236, %1017] : memref<9x8x256xf32, #tpu.memory_space<vmem>>, vector<1x8x128xf32>
    %1019 = vector.shape_cast %1018 : vector<1x8x128xf32> to vector<8x128xf32>
    %1020 = vector.shape_cast %1012 : vector<8x128xf32> to vector<1x8x128xf32>
    tpu.vector_store %arg7[%c7_235, %c0_236, %1017], %1020 {strides = array<i32>} : memref<9x8x256xf32, #tpu.memory_space<vmem>>, vector<1x8x128xf32>,
    %1021 = arith.mulf %939, %630 : vector<8x128xf32>
    %cst_237 = arith.constant 0.000000e+00 : f32
    %1022 = vector.broadcast %cst_237 : f32 to vector<8x128xf32>
    %1023 = arith.addf %1022, %1021 : vector<8x128xf32>
    %1024 = arith.mulf %946, %633 : vector<8x128xf32>
    %1025 = arith.addf %1023, %1024 : vector<8x128xf32>
    %1026 = arith.mulf %953, %636 : vector<8x128xf32>
    %1027 = arith.addf %1025, %1026 : vector<8x128xf32>
    %c8_238 = arith.constant 8 : index
    %c0_239 = arith.constant 0 : index
    %1028 = arith.index_cast %517 : i32 to index
    %1029 = vector.load %arg7[%c8_238, %c0_239, %1028] : memref<9x8x256xf32, #tpu.memory_space<vmem>>, vector<1x8x128xf32>
    %1030 = vector.shape_cast %1029 : vector<1x8x128xf32> to vector<8x128xf32>
    %1031 = vector.shape_cast %1027 : vector<8x128xf32> to vector<1x8x128xf32>
    tpu.vector_store %arg7[%c8_238, %c0_239, %1028], %1031 {strides = array<i32>} : memref<9x8x256xf32, #tpu.memory_space<vmem>>, vector<1x8x128xf32>,
    %c2_i32 = arith.constant 2 : i32
    return
  }
  func.func @transform_0(%arg0: i32) -> (i32, i32, i32) {
    %c0_i32 = arith.constant 0 : i32
    %c0_i32_0 = arith.constant 0 : i32
    %c0_i32_1 = arith.constant 0 : i32
    return %c0_i32, %c0_i32_0, %arg0 : i32, i32, i32
  }
  func.func @transform_1(%arg0: i32) -> (i32, i32, i32) {
    %c0_i32 = arith.constant 0 : i32
    %c0_i32_0 = arith.constant 0 : i32
    %c0_i32_1 = arith.constant 0 : i32
    return %c0_i32, %c0_i32_0, %arg0 : i32, i32, i32
  }
  func.func @transform_2(%arg0: i32) -> (i32, i32, i32) {
    %c0_i32 = arith.constant 0 : i32
    %c0_i32_0 = arith.constant 0 : i32
    %c0_i32_1 = arith.constant 0 : i32
    return %c0_i32, %c0_i32_0, %arg0 : i32, i32, i32
  }
  func.func @transform_3(%arg0: i32) -> (i32, i32, i32) {
    %c0_i32 = arith.constant 0 : i32
    %c0_i32_0 = arith.constant 0 : i32
    %c0_i32_1 = arith.constant 0 : i32
    return %c0_i32, %c0_i32_0, %arg0 : i32, i32, i32
  }
  func.func @transform_4(%arg0: i32) -> (i32, i32, i32) {
    %c0_i32 = arith.constant 0 : i32
    %c0_i32_0 = arith.constant 0 : i32
    %c0_i32_1 = arith.constant 0 : i32
    return %c0_i32, %c0_i32_0, %arg0 : i32, i32, i32
  }
  func.func @transform_5(%arg0: i32) -> (i32, i32, i32) {
    %c0_i32 = arith.constant 0 : i32
    %c0_i32_0 = arith.constant 0 : i32
    %c0_i32_1 = arith.constant 0 : i32
    return %c0_i32, %c0_i32_0, %arg0 : i32, i32, i32
  }
  func.func @transform_6(%arg0: i32) -> (i32, i32, i32) {
    %c0_i32 = arith.constant 0 : i32
    %c0_i32_0 = arith.constant 0 : i32
    %c0_i32_1 = arith.constant 0 : i32
    return %c0_i32, %c0_i32_0, %arg0 : i32, i32, i32
  }
  func.func @transform_7(%arg0: i32) -> (i32, i32, i32) {
    %c0_i32 = arith.constant 0 : i32
    %c0_i32_0 = arith.constant 0 : i32
    %c0_i32_1 = arith.constant 0 : i32
    return %c0_i32, %c0_i32_0, %arg0 : i32, i32, i32
  }
  func.func @transform_8(%arg0: i32) -> (i32, i32, i32) {
    %c0_i32 = arith.constant 0 : i32
    %c0_i32_0 = arith.constant 0 : i32
    %c0_i32_1 = arith.constant 0 : i32
    return %c0_i32, %c0_i32_0, %arg0 : i32, i32, i32
  }
  func.func @transform_9(%arg0: i32) -> (i32, i32, i32) {
    %c0_i32 = arith.constant 0 : i32
    %c0_i32_0 = arith.constant 0 : i32
    %c0_i32_1 = arith.constant 0 : i32
    return %c0_i32, %c0_i32_0, %arg0 : i32, i32, i32
  }
  func.func @transform_10(%arg0: i32) -> (i32, i32, i32) {
    %c0_i32 = arith.constant 0 : i32
    %c0_i32_0 = arith.constant 0 : i32
    %c0_i32_1 = arith.constant 0 : i32
    return %c0_i32, %c0_i32_0, %arg0 : i32, i32, i32
  }
}

</mosaic_0001>

<llo_original>
// kernel: tpu_custom_call.1
$region0: #{tpu_custom_call.1}
  #allocation0 [shape = 'u32[]', space=smem, size = 0x4, offset = 0x4, fixed_abs, tag = 'smem constant byte address 0x4 - core index']
  #allocation1 [shape = 'u32[144,128]{1,0:T(1,128)}', space=vmem, size = 0x12000, scoped, tag = 'internal scratch']
  %s0 = inlined_call_operand.hbm [shape: f32[16,8,512], index: 0, kind: input, shape index: {}]
  %s1 = inlined_call_operand.hbm [shape: f32[9,8,512], index: 1, kind: input, shape index: {}]
  %s2 = inlined_call_operand.hbm [shape: f32[2,8,512], index: 2, kind: input, shape index: {}]
  %s3 = inlined_call_operand.hbm [shape: f32[1,8,512], index: 3, kind: input, shape index: {}]
  %s4 = inlined_call_operand.hbm [shape: f32[14,8,512], index: 4, kind: input, shape index: {}]
  %s5 = inlined_call_operand.hbm [shape: f32[3,8,512], index: 5, kind: output, shape index: {0}]
  %s6 = inlined_call_operand.hbm [shape: f32[9,8,512], index: 6, kind: output, shape index: {1}]
  %s7 = inlined_call_operand.hbm [shape: f32[3,8,512], index: 7, kind: output, shape index: {2}]
  %s8 = inlined_call_operand.hbm [shape: f32[4,8,512], index: 8, kind: output, shape index: {3}]
  %s9 = inlined_call_operand.hbm [shape: f32[3,8,512], index: 9, kind: output, shape index: {4}]
  %s10 = inlined_call_operand.hbm [shape: f32[4,8,512], index: 10, kind: output, shape index: {5}]
  %11 = xla_tuple %s5, %s6, %s7, %s8, %s9, %s10
  %s12 = sld [smem:[#allocation0]]
  $region113: #{tpu_custom_call.1} parent=0
    _
  %s14 = ssub.s32 1, %s12
  %s15 = scalar_select 0, %s14, %s12
  $region1: #{tpu_custom_call.1} parent=0
    #allocation2 [shape = 'u8[262144]{0}', space=vmem, size = 0x40000, scoped, tag = 'input window, operand 0']
    #allocation3 [shape = 's32[2]{0}', space=sflag, size = 0x8, scoped, tag = 'scoped memory for tpu_custom_call.1']
    #allocation4 [shape = 's32[2]{0}', space=sflag, size = 0x8, scoped, tag = 'scoped memory for tpu_custom_call.1']
    #allocation5 [shape = 'u8[147456]{0}', space=vmem, size = 0x24000, scoped, tag = 'input window, operand 1']
    #allocation6 [shape = 's32[2]{0}', space=sflag, size = 0x8, scoped, tag = 'scoped memory for tpu_custom_call.1']
    #allocation7 [shape = 'u8[32768]{0}', space=vmem, size = 0x8000, scoped, tag = 'input window, operand 2']
    #allocation8 [shape = 'u8[16384]{0}', space=vmem, size = 0x4000, scoped, tag = 'input window, operand 3']
    #allocation9 [shape = 's32[2]{0}', space=sflag, size = 0x8, scoped, tag = 'scoped memory for tpu_custom_call.1']
    #allocation10 [shape = 'u8[229376]{0}', space=vmem, size = 0x38000, scoped, tag = 'input window, operand 4']
    #allocation11 [shape = 'u8[49152]{0}', space=vmem, size = 0xc000, scoped, tag = 'output window, operand 0']
    #allocation12 [shape = 'u8[147456]{0}', space=vmem, size = 0x24000, scoped, tag = 'output window, operand 1']
    #allocation13 [shape = 's32[2]{0}', space=sflag, size = 0x8, scoped, tag = 'scoped memory for tpu_custom_call.1']
    #allocation14 [shape = 'u8[49152]{0}', space=vmem, size = 0xc000, scoped, tag = 'output window, operand 2']
    #allocation15 [shape = 'u8[65536]{0}', space=vmem, size = 0x10000, scoped, tag = 'output window, operand 3']
    #allocation16 [shape = 's32[2]{0}', space=sflag, size = 0x8, scoped, tag = 'scoped memory for tpu_custom_call.1']
    #allocation17 [shape = 'u8[49152]{0}', space=vmem, size = 0xc000, scoped, tag = 'output window, operand 4']
    #allocation18 [shape = 'u8[65536]{0}', space=vmem, size = 0x10000, scoped, tag = 'output window, operand 5']
    #allocation19 [shape = 's32[2]{0}', space=sflag, size = 0x8, scoped, tag = 'scoped memory for tpu_custom_call.1']
    %16 = vsyncpa [#allocation3], 0
    %s17 = scalar_lea.sflag [#allocation3], 1
    %18 = vsyncpa %s17, 0
    %19 = vsyncpa [#allocation6], 0
    %s20 = scalar_lea.sflag [#allocation6], 1
    %21 = vsyncpa %s20, 0
    %22 = vsyncpa [#allocation9], 0
    %s23 = scalar_lea.sflag [#allocation9], 1
    %24 = vsyncpa %s23, 0
    %25 = vsyncpa [#allocation4], 0
    %s26 = scalar_lea.sflag [#allocation4], 1
    %27 = vsyncpa %s26, 0
    %28 = vsyncpa [#allocation13], 0
    %s29 = scalar_lea.sflag [#allocation13], 1
    %30 = vsyncpa %s29, 0
    %31 = vsyncpa [#allocation16], 0
    %s32 = scalar_lea.sflag [#allocation16], 1
    %33 = vsyncpa %s32, 0
    %34 = vsyncpa [#allocation19], 0
    %s35 = scalar_lea.sflag [#allocation19], 1
    %36 = vsyncpa %s35, 0
    loop: start=0, step=1, limit=4
    $region2: #{tpu_custom_call.1} parent=1 // loop_pre_header
      _
    $region3: #{tpu_custom_call.1} parent=1 // loop_header
      %s38 = sphi 0, %s42
      %p39 = scmp.ge.s32.totalorder %s38, 4
      %s48 = sphi 0, %s50
      %s51 = sphi 0, %s48
      %s52 = sphi 0, %s51
      %s68 = sphi 0, %s52
      %s74 = sphi 0, %s76
      %s77 = sphi 0, %s74
      %s78 = sphi 0, %s77
      %s94 = sphi 0, %s78
      %s100 = sphi 0, %s102
      %s103 = sphi 0, %s100
      %s104 = sphi 0, %s103
      %s120 = sphi 0, %s104
      %s126 = sphi 0, %s128
      %s129 = sphi 0, %s126
      %s130 = sphi 0, %s129
      %s146 = sphi 0, %s130
      %s152 = sphi 0, %s154
      %s155 = sphi 0, %s152
      %s156 = sphi 0, %s155
      %s172 = sphi 0, %s156
      %s178 = sphi 0, %s180
      %s181 = sphi 0, %s178
      %s182 = sphi 0, %s181
      %s198 = sphi 0, %s182
      %s204 = sphi 0, %s206
      %s207 = sphi 0, %s204
      %s208 = sphi 0, %s207
      %s224 = sphi 0, %s208
      %s230 = sphi 0, %s232
      %s233 = sphi 0, %s230
      %s234 = sphi 0, %s233
      %s250 = sphi 0, %s234
      %s256 = sphi 0, %s258
      %s259 = sphi 0, %s256
      %s260 = sphi 0, %s259
      %s276 = sphi 0, %s260
      %s282 = sphi 0, %s284
      %s285 = sphi 0, %s282
      %s286 = sphi 0, %s285
      %s302 = sphi 0, %s286
      %s308 = sphi 0, %s310
      %s311 = sphi 0, %s308
      %s312 = sphi 0, %s311
      %s328 = sphi 0, %s312
    $region4: #{tpu_custom_call.1} parent=1 // loop_header_branch
      %41 = sbr.rel (%p39) target = $region8
    $region5: #{tpu_custom_call.1} parent=1 // loop_body
      %s43 = ssub.s32 %s38, 1
      %s44 = ssub.s32 %s38, 2
      %s45 = sadd.s32 %s38, 1
      %s46 = ssub.s32 %s38, %s45
      %p47 = scmp.eq.s32.totalorder %s46, 0
      %s49 = sadd.s32 %s48, 1
      %s50 = scalar_select %p47, %s48, %s49
      %p53 = pneg %p47
      %p54 = scmp.eq.s32.totalorder %s38, 1
      %p55 = por %p53, %p54
      %p56 = scmp.ne.s32.totalorder %s48, %s51
      %p57 = scmp.eq.s32.totalorder %s38, 0
      %p58 = por %p56, %p57
      %p59 = scmp.ne.s32.totalorder %s48, %s51
      %p60 = scmp.eq.s32.totalorder %s43, 1
      %p61 = por %p59, %p60
      %p62 = scmp.ne.s32.totalorder %s51, %s52
      %p63 = scmp.eq.s32.totalorder %s43, 0
      %p64 = por %p62, %p63
      %p65 = scmp.ne.s32.totalorder %s51, %s52
      %p66 = scmp.eq.s32.totalorder %s44, 1
      %p67 = por %p65, %p66
      %p69 = scmp.ne.s32.totalorder %s52, %s68
      %p70 = scmp.eq.s32.totalorder %s44, 0
      %p71 = por %p69, %p70
      %s72 = ssub.s32 %s38, %s45
      %p73 = scmp.eq.s32.totalorder %s72, 0
      %s75 = sadd.s32 %s74, 1
      %s76 = scalar_select %p73, %s74, %s75
      %p79 = pneg %p73
      %p80 = scmp.eq.s32.totalorder %s38, 1
      %p81 = por %p79, %p80
      %p82 = scmp.ne.s32.totalorder %s74, %s77
      %p83 = scmp.eq.s32.totalorder %s38, 0
      %p84 = por %p82, %p83
      %p85 = scmp.ne.s32.totalorder %s74, %s77
      %p86 = scmp.eq.s32.totalorder %s43, 1
      %p87 = por %p85, %p86
      %p88 = scmp.ne.s32.totalorder %s77, %s78
      %p89 = scmp.eq.s32.totalorder %s43, 0
      %p90 = por %p88, %p89
      %p91 = scmp.ne.s32.totalorder %s77, %s78
      %p92 = scmp.eq.s32.totalorder %s44, 1
      %p93 = por %p91, %p92
      %p95 = scmp.ne.s32.totalorder %s78, %s94
      %p96 = scmp.eq.s32.totalorder %s44, 0
      %p97 = por %p95, %p96
      %s98 = ssub.s32 %s38, %s45
      %p99 = scmp.eq.s32.totalorder %s98, 0
      %s101 = sadd.s32 %s100, 1
      %s102 = scalar_select %p99, %s100, %s101
      %p105 = pneg %p99
      %p106 = scmp.eq.s32.totalorder %s38, 1
      %p107 = por %p105, %p106
      %p108 = scmp.ne.s32.totalorder %s100, %s103
      %p109 = scmp.eq.s32.totalorder %s38, 0
      %p110 = por %p108, %p109
      %p111 = scmp.ne.s32.totalorder %s100, %s103
      %p112 = scmp.eq.s32.totalorder %s43, 1
      %p113 = por %p111, %p112
      %p114 = scmp.ne.s32.totalorder %s103, %s104
      %p115 = scmp.eq.s32.totalorder %s43, 0
      %p116 = por %p114, %p115
      %p117 = scmp.ne.s32.totalorder %s103, %s104
      %p118 = scmp.eq.s32.totalorder %s44, 1
      %p119 = por %p117, %p118
      %p121 = scmp.ne.s32.totalorder %s104, %s120
      %p122 = scmp.eq.s32.totalorder %s44, 0
      %p123 = por %p121, %p122
      %s124 = ssub.s32 %s38, %s45
      %p125 = scmp.eq.s32.totalorder %s124, 0
      %s127 = sadd.s32 %s126, 1
      %s128 = scalar_select %p125, %s126, %s127
      %p131 = pneg %p125
      %p132 = scmp.eq.s32.totalorder %s38, 1
      %p133 = por %p131, %p132
      %p134 = scmp.ne.s32.totalorder %s126, %s129
      %p135 = scmp.eq.s32.totalorder %s38, 0
      %p136 = por %p134, %p135
      %p137 = scmp.ne.s32.totalorder %s126, %s129
      %p138 = scmp.eq.s32.totalorder %s43, 1
      %p139 = por %p137, %p138
      %p140 = scmp.ne.s32.totalorder %s129, %s130
      %p141 = scmp.eq.s32.totalorder %s43, 0
      %p142 = por %p140, %p141
      %p143 = scmp.ne.s32.totalorder %s129, %s130
      %p144 = scmp.eq.s32.totalorder %s44, 1
      %p145 = por %p143, %p144
      %p147 = scmp.ne.s32.totalorder %s130, %s146
      %p148 = scmp.eq.s32.totalorder %s44, 0
      %p149 = por %p147, %p148
      %s150 = ssub.s32 %s38, %s45
      %p151 = scmp.eq.s32.totalorder %s150, 0
      %s153 = sadd.s32 %s152, 1
      %s154 = scalar_select %p151, %s152, %s153
      %p157 = pneg %p151
      %p158 = scmp.eq.s32.totalorder %s38, 1
      %p159 = por %p157, %p158
      %p160 = scmp.ne.s32.totalorder %s152, %s155
      %p161 = scmp.eq.s32.totalorder %s38, 0
      %p162 = por %p160, %p161
      %p163 = scmp.ne.s32.totalorder %s152, %s155
      %p164 = scmp.eq.s32.totalorder %s43, 1
      %p165 = por %p163, %p164
      %p166 = scmp.ne.s32.totalorder %s155, %s156
      %p167 = scmp.eq.s32.totalorder %s43, 0
      %p168 = por %p166, %p167
      %p169 = scmp.ne.s32.totalorder %s155, %s156
      %p170 = scmp.eq.s32.totalorder %s44, 1
      %p171 = por %p169, %p170
      %p173 = scmp.ne.s32.totalorder %s156, %s172
      %p174 = scmp.eq.s32.totalorder %s44, 0
      %p175 = por %p173, %p174
      %s176 = ssub.s32 %s38, %s45
      %p177 = scmp.eq.s32.totalorder %s176, 0
      %s179 = sadd.s32 %s178, 1
      %s180 = scalar_select %p177, %s178, %s179
      %p183 = pneg %p177
      %p184 = scmp.eq.s32.totalorder %s38, 1
      %p185 = por %p183, %p184
      %p186 = scmp.ne.s32.totalorder %s178, %s181
      %p187 = scmp.eq.s32.totalorder %s38, 0
      %p188 = por %p186, %p187
      %p189 = scmp.ne.s32.totalorder %s178, %s181
      %p190 = scmp.eq.s32.totalorder %s43, 1
      %p191 = por %p189, %p190
      %p192 = scmp.ne.s32.totalorder %s181, %s182
      %p193 = scmp.eq.s32.totalorder %s43, 0
      %p194 = por %p192, %p193
      %p195 = scmp.ne.s32.totalorder %s181, %s182
      %p196 = scmp.eq.s32.totalorder %s44, 1
      %p197 = por %p195, %p196
      %p199 = scmp.ne.s32.totalorder %s182, %s198
      %p200 = scmp.eq.s32.totalorder %s44, 0
      %p201 = por %p199, %p200
      %s202 = ssub.s32 %s38, %s45
      %p203 = scmp.eq.s32.totalorder %s202, 0
      %s205 = sadd.s32 %s204, 1
      %s206 = scalar_select %p203, %s204, %s205
      %p209 = pneg %p203
      %p210 = scmp.eq.s32.totalorder %s38, 1
      %p211 = por %p209, %p210
      %p212 = scmp.ne.s32.totalorder %s204, %s207
      %p213 = scmp.eq.s32.totalorder %s38, 0
      %p214 = por %p212, %p213
      %p215 = scmp.ne.s32.totalorder %s204, %s207
      %p216 = scmp.eq.s32.totalorder %s43, 1
      %p217 = por %p215, %p216
      %p218 = scmp.ne.s32.totalorder %s207, %s208
      %p219 = scmp.eq.s32.totalorder %s43, 0
      %p220 = por %p218, %p219
      %p221 = scmp.ne.s32.totalorder %s207, %s208
      %p222 = scmp.eq.s32.totalorder %s44, 1
      %p223 = por %p221, %p222
      %p225 = scmp.ne.s32.totalorder %s208, %s224
      %p226 = scmp.eq.s32.totalorder %s44, 0
      %p227 = por %p225, %p226
      %s228 = ssub.s32 %s38, %s45
      %p229 = scmp.eq.s32.totalorder %s228, 0
      %s231 = sadd.s32 %s230, 1
      %s232 = scalar_select %p229, %s230, %s231
      %p235 = pneg %p229
      %p236 = scmp.eq.s32.totalorder %s38, 1
      %p237 = por %p235, %p236
      %p238 = scmp.ne.s32.totalorder %s230, %s233
      %p239 = scmp.eq.s32.totalorder %s38, 0
      %p240 = por %p238, %p239
      %p241 = scmp.ne.s32.totalorder %s230, %s233
      %p242 = scmp.eq.s32.totalorder %s43, 1
      %p243 = por %p241, %p242
      %p244 = scmp.ne.s32.totalorder %s233, %s234
      %p245 = scmp.eq.s32.totalorder %s43, 0
      %p246 = por %p244, %p245
      %p247 = scmp.ne.s32.totalorder %s233, %s234
      %p248 = scmp.eq.s32.totalorder %s44, 1
      %p249 = por %p247, %p248
      %p251 = scmp.ne.s32.totalorder %s234, %s250
      %p252 = scmp.eq.s32.totalorder %s44, 0
      %p253 = por %p251, %p252
      %s254 = ssub.s32 %s38, %s45
      %p255 = scmp.eq.s32.totalorder %s254, 0
      %s257 = sadd.s32 %s256, 1
      %s258 = scalar_select %p255, %s256, %s257
      %p261 = pneg %p255
      %p262 = scmp.eq.s32.totalorder %s38, 1
      %p263 = por %p261, %p262
      %p264 = scmp.ne.s32.totalorder %s256, %s259
      %p265 = scmp.eq.s32.totalorder %s38, 0
      %p266 = por %p264, %p265
      %p267 = scmp.ne.s32.totalorder %s256, %s259
      %p268 = scmp.eq.s32.totalorder %s43, 1
      %p269 = por %p267, %p268
      %p270 = scmp.ne.s32.totalorder %s259, %s260
      %p271 = scmp.eq.s32.totalorder %s43, 0
      %p272 = por %p270, %p271
      %p273 = scmp.ne.s32.totalorder %s259, %s260
      %p274 = scmp.eq.s32.totalorder %s44, 1
      %p275 = por %p273, %p274
      %p277 = scmp.ne.s32.totalorder %s260, %s276
      %p278 = scmp.eq.s32.totalorder %s44, 0
      %p279 = por %p277, %p278
      %s280 = ssub.s32 %s38, %s45
      %p281 = scmp.eq.s32.totalorder %s280, 0
      %s283 = sadd.s32 %s282, 1
      %s284 = scalar_select %p281, %s282, %s283
      %p287 = pneg %p281
      %p288 = scmp.eq.s32.totalorder %s38, 1
      %p289 = por %p287, %p288
      %p290 = scmp.ne.s32.totalorder %s282, %s285
      %p291 = scmp.eq.s32.totalorder %s38, 0
      %p292 = por %p290, %p291
      %p293 = scmp.ne.s32.totalorder %s282, %s285
      %p294 = scmp.eq.s32.totalorder %s43, 1
      %p295 = por %p293, %p294
      %p296 = scmp.ne.s32.totalorder %s285, %s286
      %p297 = scmp.eq.s32.totalorder %s43, 0
      %p298 = por %p296, %p297
      %p299 = scmp.ne.s32.totalorder %s285, %s286
      %p300 = scmp.eq.s32.totalorder %s44, 1
      %p301 = por %p299, %p300
      %p303 = scmp.ne.s32.totalorder %s286, %s302
      %p304 = scmp.eq.s32.totalorder %s44, 0
      %p305 = por %p303, %p304
      %s306 = ssub.s32 %s38, %s45
      %p307 = scmp.eq.s32.totalorder %s306, 0
      %s309 = sadd.s32 %s308, 1
      %s310 = scalar_select %p307, %s308, %s309
      %p313 = pneg %p307
      %p314 = scmp.eq.s32.totalorder %s38, 1
      %p315 = por %p313, %p314
      %p316 = scmp.ne.s32.totalorder %s308, %s311
      %p317 = scmp.eq.s32.totalorder %s38, 0
      %p318 = por %p316, %p317
      %p319 = scmp.ne.s32.totalorder %s308, %s311
      %p320 = scmp.eq.s32.totalorder %s43, 1
      %p321 = por %p319, %p320
      %p322 = scmp.ne.s32.totalorder %s311, %s312
      %p323 = scmp.eq.s32.totalorder %s43, 0
      %p324 = por %p322, %p323
      %p325 = scmp.ne.s32.totalorder %s311, %s312
      %p326 = scmp.eq.s32.totalorder %s44, 1
      %p327 = por %p325, %p326
      %p329 = scmp.ne.s32.totalorder %s312, %s328
      %p330 = scmp.eq.s32.totalorder %s44, 0
      %p331 = por %p329, %p330
      %p332 = scmp.le.s32.totalorder 1, %s38
      %p333 = scmp.lt.s32.totalorder %s38, 3
      %p334 = pnand %p332, %p333
      %p335 = pneg %p334
      // Predicated region
      $region9: #{tpu_custom_call.1} parent=5 // pred_check
        _
      $region10: #{tpu_custom_call.1} parent=5 // pred_check_branch
        %337 = sbr.rel (%p334) target = $region12
      $region11: #{tpu_custom_call.1} parent=5 // pred_region
        %s338 = ssub.s32 %s38, 1
      $region12: #{tpu_custom_call.1} parent=5 // pred_fallthru
        _
      %p339 = scmp.lt.s32.totalorder %s38, 2
      // Predicated region
      $region13: #{tpu_custom_call.1} parent=5 // pred_check
        %p340 = pneg %p339
      $region14: #{tpu_custom_call.1} parent=5 // pred_check_branch
        %342 = sbr.rel (%p340) target = $region16
      $region15: #{tpu_custom_call.1} parent=5 // pred_region
        // Predicated region
        $region17: #{tpu_custom_call.1} parent=15 // pred_check
          %p343 = pneg %p58
        $region18: #{tpu_custom_call.1} parent=15 // pred_check_branch
          %345 = sbr.rel (%p343) target = $region20
        $region19: #{tpu_custom_call.1} parent=15 // pred_region
          %s346 = sand.u32 %s48, 1
          %s347 = scalar_lea.sflag [#allocation3], %s346
          %s348 = sand.u32 %s48, 1
          %s349 = smul.addr %s348, 256
          %s350 = scalar_lea.vmem [#allocation2], %s349
          %s351 = smul.u32 2, %s38
          %s353 = ssub.s32 4096, 4096
          %354 = vsyncadd %s347, %s353
          %s355 = smul.addr %s351, 128
          %s356 = scalar_lea.hbm %s0, %s355
          %s357 = sshll.u32 %s350, 4
          %s358 = int_to_ptr.vmem [resolvable:$true] %s357
          %363 = dma.hbm_to_vmem [thread:$0]  %s356, 4096, %s358, %s347, 512, 256, 16
        $region20: #{tpu_custom_call.1} parent=15 // pred_fallthru
          _
        // Predicated region
        $region21: #{tpu_custom_call.1} parent=15 // pred_check
          %p364 = pneg %p84
        $region22: #{tpu_custom_call.1} parent=15 // pred_check_branch
          %366 = sbr.rel (%p364) target = $region24
        $region23: #{tpu_custom_call.1} parent=15 // pred_region
          %s367 = sand.u32 %s38, 1
          %s368 = scalar_lea.sflag [#allocation6], %s367
          %s369 = sand.u32 %s74, 1
          %s370 = smul.addr %s369, 144
          %s371 = scalar_lea.vmem [#allocation5], %s370
          %s372 = smul.u32 2, %s38
          %s374 = ssub.s32 2304, 2304
          %375 = vsyncadd %s368, %s374
          %s376 = smul.addr %s372, 128
          %s377 = scalar_lea.hbm %s1, %s376
          %s378 = sshll.u32 %s371, 4
          %s379 = int_to_ptr.vmem [resolvable:$true] %s378
          %384 = dma.hbm_to_vmem [thread:$0]  %s377, 2304, %s379, %s368, 512, 256, 16
        $region24: #{tpu_custom_call.1} parent=15 // pred_fallthru
          _
        // Predicated region
        $region25: #{tpu_custom_call.1} parent=15 // pred_check
          %p385 = pneg %p110
        $region26: #{tpu_custom_call.1} parent=15 // pred_check_branch
          %387 = sbr.rel (%p385) target = $region28
        $region27: #{tpu_custom_call.1} parent=15 // pred_region
          %s388 = sand.u32 %s38, 1
          %s389 = scalar_lea.sflag [#allocation6], %s388
          %s390 = sand.u32 %s100, 1
          %s391 = smul.addr %s390, 32
          %s392 = scalar_lea.vmem [#allocation7], %s391
          %s393 = smul.u32 2, %s38
          %s395 = ssub.s32 512, 512
          %396 = vsyncadd %s389, %s395
          %s397 = smul.addr %s393, 128
          %s398 = scalar_lea.hbm %s2, %s397
          %s399 = sshll.u32 %s392, 4
          %s400 = int_to_ptr.vmem [resolvable:$true] %s399
          %405 = dma.hbm_to_vmem [thread:$0]  %s398, 512, %s400, %s389, 512, 256, 16
        $region28: #{tpu_custom_call.1} parent=15 // pred_fallthru
          _
        // Predicated region
        $region29: #{tpu_custom_call.1} parent=15 // pred_check
          %p406 = pneg %p136
        $region30: #{tpu_custom_call.1} parent=15 // pred_check_branch
          %408 = sbr.rel (%p406) target = $region32
        $region31: #{tpu_custom_call.1} parent=15 // pred_region
          %s409 = sand.u32 %s38, 1
          %s410 = scalar_lea.sflag [#allocation9], %s409
          %s411 = sand.u32 %s126, 1
          %s412 = smul.addr %s411, 16
          %s413 = scalar_lea.vmem [#allocation8], %s412
          %s414 = smul.u32 2, %s38
          %s416 = ssub.s32 256, 256
          %417 = vsyncadd %s410, %s416
          %s418 = smul.addr %s414, 128
          %s419 = scalar_lea.hbm %s3, %s418
          %s421 = sshll.u32 %s413, 4
          %s422 = int_to_ptr.vmem [resolvable:$true] %s421
          %424 = dma.hbm_to_vmem [thread:$0]  %s419, 256, %s422, %s410
        $region32: #{tpu_custom_call.1} parent=15 // pred_fallthru
          _
        // Predicated region
        $region33: #{tpu_custom_call.1} parent=15 // pred_check
          %p425 = pneg %p162
        $region34: #{tpu_custom_call.1} parent=15 // pred_check_branch
          %427 = sbr.rel (%p425) target = $region36
        $region35: #{tpu_custom_call.1} parent=15 // pred_region
          %s428 = sand.u32 %s38, 1
          %s429 = scalar_lea.sflag [#allocation9], %s428
          %s430 = sand.u32 %s152, 1
          %s431 = smul.addr %s430, 224
          %s432 = scalar_lea.vmem [#allocation10], %s431
          %s433 = smul.u32 2, %s38
          %s435 = ssub.s32 3584, 3584
          %436 = vsyncadd %s429, %s435
          %s437 = smul.addr %s433, 128
          %s438 = scalar_lea.hbm %s4, %s437
          %s439 = sshll.u32 %s432, 4
          %s440 = int_to_ptr.vmem [resolvable:$true] %s439
          %445 = dma.hbm_to_vmem [thread:$0]  %s438, 3584, %s440, %s429, 512, 256, 16
        $region36: #{tpu_custom_call.1} parent=15 // pred_fallthru
          _
      $region16: #{tpu_custom_call.1} parent=5 // pred_fallthru
        _
      %p446 = scmp.le.s32.totalorder 1, %s38
      %p447 = scmp.lt.s32.totalorder %s38, 3
      %p448 = pnand %p446, %p447
      %p449 = pneg %p448
      // Predicated region
      $region37: #{tpu_custom_call.1} parent=5 // pred_check
        _
      $region38: #{tpu_custom_call.1} parent=5 // pred_check_branch
        %451 = sbr.rel (%p448) target = $region40
      $region39: #{tpu_custom_call.1} parent=5 // pred_region
        %s452 = ssub.s32 %s38, 1
        %s453 = sand.u32 %s51, 1
        %s454 = scalar_lea.sflag [#allocation3], %s453
        %s455 = sand.u32 %s51, 1
        %s456 = smul.addr %s455, 256
        %s457 = scalar_lea.vmem [#allocation2], %s456
        // Predicated region
        $region41: #{tpu_custom_call.1} parent=39 // pred_check
          %p458 = pneg %p64
        $region42: #{tpu_custom_call.1} parent=39 // pred_check_branch
          %460 = sbr.rel (%p458) target = $region44
        $region43: #{tpu_custom_call.1} parent=39 // pred_region
          %461 = dma.done %s454, 4096
        $region44: #{tpu_custom_call.1} parent=39 // pred_fallthru
          _
        %s462 = sand.u32 %s43, 1
        %s463 = scalar_lea.sflag [#allocation6], %s462
        %s464 = sand.u32 %s77, 1
        %s465 = smul.addr %s464, 144
        %s466 = scalar_lea.vmem [#allocation5], %s465
        // Predicated region
        $region45: #{tpu_custom_call.1} parent=39 // pred_check
          %p467 = pneg %p90
        $region46: #{tpu_custom_call.1} parent=39 // pred_check_branch
          %469 = sbr.rel (%p467) target = $region48
        $region47: #{tpu_custom_call.1} parent=39 // pred_region
          %470 = dma.done %s463, 2304
        $region48: #{tpu_custom_call.1} parent=39 // pred_fallthru
          _
        %s471 = sand.u32 %s43, 1
        %s472 = scalar_lea.sflag [#allocation6], %s471
        %s473 = sand.u32 %s103, 1
        %s474 = smul.addr %s473, 32
        %s475 = scalar_lea.vmem [#allocation7], %s474
        // Predicated region
        $region49: #{tpu_custom_call.1} parent=39 // pred_check
          %p476 = pneg %p116
        $region50: #{tpu_custom_call.1} parent=39 // pred_check_branch
          %478 = sbr.rel (%p476) target = $region52
        $region51: #{tpu_custom_call.1} parent=39 // pred_region
          %479 = dma.done %s472, 512
        $region52: #{tpu_custom_call.1} parent=39 // pred_fallthru
          _
        %s480 = sand.u32 %s43, 1
        %s481 = scalar_lea.sflag [#allocation9], %s480
        %s482 = sand.u32 %s129, 1
        %s483 = smul.addr %s482, 16
        %s484 = scalar_lea.vmem [#allocation8], %s483
        // Predicated region
        $region53: #{tpu_custom_call.1} parent=39 // pred_check
          %p485 = pneg %p142
        $region54: #{tpu_custom_call.1} parent=39 // pred_check_branch
          %487 = sbr.rel (%p485) target = $region56
        $region55: #{tpu_custom_call.1} parent=39 // pred_region
          %488 = dma.done %s481, 256
        $region56: #{tpu_custom_call.1} parent=39 // pred_fallthru
          _
        %s489 = sand.u32 %s43, 1
        %s490 = scalar_lea.sflag [#allocation9], %s489
        %s491 = sand.u32 %s155, 1
        %s492 = smul.addr %s491, 224
        %s493 = scalar_lea.vmem [#allocation10], %s492
        // Predicated region
        $region57: #{tpu_custom_call.1} parent=39 // pred_check
          %p494 = pneg %p168
        $region58: #{tpu_custom_call.1} parent=39 // pred_check_branch
          %496 = sbr.rel (%p494) target = $region60
        $region59: #{tpu_custom_call.1} parent=39 // pred_region
          %497 = dma.done %s490, 3584
        $region60: #{tpu_custom_call.1} parent=39 // pred_fallthru
          _
        %s498 = sand.u32 %s51, 1
        %s499 = scalar_lea.sflag [#allocation3], %s498
        %s500 = sand.u32 %s51, 1
        %s501 = smul.addr %s500, 256
        %s502 = scalar_lea.vmem [#allocation2], %s501
        %p503 = pneg %p64
        %p504 = pneg %p61
        %s505 = sand.u32 %s43, 1
        %s506 = scalar_lea.sflag [#allocation6], %s505
        %s507 = sand.u32 %s77, 1
        %s508 = smul.addr %s507, 144
        %s509 = scalar_lea.vmem [#allocation5], %s508
        %p510 = pneg %p90
        %p511 = pneg %p87
        %s512 = sand.u32 %s43, 1
        %s513 = scalar_lea.sflag [#allocation6], %s512
        %s514 = sand.u32 %s103, 1
        %s515 = smul.addr %s514, 32
        %s516 = scalar_lea.vmem [#allocation7], %s515
        %p517 = pneg %p116
        %p518 = pneg %p113
        %s519 = sand.u32 %s43, 1
        %s520 = scalar_lea.sflag [#allocation9], %s519
        %s521 = sand.u32 %s129, 1
        %s522 = smul.addr %s521, 16
        %s523 = scalar_lea.vmem [#allocation8], %s522
        %p524 = pneg %p142
        %p525 = pneg %p139
        %s526 = sand.u32 %s43, 1
        %s527 = scalar_lea.sflag [#allocation9], %s526
        %s528 = sand.u32 %s155, 1
        %s529 = smul.addr %s528, 224
        %s530 = scalar_lea.vmem [#allocation10], %s529
        %p531 = pneg %p168
        %p532 = pneg %p165
        %p533 = pneg %p194
        %p534 = pneg %p191
        %s535 = sand.u32 %s181, 1
        %s536 = scalar_lea.sflag [#allocation4], %s535
        %s537 = sand.u32 %s181, 1
        %s538 = smul.addr %s537, 48
        %s539 = scalar_lea.vmem [#allocation11], %s538
        %p540 = pneg %p220
        %p541 = pneg %p217
        %s542 = sand.u32 %s43, 1
        %s543 = scalar_lea.sflag [#allocation13], %s542
        %s544 = sand.u32 %s207, 1
        %s545 = smul.addr %s544, 144
        %s546 = scalar_lea.vmem [#allocation12], %s545
        %p547 = pneg %p246
        %p548 = pneg %p243
        %s549 = sand.u32 %s43, 1
        %s550 = scalar_lea.sflag [#allocation13], %s549
        %s551 = sand.u32 %s233, 1
        %s552 = smul.addr %s551, 48
        %s553 = scalar_lea.vmem [#allocation14], %s552
        %p554 = pneg %p272
        %p555 = pneg %p269
        %s556 = sand.u32 %s43, 1
        %s557 = scalar_lea.sflag [#allocation16], %s556
        %s558 = sand.u32 %s259, 1
        %s559 = smul.addr %s558, 64
        %s560 = scalar_lea.vmem [#allocation15], %s559
        %p561 = pneg %p298
        %p562 = pneg %p295
        %s563 = sand.u32 %s43, 1
        %s564 = scalar_lea.sflag [#allocation16], %s563
        %s565 = sand.u32 %s285, 1
        %s566 = smul.addr %s565, 48
        %s567 = scalar_lea.vmem [#allocation17], %s566
        %p568 = pneg %p324
        %p569 = pneg %p321
        %s570 = sand.u32 %s311, 1
        %s571 = scalar_lea.sflag [#allocation19], %s570
        %s572 = sand.u32 %s311, 1
        %s573 = smul.addr %s572, 64
        %s574 = scalar_lea.vmem [#allocation18], %s573
        %s575 = smul.u32 2, %s43
        %s576 = smul.u32 2, %s43
        %s577 = smul.u32 2, %s43
        %s578 = smul.u32 2, %s43
        %s579 = smul.u32 2, %s43
        %s580 = smul.u32 2, %s43
        %s581 = smul.u32 2, %s43
        %s582 = smul.u32 2, %s43
        %s583 = smul.u32 2, %s43
        %s584 = smul.u32 2, %s43
        %s585 = smul.u32 2, %s43
        %v586 = vld [vmem:[%s484] sm:$0xff]
        %v587 = vld [vmem:[%s466] sm:$0xff]
        %s588 = sadd.s32 0, 2
        %s589 = smul.addr %s588, 8
        %s590 = scalar_lea.vmem %s466, %s589 [#allocation5]
        %v591 = vld [vmem:[%s590] sm:$0xff]
        %s592 = sadd.s32 0, 6
        %s593 = smul.addr %s592, 8
        %s594 = scalar_lea.vmem %s466, %s593 [#allocation5]
        %v595 = vld [vmem:[%s594] sm:$0xff]
        %s596 = sadd.s32 0, 8
        %s597 = smul.addr %s596, 8
        %s598 = scalar_lea.vmem %s466, %s597 [#allocation5]
        %v599 = vld [vmem:[%s598] sm:$0xff]
        %v600 = vmul.f32 %v587, %v599
        %v601 = vmul.f32 %v591, %v595
        %v602 = vsub.f32 %v600, %v601
        %v603 = vrcp.pop %v602
        %v604 = vmul.f32 1.0, %v603
        %v605 = vsub.f32 %v599, %v595
        %v606 = vmul.f32 %v605, 0.03125
        %v607 = vsub.f32 %v587, %v591
        %v608 = vmul.f32 %v607, 0.03125
        %v609 = vadd.f32 %v606, %v608
        %v610 = vmul.f32 %v609, 0.1
        %v611 = vmul.f32 %v610, %v604
        %v612 = vld [vmem:[%s493] sm:$0xff]
        %v613 = vld [vmem:[%s493 + $0x10] sm:$0xff]
        %v614 = vld [vmem:[%s493 + $0x20] sm:$0xff]
        %v615 = vsub.f32 0.0, %v612
        %v616 = vsub.f32 0.0, %v613
        %v617 = vsub.f32 0.0, %v614
        %v618 = vmul.f32 %v615, 1.442695
        %v619 = vpow.pop %v618
        %v620 = vmul.f32 %v616, 1.442695
        %v621 = vpow.pop %v620
        %v622 = vmul.f32 %v617, 1.442695
        %v623 = vpow.pop %v622
        %v624 = vadd.f32 %v619, 1.0
        %v625 = vadd.f32 %v621, 1.0
        %v626 = vadd.f32 %v623, 1.0
        %v627 = vrcp.pop %v624
        %v628 = vmul.f32 1.0, %v627
        %v629 = vrcp.pop %v625
        %v630 = vmul.f32 1.0, %v629
        %v631 = vrcp.pop %v626
        %v632 = vmul.f32 1.0, %v631
        %v633 = vmul.f32 %v628, 14.5
        %v634 = vmul.f32 %v630, 14.5
        %v635 = vmul.f32 %v632, 14.5
        %v636 = vadd.f32 %v633, 0.5
        %v637 = vadd.f32 %v634, 0.5
        %v638 = vadd.f32 %v635, 0.5
        %v639 = vmul.f32 %v586, %v611
        %v640 = vmul.f32 %v636, %v639
        %v641 = vmul.f32 %v637, %v639
        %v642 = vmul.f32 %v638, %v639
        %643 = vst [vmem:[%s553] sm:$0xff] %v640
        %644 = vst [vmem:[%s553 + $0x10] sm:$0xff] %v641
        %645 = vst [vmem:[%s553 + $0x20] sm:$0xff] %v642
        %s646 = smul.addr %s592, 8
        %s647 = scalar_lea.vmem %s493, %s646 [#allocation10]
        %v648 = vld [vmem:[%s647] sm:$0xff]
        %v649 = vld [vmem:[%s647 + $0x10] sm:$0xff]
        %v650 = vld [vmem:[%s647 + $0x20] sm:$0xff]
        %v651 = vld [vmem:[%s647 + $0x30] sm:$0xff]
        %v652 = vmul.f32 %v648, %v648
        %v653 = vmul.f32 %v649, %v649
        %v654 = vadd.f32 %v652, %v653
        %v655 = vmul.f32 %v650, %v650
        %v656 = vadd.f32 %v654, %v655
        %v657 = vmul.f32 %v651, %v651
        %v658 = vadd.f32 %v656, %v657
        %v659 = vrsqrt.pop %v658
        %v660 = vmul.f32 %v658, %v659
        %vm661 = vcmp.eq.f32.partialorder %v658, inf
        %v662 = vsel %vm661, %v658, %v660
        %vm663 = vcmp.eq.f32.partialorder %v658, 0.0
        %v664 = vand.u32 %v658, 2147483648
        %v665 = vsel %vm663, %v664, %v662
        %v666 = vadd.f32 %v665, 1e-08
        %v667 = vrcp.pop %v666
        %v668 = vmul.f32 1.0, %v667
        %v669 = vmul.f32 %v648, %v668
        %v670 = vmul.f32 %v649, %v668
        %v671 = vmul.f32 %v650, %v668
        %v672 = vmul.f32 %v651, %v668
        %673 = vst [vmem:[%s560] sm:$0xff] %v669
        %674 = vst [vmem:[%s560 + $0x10] sm:$0xff] %v670
        %675 = vst [vmem:[%s560 + $0x20] sm:$0xff] %v671
        %676 = vst [vmem:[%s560 + $0x30] sm:$0xff] %v672
        %s677 = sadd.s32 0, 14
        %s678 = smul.addr %s677, 8
        %s679 = scalar_lea.vmem %s493, %s678 [#allocation10]
        %v680 = vld [vmem:[%s679] sm:$0xff]
        %v681 = vld [vmem:[%s679 + $0x10] sm:$0xff]
        %v682 = vld [vmem:[%s679 + $0x20] sm:$0xff]
        %683 = vst [vmem:[%s567] sm:$0xff] %v680
        %684 = vst [vmem:[%s567 + $0x10] sm:$0xff] %v681
        %685 = vst [vmem:[%s567 + $0x20] sm:$0xff] %v682
        %s686 = sadd.s32 0, 20
        %s687 = smul.addr %s686, 8
        %s688 = scalar_lea.vmem %s493, %s687 [#allocation10]
        %v689 = vld [vmem:[%s688] sm:$0xff]
        %v690 = vld [vmem:[%s688 + $0x10] sm:$0xff]
        %v691 = vld [vmem:[%s688 + $0x20] sm:$0xff]
        %v692 = vld [vmem:[%s688 + $0x30] sm:$0xff]
        %693 = vst [vmem:[%s574] sm:$0xff] %v689
        %694 = vst [vmem:[%s574 + $0x10] sm:$0xff] %v690
        %695 = vst [vmem:[%s574 + $0x20] sm:$0xff] %v691
        %696 = vst [vmem:[%s574 + $0x30] sm:$0xff] %v692
        %v697 = vld [vmem:[%s457] sm:$0xff]
        %s698 = smul.addr %s588, 8
        %s699 = scalar_lea.vmem %s457, %s698 [#allocation2]
        %v700 = vld [vmem:[%s699] sm:$0xff]
        %s701 = sadd.s32 0, 4
        %s702 = smul.addr %s701, 8
        %s703 = scalar_lea.vmem %s457, %s702 [#allocation2]
        %v704 = vld [vmem:[%s703] sm:$0xff]
        %s705 = smul.addr %s596, 8
        %s706 = scalar_lea.vmem %s457, %s705 [#allocation2]
        %v707 = vld [vmem:[%s706] sm:$0xff]
        %s708 = sadd.s32 0, 10
        %s709 = smul.addr %s708, 8
        %s710 = scalar_lea.vmem %s457, %s709 [#allocation2]
        %v711 = vld [vmem:[%s710] sm:$0xff]
        %s712 = sadd.s32 0, 12
        %s713 = smul.addr %s712, 8
        %s714 = scalar_lea.vmem %s457, %s713 [#allocation2]
        %v715 = vld [vmem:[%s714] sm:$0xff]
        %s716 = sadd.s32 0, 16
        %s717 = smul.addr %s716, 8
        %s718 = scalar_lea.vmem %s457, %s717 [#allocation2]
        %v719 = vld [vmem:[%s718] sm:$0xff]
        %s720 = sadd.s32 0, 18
        %s721 = smul.addr %s720, 8
        %s722 = scalar_lea.vmem %s457, %s721 [#allocation2]
        %v723 = vld [vmem:[%s722] sm:$0xff]
        %s724 = smul.addr %s686, 8
        %s725 = scalar_lea.vmem %s457, %s724 [#allocation2]
        %v726 = vld [vmem:[%s725] sm:$0xff]
        %s727 = smul.addr %s701, 8
        %s728 = scalar_lea.vmem %s466, %s727 [#allocation5]
        %v729 = vld [vmem:[%s728] sm:$0xff]
        %s730 = smul.addr %s708, 8
        %s731 = scalar_lea.vmem %s466, %s730 [#allocation5]
        %v732 = vld [vmem:[%s731] sm:$0xff]
        %s733 = smul.addr %s712, 8
        %s734 = scalar_lea.vmem %s466, %s733 [#allocation5]
        %v735 = vld [vmem:[%s734] sm:$0xff]
        %s736 = smul.addr %s677, 8
        %s737 = scalar_lea.vmem %s466, %s736 [#allocation5]
        %v738 = vld [vmem:[%s737] sm:$0xff]
        %s739 = smul.addr %s716, 8
        %s740 = scalar_lea.vmem %s466, %s739 [#allocation5]
        %v741 = vld [vmem:[%s740] sm:$0xff]
        %v742 = vmul.f32 %v599, %v741
        %v743 = vmul.f32 %v732, %v738
        %v744 = vsub.f32 %v742, %v743
        %v745 = vmul.f32 %v591, %v741
        %v746 = vmul.f32 %v729, %v738
        %v747 = vsub.f32 %v745, %v746
        %v748 = vmul.f32 %v591, %v732
        %v749 = vmul.f32 %v729, %v599
        %v750 = vsub.f32 %v748, %v749
        %v751 = vmul.f32 %v595, %v741
        %v752 = vmul.f32 %v732, %v735
        %v753 = vsub.f32 %v751, %v752
        %v754 = vmul.f32 %v587, %v741
        %v755 = vmul.f32 %v729, %v735
        %v756 = vsub.f32 %v754, %v755
        %v757 = vmul.f32 %v587, %v732
        %v758 = vmul.f32 %v729, %v595
        %v759 = vsub.f32 %v757, %v758
        %v760 = vmul.f32 %v595, %v738
        %v761 = vmul.f32 %v599, %v735
        %v762 = vsub.f32 %v760, %v761
        %v763 = vmul.f32 %v587, %v738
        %v764 = vmul.f32 %v591, %v735
        %v765 = vsub.f32 %v763, %v764
        %v766 = vmul.f32 %v587, %v744
        %v767 = vmul.f32 %v591, %v753
        %v768 = vsub.f32 %v766, %v767
        %v769 = vmul.f32 %v729, %v762
        %v770 = vadd.f32 %v768, %v769
        %v771 = vrcp.pop %v770
        %v772 = vmul.f32 1.0, %v771
        %v773 = vld [vmem:[%s475] sm:$0xff]
        %s774 = smul.addr %s588, 8
        %s775 = scalar_lea.vmem %s475, %s774 [#allocation7]
        %v776 = vld [vmem:[%s775] sm:$0xff]
        %v777 = vmul.f32 %v744, %v773
        %v778 = vmul.f32 %v747, %v776
        %v779 = vsub.f32 %v777, %v778
        %v780 = vadd.f32 %v779, %v750
        %v781 = vmul.f32 %v780, %v772
        %v782 = vmul.f32 %v756, %v776
        %v783 = vmul.f32 %v753, %v773
        %v784 = vsub.f32 %v782, %v783
        %v785 = vsub.f32 %v784, %v759
        %v786 = vmul.f32 %v785, %v772
        %v787 = vmul.f32 %v762, %v773
        %v788 = vmul.f32 %v765, %v776
        %v789 = vsub.f32 %v787, %v788
        %v790 = vadd.f32 %v789, %v602
        %v791 = vmul.f32 %v790, %v772
        %v792 = vmul.f32 %v781, %v781
        %v793 = vmul.f32 %v786, %v786
        %v794 = vadd.f32 %v792, %v793
        %v795 = vmul.f32 %v791, %v791
        %v796 = vadd.f32 %v794, %v795
        %v797 = vrsqrt.pop %v796
        %v798 = vmul.f32 %v781, %v797
        %v799 = vmul.f32 %v786, %v797
        %v800 = vmul.f32 %v791, %v797
        %v801 = vmul.f32 %v697, %v798
        %v802 = vmul.f32 %v700, %v799
        %v803 = vadd.f32 %v801, %v802
        %v804 = vmul.f32 %v704, %v800
        %v805 = vadd.f32 %v803, %v804
        %s806 = smul.addr %s592, 8
        %s807 = scalar_lea.vmem %s457, %s806 [#allocation2]
        %v808 = vld [vmem:[%s807] sm:$0xff]
        %v809 = vmul.f32 %v805, %v586
        %v810 = vadd.f32 %v808, %v809
        %811 = vst [vmem:[%s539] sm:$0xff] %v810
        %v812 = vmul.f32 %v707, %v798
        %v813 = vmul.f32 %v711, %v799
        %v814 = vadd.f32 %v812, %v813
        %v815 = vmul.f32 %v715, %v800
        %v816 = vadd.f32 %v814, %v815
        %s817 = smul.addr %s677, 8
        %s818 = scalar_lea.vmem %s457, %s817 [#allocation2]
        %v819 = vld [vmem:[%s818] sm:$0xff]
        %v820 = vmul.f32 %v816, %v586
        %v821 = vadd.f32 %v819, %v820
        %s822 = smul.addr %s588, 8
        %s823 = scalar_lea.vmem %s539, %s822 [#allocation11]
        %824 = vst [vmem:[%s823] sm:$0xff] %v821
        %v825 = vmul.f32 %v719, %v798
        %v826 = vmul.f32 %v723, %v799
        %v827 = vadd.f32 %v825, %v826
        %v828 = vmul.f32 %v726, %v800
        %v829 = vadd.f32 %v827, %v828
        %s830 = sadd.s32 0, 22
        %s831 = smul.addr %s830, 8
        %s832 = scalar_lea.vmem %s457, %s831 [#allocation2]
        %v833 = vld [vmem:[%s832] sm:$0xff]
        %v834 = vmul.f32 %v829, %v586
        %v835 = vadd.f32 %v833, %v834
        %s836 = smul.addr %s701, 8
        %s837 = scalar_lea.vmem %s539, %s836 [#allocation11]
        %838 = vst [vmem:[%s837] sm:$0xff] %v835
        %v839 = vmul.f32 %v669, %v669
        %v840 = vmul.f32 %v670, %v670
        %v841 = vadd.f32 %v839, %v840
        %v842 = vmul.f32 %v671, %v671
        %v843 = vadd.f32 %v841, %v842
        %v844 = vmul.f32 %v672, %v672
        %v845 = vadd.f32 %v843, %v844
        %v846 = vadd.f32 %v845, 1e-08
        %v847 = vrcp.pop %v846
        %v848 = vmul.f32 2.0, %v847
        %v849 = vadd.f32 %v840, %v842
        %v850 = vmul.f32 %v848, %v849
        %v851 = vsub.f32 1.0, %v850
        %v852 = vmul.f32 %v669, %v670
        %v853 = vmul.f32 %v671, %v672
        %v854 = vsub.f32 %v852, %v853
        %v855 = vmul.f32 %v848, %v854
        %v856 = vmul.f32 %v669, %v671
        %v857 = vmul.f32 %v670, %v672
        %v858 = vadd.f32 %v856, %v857
        %v859 = vmul.f32 %v848, %v858
        %v860 = vadd.f32 %v852, %v853
        %v861 = vmul.f32 %v848, %v860
        %v862 = vadd.f32 %v839, %v842
        %v863 = vmul.f32 %v848, %v862
        %v864 = vsub.f32 1.0, %v863
        %v865 = vmul.f32 %v670, %v671
        %v866 = vmul.f32 %v669, %v672
        %v867 = vsub.f32 %v865, %v866
        %v868 = vmul.f32 %v848, %v867
        %v869 = vsub.f32 %v856, %v857
        %v870 = vmul.f32 %v848, %v869
        %v871 = vadd.f32 %v865, %v866
        %v872 = vmul.f32 %v848, %v871
        %v873 = vmul.f32 %v848, %v841
        %v874 = vsub.f32 1.0, %v873
        %v875 = vmul.f32 %v640, %v640
        %v876 = vmul.f32 %v641, %v641
        %v877 = vmul.f32 %v642, %v642
        %v878 = vmul.f32 %v851, %v875
        %v879 = vmul.f32 %v878, %v851
        %v880 = vadd.f32 %v879, 0.0
        %v881 = vmul.f32 %v855, %v876
        %v882 = vmul.f32 %v881, %v855
        %v883 = vadd.f32 %v880, %v882
        %v884 = vmul.f32 %v859, %v877
        %v885 = vmul.f32 %v884, %v859
        %v886 = vadd.f32 %v883, %v885
        %v887 = vmul.f32 %v878, %v861
        %v888 = vadd.f32 %v887, 0.0
        %v889 = vmul.f32 %v881, %v864
        %v890 = vadd.f32 %v888, %v889
        %v891 = vmul.f32 %v884, %v868
        %v892 = vadd.f32 %v890, %v891
        %v893 = vmul.f32 %v878, %v870
        %v894 = vadd.f32 %v893, 0.0
        %v895 = vmul.f32 %v881, %v872
        %v896 = vadd.f32 %v894, %v895
        %v897 = vmul.f32 %v884, %v874
        %v898 = vadd.f32 %v896, %v897
        %v899 = vmul.f32 %v861, %v875
        %v900 = vmul.f32 %v899, %v861
        %v901 = vadd.f32 %v900, 0.0
        %v902 = vmul.f32 %v864, %v876
        %v903 = vmul.f32 %v902, %v864
        %v904 = vadd.f32 %v901, %v903
        %v905 = vmul.f32 %v868, %v877
        %v906 = vmul.f32 %v905, %v868
        %v907 = vadd.f32 %v904, %v906
        %v908 = vmul.f32 %v899, %v870
        %v909 = vadd.f32 %v908, 0.0
        %v910 = vmul.f32 %v902, %v872
        %v911 = vadd.f32 %v909, %v910
        %v912 = vmul.f32 %v905, %v874
        %v913 = vadd.f32 %v911, %v912
        %v914 = vmul.f32 %v870, %v875
        %v915 = vmul.f32 %v914, %v870
        %v916 = vadd.f32 %v915, 0.0
        %v917 = vmul.f32 %v872, %v876
        %v918 = vmul.f32 %v917, %v872
        %v919 = vadd.f32 %v916, %v918
        %v920 = vmul.f32 %v874, %v877
        %v921 = vmul.f32 %v920, %v874
        %v922 = vadd.f32 %v919, %v921
        %v923 = vmul.f32 %v697, %v886
        %v924 = vadd.f32 %v923, 0.0
        %v925 = vmul.f32 %v700, %v892
        %v926 = vadd.f32 %v924, %v925
        %v927 = vmul.f32 %v704, %v898
        %v928 = vadd.f32 %v926, %v927
        %v929 = vmul.f32 %v697, %v892
        %v930 = vadd.f32 %v929, 0.0
        %v931 = vmul.f32 %v700, %v907
        %v932 = vadd.f32 %v930, %v931
        %v933 = vmul.f32 %v704, %v913
        %v934 = vadd.f32 %v932, %v933
        %v935 = vmul.f32 %v697, %v898
        %v936 = vadd.f32 %v935, 0.0
        %v937 = vmul.f32 %v700, %v913
        %v938 = vadd.f32 %v936, %v937
        %v939 = vmul.f32 %v704, %v922
        %v940 = vadd.f32 %v938, %v939
        %v941 = vmul.f32 %v707, %v886
        %v942 = vadd.f32 %v941, 0.0
        %v943 = vmul.f32 %v711, %v892
        %v944 = vadd.f32 %v942, %v943
        %v945 = vmul.f32 %v715, %v898
        %v946 = vadd.f32 %v944, %v945
        %v947 = vmul.f32 %v707, %v892
        %v948 = vadd.f32 %v947, 0.0
        %v949 = vmul.f32 %v711, %v907
        %v950 = vadd.f32 %v948, %v949
        %v951 = vmul.f32 %v715, %v913
        %v952 = vadd.f32 %v950, %v951
        %v953 = vmul.f32 %v707, %v898
        %v954 = vadd.f32 %v953, 0.0
        %v955 = vmul.f32 %v711, %v913
        %v956 = vadd.f32 %v954, %v955
        %v957 = vmul.f32 %v715, %v922
        %v958 = vadd.f32 %v956, %v957
        %v959 = vmul.f32 %v719, %v886
        %v960 = vadd.f32 %v959, 0.0
        %v961 = vmul.f32 %v723, %v892
        %v962 = vadd.f32 %v960, %v961
        %v963 = vmul.f32 %v726, %v898
        %v964 = vadd.f32 %v962, %v963
        %v965 = vmul.f32 %v719, %v892
        %v966 = vadd.f32 %v965, 0.0
        %v967 = vmul.f32 %v723, %v907
        %v968 = vadd.f32 %v966, %v967
        %v969 = vmul.f32 %v726, %v913
        %v970 = vadd.f32 %v968, %v969
        %v971 = vmul.f32 %v719, %v898
        %v972 = vadd.f32 %v971, 0.0
        %v973 = vmul.f32 %v723, %v913
        %v974 = vadd.f32 %v972, %v973
        %v975 = vmul.f32 %v726, %v922
        %v976 = vadd.f32 %v974, %v975
        %v977 = vmul.f32 %v928, %v697
        %v978 = vadd.f32 %v977, 0.0
        %v979 = vmul.f32 %v934, %v700
        %v980 = vadd.f32 %v978, %v979
        %v981 = vmul.f32 %v940, %v704
        %v982 = vadd.f32 %v980, %v981
        %983 = vst [vmem:[%s546] sm:$0xff] %v982
        %v984 = vmul.f32 %v928, %v707
        %v985 = vadd.f32 %v984, 0.0
        %v986 = vmul.f32 %v934, %v711
        %v987 = vadd.f32 %v985, %v986
        %v988 = vmul.f32 %v940, %v715
        %v989 = vadd.f32 %v987, %v988
        %s990 = smul.addr %s588, 8
        %s991 = scalar_lea.vmem %s546, %s990 [#allocation12]
        %992 = vst [vmem:[%s991] sm:$0xff] %v989
        %s993 = smul.addr %s592, 8
        %s994 = scalar_lea.vmem %s546, %s993 [#allocation12]
        %995 = vst [vmem:[%s994] sm:$0xff] %v989
        %v996 = vmul.f32 %v928, %v719
        %v997 = vadd.f32 %v996, 0.0
        %v998 = vmul.f32 %v934, %v723
        %v999 = vadd.f32 %v997, %v998
        %v1000 = vmul.f32 %v940, %v726
        %v1001 = vadd.f32 %v999, %v1000
        %s1002 = smul.addr %s701, 8
        %s1003 = scalar_lea.vmem %s546, %s1002 [#allocation12]
        %1004 = vst [vmem:[%s1003] sm:$0xff] %v1001
        %s1005 = smul.addr %s712, 8
        %s1006 = scalar_lea.vmem %s546, %s1005 [#allocation12]
        %1007 = vst [vmem:[%s1006] sm:$0xff] %v1001
        %v1008 = vmul.f32 %v946, %v707
        %v1009 = vadd.f32 %v1008, 0.0
        %v1010 = vmul.f32 %v952, %v711
        %v1011 = vadd.f32 %v1009, %v1010
        %v1012 = vmul.f32 %v958, %v715
        %v1013 = vadd.f32 %v1011, %v1012
        %s1014 = smul.addr %s596, 8
        %s1015 = scalar_lea.vmem %s546, %s1014 [#allocation12]
        %1016 = vst [vmem:[%s1015] sm:$0xff] %v1013
        %v1017 = vmul.f32 %v946, %v719
        %v1018 = vadd.f32 %v1017, 0.0
        %v1019 = vmul.f32 %v952, %v723
        %v1020 = vadd.f32 %v1018, %v1019
        %v1021 = vmul.f32 %v958, %v726
        %v1022 = vadd.f32 %v1020, %v1021
        %s1023 = smul.addr %s708, 8
        %s1024 = scalar_lea.vmem %s546, %s1023 [#allocation12]
        %1025 = vst [vmem:[%s1024] sm:$0xff] %v1022
        %s1026 = smul.addr %s677, 8
        %s1027 = scalar_lea.vmem %s546, %s1026 [#allocation12]
        %1028 = vst [vmem:[%s1027] sm:$0xff] %v1022
        %v1029 = vmul.f32 %v964, %v719
        %v1030 = vadd.f32 %v1029, 0.0
        %v1031 = vmul.f32 %v970, %v723
        %v1032 = vadd.f32 %v1030, %v1031
        %v1033 = vmul.f32 %v976, %v726
        %v1034 = vadd.f32 %v1032, %v1033
        %s1035 = smul.addr %s716, 8
        %s1036 = scalar_lea.vmem %s546, %s1035 [#allocation12]
        %1037 = vst [vmem:[%s1036] sm:$0xff] %v1034
        %s1038 = scalar_lea.vmem %s484, 8 [#allocation8]
        %v1039 = vld [vmem:[%s1038] sm:$0xff]
        %s1040 = scalar_lea.vmem %s466, 8 [#allocation5]
        %v1041 = vld [vmem:[%s1040] sm:$0xff]
        %s1042 = sadd.s32 1, 2
        %s1043 = smul.addr %s1042, 8
        %s1044 = scalar_lea.vmem %s466, %s1043 [#allocation5]
        %v1045 = vld [vmem:[%s1044] sm:$0xff]
        %s1046 = sadd.s32 1, 6
        %s1047 = smul.addr %s1046, 8
        %s1048 = scalar_lea.vmem %s466, %s1047 [#allocation5]
        %v1049 = vld [vmem:[%s1048] sm:$0xff]
        %s1050 = sadd.s32 1, 8
        %s1051 = smul.addr %s1050, 8
        %s1052 = scalar_lea.vmem %s466, %s1051 [#allocation5]
        %v1053 = vld [vmem:[%s1052] sm:$0xff]
        %v1054 = vmul.f32 %v1041, %v1053
        %v1055 = vmul.f32 %v1045, %v1049
        %v1056 = vsub.f32 %v1054, %v1055
        %v1057 = vrcp.pop %v1056
        %v1058 = vmul.f32 1.0, %v1057
        %v1059 = vsub.f32 %v1053, %v1049
        %v1060 = vmul.f32 %v1059, 0.03125
        %v1061 = vsub.f32 %v1041, %v1045
        %v1062 = vmul.f32 %v1061, 0.03125
        %v1063 = vadd.f32 %v1060, %v1062
        %v1064 = vmul.f32 %v1063, 0.1
        %v1065 = vmul.f32 %v1064, %v1058
        %s1066 = scalar_lea.vmem %s493, 8 [#allocation10]
        %v1067 = vld [vmem:[%s1066] sm:$0xff]
        %v1068 = vld [vmem:[%s1066 + $0x10] sm:$0xff]
        %v1069 = vld [vmem:[%s1066 + $0x20] sm:$0xff]
        %v1070 = vsub.f32 0.0, %v1067
        %v1071 = vsub.f32 0.0, %v1068
        %v1072 = vsub.f32 0.0, %v1069
        %v1073 = vmul.f32 %v1070, 1.442695
        %v1074 = vpow.pop %v1073
        %v1075 = vmul.f32 %v1071, 1.442695
        %v1076 = vpow.pop %v1075
        %v1077 = vmul.f32 %v1072, 1.442695
        %v1078 = vpow.pop %v1077
        %v1079 = vadd.f32 %v1074, 1.0
        %v1080 = vadd.f32 %v1076, 1.0
        %v1081 = vadd.f32 %v1078, 1.0
        %v1082 = vrcp.pop %v1079
        %v1083 = vmul.f32 1.0, %v1082
        %v1084 = vrcp.pop %v1080
        %v1085 = vmul.f32 1.0, %v1084
        %v1086 = vrcp.pop %v1081
        %v1087 = vmul.f32 1.0, %v1086
        %v1088 = vmul.f32 %v1083, 14.5
        %v1089 = vmul.f32 %v1085, 14.5
        %v1090 = vmul.f32 %v1087, 14.5
        %v1091 = vadd.f32 %v1088, 0.5
        %v1092 = vadd.f32 %v1089, 0.5
        %v1093 = vadd.f32 %v1090, 0.5
        %v1094 = vmul.f32 %v1039, %v1065
        %v1095 = vmul.f32 %v1091, %v1094
        %v1096 = vmul.f32 %v1092, %v1094
        %v1097 = vmul.f32 %v1093, %v1094
        %s1098 = scalar_lea.vmem %s553, 8 [#allocation14]
        %1099 = vst [vmem:[%s1098] sm:$0xff] %v1095
        %1100 = vst [vmem:[%s1098 + $0x10] sm:$0xff] %v1096
        %1101 = vst [vmem:[%s1098 + $0x20] sm:$0xff] %v1097
        %s1102 = smul.addr %s1046, 8
        %s1103 = scalar_lea.vmem %s493, %s1102 [#allocation10]
        %v1104 = vld [vmem:[%s1103] sm:$0xff]
        %v1105 = vld [vmem:[%s1103 + $0x10] sm:$0xff]
        %v1106 = vld [vmem:[%s1103 + $0x20] sm:$0xff]
        %v1107 = vld [vmem:[%s1103 + $0x30] sm:$0xff]
        %v1108 = vmul.f32 %v1104, %v1104
        %v1109 = vmul.f32 %v1105, %v1105
        %v1110 = vadd.f32 %v1108, %v1109
        %v1111 = vmul.f32 %v1106, %v1106
        %v1112 = vadd.f32 %v1110, %v1111
        %v1113 = vmul.f32 %v1107, %v1107
        %v1114 = vadd.f32 %v1112, %v1113
        %v1115 = vrsqrt.pop %v1114
        %v1116 = vmul.f32 %v1114, %v1115
        %vm1117 = vcmp.eq.f32.partialorder %v1114, inf
        %v1118 = vsel %vm1117, %v1114, %v1116
        %vm1119 = vcmp.eq.f32.partialorder %v1114, 0.0
        %v1120 = vand.u32 %v1114, 2147483648
        %v1121 = vsel %vm1119, %v1120, %v1118
        %v1122 = vadd.f32 %v1121, 1e-08
        %v1123 = vrcp.pop %v1122
        %v1124 = vmul.f32 1.0, %v1123
        %v1125 = vmul.f32 %v1104, %v1124
        %v1126 = vmul.f32 %v1105, %v1124
        %v1127 = vmul.f32 %v1106, %v1124
        %v1128 = vmul.f32 %v1107, %v1124
        %s1129 = scalar_lea.vmem %s560, 8 [#allocation15]
        %1130 = vst [vmem:[%s1129] sm:$0xff] %v1125
        %1131 = vst [vmem:[%s1129 + $0x10] sm:$0xff] %v1126
        %1132 = vst [vmem:[%s1129 + $0x20] sm:$0xff] %v1127
        %1133 = vst [vmem:[%s1129 + $0x30] sm:$0xff] %v1128
        %s1134 = sadd.s32 1, 14
        %s1135 = smul.addr %s1134, 8
        %s1136 = scalar_lea.vmem %s493, %s1135 [#allocation10]
        %v1137 = vld [vmem:[%s1136] sm:$0xff]
        %v1138 = vld [vmem:[%s1136 + $0x10] sm:$0xff]
        %v1139 = vld [vmem:[%s1136 + $0x20] sm:$0xff]
        %s1140 = scalar_lea.vmem %s567, 8 [#allocation17]
        %1141 = vst [vmem:[%s1140] sm:$0xff] %v1137
        %1142 = vst [vmem:[%s1140 + $0x10] sm:$0xff] %v1138
        %1143 = vst [vmem:[%s1140 + $0x20] sm:$0xff] %v1139
        %s1144 = sadd.s32 1, 20
        %s1145 = smul.addr %s1144, 8
        %s1146 = scalar_lea.vmem %s493, %s1145 [#allocation10]
        %v1147 = vld [vmem:[%s1146] sm:$0xff]
        %v1148 = vld [vmem:[%s1146 + $0x10] sm:$0xff]
        %v1149 = vld [vmem:[%s1146 + $0x20] sm:$0xff]
        %v1150 = vld [vmem:[%s1146 + $0x30] sm:$0xff]
        %s1151 = scalar_lea.vmem %s574, 8 [#allocation18]
        %1152 = vst [vmem:[%s1151] sm:$0xff] %v1147
        %1153 = vst [vmem:[%s1151 + $0x10] sm:$0xff] %v1148
        %1154 = vst [vmem:[%s1151 + $0x20] sm:$0xff] %v1149
        %1155 = vst [vmem:[%s1151 + $0x30] sm:$0xff] %v1150
        %s1156 = scalar_lea.vmem %s457, 8 [#allocation2]
        %v1157 = vld [vmem:[%s1156] sm:$0xff]
        %s1158 = smul.addr %s1042, 8
        %s1159 = scalar_lea.vmem %s457, %s1158 [#allocation2]
        %v1160 = vld [vmem:[%s1159] sm:$0xff]
        %s1161 = sadd.s32 1, 4
        %s1162 = smul.addr %s1161, 8
        %s1163 = scalar_lea.vmem %s457, %s1162 [#allocation2]
        %v1164 = vld [vmem:[%s1163] sm:$0xff]
        %s1165 = smul.addr %s1050, 8
        %s1166 = scalar_lea.vmem %s457, %s1165 [#allocation2]
        %v1167 = vld [vmem:[%s1166] sm:$0xff]
        %s1168 = sadd.s32 1, 10
        %s1169 = smul.addr %s1168, 8
        %s1170 = scalar_lea.vmem %s457, %s1169 [#allocation2]
        %v1171 = vld [vmem:[%s1170] sm:$0xff]
        %s1172 = sadd.s32 1, 12
        %s1173 = smul.addr %s1172, 8
        %s1174 = scalar_lea.vmem %s457, %s1173 [#allocation2]
        %v1175 = vld [vmem:[%s1174] sm:$0xff]
        %s1176 = sadd.s32 1, 16
        %s1177 = smul.addr %s1176, 8
        %s1178 = scalar_lea.vmem %s457, %s1177 [#allocation2]
        %v1179 = vld [vmem:[%s1178] sm:$0xff]
        %s1180 = sadd.s32 1, 18
        %s1181 = smul.addr %s1180, 8
        %s1182 = scalar_lea.vmem %s457, %s1181 [#allocation2]
        %v1183 = vld [vmem:[%s1182] sm:$0xff]
        %s1184 = smul.addr %s1144, 8
        %s1185 = scalar_lea.vmem %s457, %s1184 [#allocation2]
        %v1186 = vld [vmem:[%s1185] sm:$0xff]
        %s1187 = smul.addr %s1161, 8
        %s1188 = scalar_lea.vmem %s466, %s1187 [#allocation5]
        %v1189 = vld [vmem:[%s1188] sm:$0xff]
        %s1190 = smul.addr %s1168, 8
        %s1191 = scalar_lea.vmem %s466, %s1190 [#allocation5]
        %v1192 = vld [vmem:[%s1191] sm:$0xff]
        %s1193 = smul.addr %s1172, 8
        %s1194 = scalar_lea.vmem %s466, %s1193 [#allocation5]
        %v1195 = vld [vmem:[%s1194] sm:$0xff]
        %s1196 = smul.addr %s1134, 8
        %s1197 = scalar_lea.vmem %s466, %s1196 [#allocation5]
        %v1198 = vld [vmem:[%s1197] sm:$0xff]
        %s1199 = smul.addr %s1176, 8
        %s1200 = scalar_lea.vmem %s466, %s1199 [#allocation5]
        %v1201 = vld [vmem:[%s1200] sm:$0xff]
        %v1202 = vmul.f32 %v1053, %v1201
        %v1203 = vmul.f32 %v1192, %v1198
        %v1204 = vsub.f32 %v1202, %v1203
        %v1205 = vmul.f32 %v1045, %v1201
        %v1206 = vmul.f32 %v1189, %v1198
        %v1207 = vsub.f32 %v1205, %v1206
        %v1208 = vmul.f32 %v1045, %v1192
        %v1209 = vmul.f32 %v1189, %v1053
        %v1210 = vsub.f32 %v1208, %v1209
        %v1211 = vmul.f32 %v1049, %v1201
        %v1212 = vmul.f32 %v1192, %v1195
        %v1213 = vsub.f32 %v1211, %v1212
        %v1214 = vmul.f32 %v1041, %v1201
        %v1215 = vmul.f32 %v1189, %v1195
        %v1216 = vsub.f32 %v1214, %v1215
        %v1217 = vmul.f32 %v1041, %v1192
        %v1218 = vmul.f32 %v1189, %v1049
        %v1219 = vsub.f32 %v1217, %v1218
        %v1220 = vmul.f32 %v1049, %v1198
        %v1221 = vmul.f32 %v1053, %v1195
        %v1222 = vsub.f32 %v1220, %v1221
        %v1223 = vmul.f32 %v1041, %v1198
        %v1224 = vmul.f32 %v1045, %v1195
        %v1225 = vsub.f32 %v1223, %v1224
        %v1226 = vmul.f32 %v1041, %v1204
        %v1227 = vmul.f32 %v1045, %v1213
        %v1228 = vsub.f32 %v1226, %v1227
        %v1229 = vmul.f32 %v1189, %v1222
        %v1230 = vadd.f32 %v1228, %v1229
        %v1231 = vrcp.pop %v1230
        %v1232 = vmul.f32 1.0, %v1231
        %s1233 = scalar_lea.vmem %s475, 8 [#allocation7]
        %v1234 = vld [vmem:[%s1233] sm:$0xff]
        %s1235 = smul.addr %s1042, 8
        %s1236 = scalar_lea.vmem %s475, %s1235 [#allocation7]
        %v1237 = vld [vmem:[%s1236] sm:$0xff]
        %v1238 = vmul.f32 %v1204, %v1234
        %v1239 = vmul.f32 %v1207, %v1237
        %v1240 = vsub.f32 %v1238, %v1239
        %v1241 = vadd.f32 %v1240, %v1210
        %v1242 = vmul.f32 %v1241, %v1232
        %v1243 = vmul.f32 %v1216, %v1237
        %v1244 = vmul.f32 %v1213, %v1234
        %v1245 = vsub.f32 %v1243, %v1244
        %v1246 = vsub.f32 %v1245, %v1219
        %v1247 = vmul.f32 %v1246, %v1232
        %v1248 = vmul.f32 %v1222, %v1234
        %v1249 = vmul.f32 %v1225, %v1237
        %v1250 = vsub.f32 %v1248, %v1249
        %v1251 = vadd.f32 %v1250, %v1056
        %v1252 = vmul.f32 %v1251, %v1232
        %v1253 = vmul.f32 %v1242, %v1242
        %v1254 = vmul.f32 %v1247, %v1247
        %v1255 = vadd.f32 %v1253, %v1254
        %v1256 = vmul.f32 %v1252, %v1252
        %v1257 = vadd.f32 %v1255, %v1256
        %v1258 = vrsqrt.pop %v1257
        %v1259 = vmul.f32 %v1242, %v1258
        %v1260 = vmul.f32 %v1247, %v1258
        %v1261 = vmul.f32 %v1252, %v1258
        %v1262 = vmul.f32 %v1157, %v1259
        %v1263 = vmul.f32 %v1160, %v1260
        %v1264 = vadd.f32 %v1262, %v1263
        %v1265 = vmul.f32 %v1164, %v1261
        %v1266 = vadd.f32 %v1264, %v1265
        %s1267 = smul.addr %s1046, 8
        %s1268 = scalar_lea.vmem %s457, %s1267 [#allocation2]
        %v1269 = vld [vmem:[%s1268] sm:$0xff]
        %v1270 = vmul.f32 %v1266, %v1039
        %v1271 = vadd.f32 %v1269, %v1270
        %s1272 = scalar_lea.vmem %s539, 8 [#allocation11]
        %1273 = vst [vmem:[%s1272] sm:$0xff] %v1271
        %v1274 = vmul.f32 %v1167, %v1259
        %v1275 = vmul.f32 %v1171, %v1260
        %v1276 = vadd.f32 %v1274, %v1275
        %v1277 = vmul.f32 %v1175, %v1261
        %v1278 = vadd.f32 %v1276, %v1277
        %s1279 = smul.addr %s1134, 8
        %s1280 = scalar_lea.vmem %s457, %s1279 [#allocation2]
        %v1281 = vld [vmem:[%s1280] sm:$0xff]
        %v1282 = vmul.f32 %v1278, %v1039
        %v1283 = vadd.f32 %v1281, %v1282
        %s1284 = smul.addr %s1042, 8
        %s1285 = scalar_lea.vmem %s539, %s1284 [#allocation11]
        %1286 = vst [vmem:[%s1285] sm:$0xff] %v1283
        %v1287 = vmul.f32 %v1179, %v1259
        %v1288 = vmul.f32 %v1183, %v1260
        %v1289 = vadd.f32 %v1287, %v1288
        %v1290 = vmul.f32 %v1186, %v1261
        %v1291 = vadd.f32 %v1289, %v1290
        %s1292 = sadd.s32 1, 22
        %s1293 = smul.addr %s1292, 8
        %s1294 = scalar_lea.vmem %s457, %s1293 [#allocation2]
        %v1295 = vld [vmem:[%s1294] sm:$0xff]
        %v1296 = vmul.f32 %v1291, %v1039
        %v1297 = vadd.f32 %v1295, %v1296
        %s1298 = smul.addr %s1161, 8
        %s1299 = scalar_lea.vmem %s539, %s1298 [#allocation11]
        %1300 = vst [vmem:[%s1299] sm:$0xff] %v1297
        %v1301 = vmul.f32 %v1125, %v1125
        %v1302 = vmul.f32 %v1126, %v1126
        %v1303 = vadd.f32 %v1301, %v1302
        %v1304 = vmul.f32 %v1127, %v1127
        %v1305 = vadd.f32 %v1303, %v1304
        %v1306 = vmul.f32 %v1128, %v1128
        %v1307 = vadd.f32 %v1305, %v1306
        %v1308 = vadd.f32 %v1307, 1e-08
        %v1309 = vrcp.pop %v1308
        %v1310 = vmul.f32 2.0, %v1309
        %v1311 = vadd.f32 %v1302, %v1304
        %v1312 = vmul.f32 %v1310, %v1311
        %v1313 = vsub.f32 1.0, %v1312
        %v1314 = vmul.f32 %v1125, %v1126
        %v1315 = vmul.f32 %v1127, %v1128
        %v1316 = vsub.f32 %v1314, %v1315
        %v1317 = vmul.f32 %v1310, %v1316
        %v1318 = vmul.f32 %v1125, %v1127
        %v1319 = vmul.f32 %v1126, %v1128
        %v1320 = vadd.f32 %v1318, %v1319
        %v1321 = vmul.f32 %v1310, %v1320
        %v1322 = vadd.f32 %v1314, %v1315
        %v1323 = vmul.f32 %v1310, %v1322
        %v1324 = vadd.f32 %v1301, %v1304
        %v1325 = vmul.f32 %v1310, %v1324
        %v1326 = vsub.f32 1.0, %v1325
        %v1327 = vmul.f32 %v1126, %v1127
        %v1328 = vmul.f32 %v1125, %v1128
        %v1329 = vsub.f32 %v1327, %v1328
        %v1330 = vmul.f32 %v1310, %v1329
        %v1331 = vsub.f32 %v1318, %v1319
        %v1332 = vmul.f32 %v1310, %v1331
        %v1333 = vadd.f32 %v1327, %v1328
        %v1334 = vmul.f32 %v1310, %v1333
        %v1335 = vmul.f32 %v1310, %v1303
        %v1336 = vsub.f32 1.0, %v1335
        %v1337 = vmul.f32 %v1095, %v1095
        %v1338 = vmul.f32 %v1096, %v1096
        %v1339 = vmul.f32 %v1097, %v1097
        %v1340 = vmul.f32 %v1313, %v1337
        %v1341 = vmul.f32 %v1340, %v1313
        %v1342 = vadd.f32 %v1341, 0.0
        %v1343 = vmul.f32 %v1317, %v1338
        %v1344 = vmul.f32 %v1343, %v1317
        %v1345 = vadd.f32 %v1342, %v1344
        %v1346 = vmul.f32 %v1321, %v1339
        %v1347 = vmul.f32 %v1346, %v1321
        %v1348 = vadd.f32 %v1345, %v1347
        %v1349 = vmul.f32 %v1340, %v1323
        %v1350 = vadd.f32 %v1349, 0.0
        %v1351 = vmul.f32 %v1343, %v1326
        %v1352 = vadd.f32 %v1350, %v1351
        %v1353 = vmul.f32 %v1346, %v1330
        %v1354 = vadd.f32 %v1352, %v1353
        %v1355 = vmul.f32 %v1340, %v1332
        %v1356 = vadd.f32 %v1355, 0.0
        %v1357 = vmul.f32 %v1343, %v1334
        %v1358 = vadd.f32 %v1356, %v1357
        %v1359 = vmul.f32 %v1346, %v1336
        %v1360 = vadd.f32 %v1358, %v1359
        %v1361 = vmul.f32 %v1323, %v1337
        %v1362 = vmul.f32 %v1361, %v1323
        %v1363 = vadd.f32 %v1362, 0.0
        %v1364 = vmul.f32 %v1326, %v1338
        %v1365 = vmul.f32 %v1364, %v1326
        %v1366 = vadd.f32 %v1363, %v1365
        %v1367 = vmul.f32 %v1330, %v1339
        %v1368 = vmul.f32 %v1367, %v1330
        %v1369 = vadd.f32 %v1366, %v1368
        %v1370 = vmul.f32 %v1361, %v1332
        %v1371 = vadd.f32 %v1370, 0.0
        %v1372 = vmul.f32 %v1364, %v1334
        %v1373 = vadd.f32 %v1371, %v1372
        %v1374 = vmul.f32 %v1367, %v1336
        %v1375 = vadd.f32 %v1373, %v1374
        %v1376 = vmul.f32 %v1332, %v1337
        %v1377 = vmul.f32 %v1376, %v1332
        %v1378 = vadd.f32 %v1377, 0.0
        %v1379 = vmul.f32 %v1334, %v1338
        %v1380 = vmul.f32 %v1379, %v1334
        %v1381 = vadd.f32 %v1378, %v1380
        %v1382 = vmul.f32 %v1336, %v1339
        %v1383 = vmul.f32 %v1382, %v1336
        %v1384 = vadd.f32 %v1381, %v1383
        %v1385 = vmul.f32 %v1157, %v1348
        %v1386 = vadd.f32 %v1385, 0.0
        %v1387 = vmul.f32 %v1160, %v1354
        %v1388 = vadd.f32 %v1386, %v1387
        %v1389 = vmul.f32 %v1164, %v1360
        %v1390 = vadd.f32 %v1388, %v1389
        %v1391 = vmul.f32 %v1157, %v1354
        %v1392 = vadd.f32 %v1391, 0.0
        %v1393 = vmul.f32 %v1160, %v1369
        %v1394 = vadd.f32 %v1392, %v1393
        %v1395 = vmul.f32 %v1164, %v1375
        %v1396 = vadd.f32 %v1394, %v1395
        %v1397 = vmul.f32 %v1157, %v1360
        %v1398 = vadd.f32 %v1397, 0.0
        %v1399 = vmul.f32 %v1160, %v1375
        %v1400 = vadd.f32 %v1398, %v1399
        %v1401 = vmul.f32 %v1164, %v1384
        %v1402 = vadd.f32 %v1400, %v1401
        %v1403 = vmul.f32 %v1167, %v1348
        %v1404 = vadd.f32 %v1403, 0.0
        %v1405 = vmul.f32 %v1171, %v1354
        %v1406 = vadd.f32 %v1404, %v1405
        %v1407 = vmul.f32 %v1175, %v1360
        %v1408 = vadd.f32 %v1406, %v1407
        %v1409 = vmul.f32 %v1167, %v1354
        %v1410 = vadd.f32 %v1409, 0.0
        %v1411 = vmul.f32 %v1171, %v1369
        %v1412 = vadd.f32 %v1410, %v1411
        %v1413 = vmul.f32 %v1175, %v1375
        %v1414 = vadd.f32 %v1412, %v1413
        %v1415 = vmul.f32 %v1167, %v1360
        %v1416 = vadd.f32 %v1415, 0.0
        %v1417 = vmul.f32 %v1171, %v1375
        %v1418 = vadd.f32 %v1416, %v1417
        %v1419 = vmul.f32 %v1175, %v1384
        %v1420 = vadd.f32 %v1418, %v1419
        %v1421 = vmul.f32 %v1179, %v1348
        %v1422 = vadd.f32 %v1421, 0.0
        %v1423 = vmul.f32 %v1183, %v1354
        %v1424 = vadd.f32 %v1422, %v1423
        %v1425 = vmul.f32 %v1186, %v1360
        %v1426 = vadd.f32 %v1424, %v1425
        %v1427 = vmul.f32 %v1179, %v1354
        %v1428 = vadd.f32 %v1427, 0.0
        %v1429 = vmul.f32 %v1183, %v1369
        %v1430 = vadd.f32 %v1428, %v1429
        %v1431 = vmul.f32 %v1186, %v1375
        %v1432 = vadd.f32 %v1430, %v1431
        %v1433 = vmul.f32 %v1179, %v1360
        %v1434 = vadd.f32 %v1433, 0.0
        %v1435 = vmul.f32 %v1183, %v1375
        %v1436 = vadd.f32 %v1434, %v1435
        %v1437 = vmul.f32 %v1186, %v1384
        %v1438 = vadd.f32 %v1436, %v1437
        %v1439 = vmul.f32 %v1390, %v1157
        %v1440 = vadd.f32 %v1439, 0.0
        %v1441 = vmul.f32 %v1396, %v1160
        %v1442 = vadd.f32 %v1440, %v1441
        %v1443 = vmul.f32 %v1402, %v1164
        %v1444 = vadd.f32 %v1442, %v1443
        %s1445 = scalar_lea.vmem %s546, 8 [#allocation12]
        %1446 = vst [vmem:[%s1445] sm:$0xff] %v1444
        %v1447 = vmul.f32 %v1390, %v1167
        %v1448 = vadd.f32 %v1447, 0.0
        %v1449 = vmul.f32 %v1396, %v1171
        %v1450 = vadd.f32 %v1448, %v1449
        %v1451 = vmul.f32 %v1402, %v1175
        %v1452 = vadd.f32 %v1450, %v1451
        %s1453 = smul.addr %s1042, 8
        %s1454 = scalar_lea.vmem %s546, %s1453 [#allocation12]
        %1455 = vst [vmem:[%s1454] sm:$0xff] %v1452
        %s1456 = smul.addr %s1046, 8
        %s1457 = scalar_lea.vmem %s546, %s1456 [#allocation12]
        %1458 = vst [vmem:[%s1457] sm:$0xff] %v1452
        %v1459 = vmul.f32 %v1390, %v1179
        %v1460 = vadd.f32 %v1459, 0.0
        %v1461 = vmul.f32 %v1396, %v1183
        %v1462 = vadd.f32 %v1460, %v1461
        %v1463 = vmul.f32 %v1402, %v1186
        %v1464 = vadd.f32 %v1462, %v1463
        %s1465 = smul.addr %s1161, 8
        %s1466 = scalar_lea.vmem %s546, %s1465 [#allocation12]
        %1467 = vst [vmem:[%s1466] sm:$0xff] %v1464
        %s1468 = smul.addr %s1172, 8
        %s1469 = scalar_lea.vmem %s546, %s1468 [#allocation12]
        %1470 = vst [vmem:[%s1469] sm:$0xff] %v1464
        %v1471 = vmul.f32 %v1408, %v1167
        %v1472 = vadd.f32 %v1471, 0.0
        %v1473 = vmul.f32 %v1414, %v1171
        %v1474 = vadd.f32 %v1472, %v1473
        %v1475 = vmul.f32 %v1420, %v1175
        %v1476 = vadd.f32 %v1474, %v1475
        %s1477 = smul.addr %s1050, 8
        %s1478 = scalar_lea.vmem %s546, %s1477 [#allocation12]
        %1479 = vst [vmem:[%s1478] sm:$0xff] %v1476
        %v1480 = vmul.f32 %v1408, %v1179
        %v1481 = vadd.f32 %v1480, 0.0
        %v1482 = vmul.f32 %v1414, %v1183
        %v1483 = vadd.f32 %v1481, %v1482
        %v1484 = vmul.f32 %v1420, %v1186
        %v1485 = vadd.f32 %v1483, %v1484
        %s1486 = smul.addr %s1168, 8
        %s1487 = scalar_lea.vmem %s546, %s1486 [#allocation12]
        %1488 = vst [vmem:[%s1487] sm:$0xff] %v1485
        %s1489 = smul.addr %s1134, 8
        %s1490 = scalar_lea.vmem %s546, %s1489 [#allocation12]
        %1491 = vst [vmem:[%s1490] sm:$0xff] %v1485
        %v1492 = vmul.f32 %v1426, %v1179
        %v1493 = vadd.f32 %v1492, 0.0
        %v1494 = vmul.f32 %v1432, %v1183
        %v1495 = vadd.f32 %v1493, %v1494
        %v1496 = vmul.f32 %v1438, %v1186
        %v1497 = vadd.f32 %v1495, %v1496
        %s1498 = smul.addr %s1176, 8
        %s1499 = scalar_lea.vmem %s546, %s1498 [#allocation12]
        %1500 = vst [vmem:[%s1499] sm:$0xff] %v1497
        %s1501 = sand.u32 %s181, 1
        %s1502 = scalar_lea.sflag [#allocation4], %s1501
        %s1503 = sand.u32 %s181, 1
        %s1504 = smul.addr %s1503, 48
        %s1505 = scalar_lea.vmem [#allocation11], %s1504
        %s1506 = sand.u32 %s43, 1
        %s1507 = scalar_lea.sflag [#allocation13], %s1506
        %s1508 = sand.u32 %s207, 1
        %s1509 = smul.addr %s1508, 144
        %s1510 = scalar_lea.vmem [#allocation12], %s1509
        %s1511 = sand.u32 %s43, 1
        %s1512 = scalar_lea.sflag [#allocation13], %s1511
        %s1513 = sand.u32 %s233, 1
        %s1514 = smul.addr %s1513, 48
        %s1515 = scalar_lea.vmem [#allocation14], %s1514
        %s1516 = sand.u32 %s43, 1
        %s1517 = scalar_lea.sflag [#allocation16], %s1516
        %s1518 = sand.u32 %s259, 1
        %s1519 = smul.addr %s1518, 64
        %s1520 = scalar_lea.vmem [#allocation15], %s1519
        %s1521 = sand.u32 %s43, 1
        %s1522 = scalar_lea.sflag [#allocation16], %s1521
        %s1523 = sand.u32 %s285, 1
        %s1524 = smul.addr %s1523, 48
        %s1525 = scalar_lea.vmem [#allocation17], %s1524
        %s1526 = sand.u32 %s311, 1
        %s1527 = scalar_lea.sflag [#allocation19], %s1526
        %s1528 = sand.u32 %s311, 1
        %s1529 = smul.addr %s1528, 64
        %s1530 = scalar_lea.vmem [#allocation18], %s1529
        // Predicated region
        $region61: #{tpu_custom_call.1} parent=39 // pred_check
          %p1531 = pneg %p191
        $region62: #{tpu_custom_call.1} parent=39 // pred_check_branch
          %1533 = sbr.rel (%p1531) target = $region64
        $region63: #{tpu_custom_call.1} parent=39 // pred_region
          %s1534 = smul.u32 2, %s43
          %s1536 = ssub.s32 768, 768
          %1537 = vsyncadd %s1502, %s1536
          %s1538 = smul.addr %s1534, 128
          %s1539 = scalar_lea.hbm %s5, %s1538
          %s1540 = sshll.u32 %s1505, 4
          %s1541 = int_to_ptr.vmem [resolvable:$true] %s1540
          %1546 = dma.vmem_to_hbm [thread:$0]  %s1541, 768, %s1539, %s1502, 256, 512, 16
        $region64: #{tpu_custom_call.1} parent=39 // pred_fallthru
          _
        // Predicated region
        $region65: #{tpu_custom_call.1} parent=39 // pred_check
          %p1547 = pneg %p217
        $region66: #{tpu_custom_call.1} parent=39 // pred_check_branch
          %1549 = sbr.rel (%p1547) target = $region68
        $region67: #{tpu_custom_call.1} parent=39 // pred_region
          %s1550 = smul.u32 2, %s43
          %s1552 = ssub.s32 2304, 2304
          %1553 = vsyncadd %s1507, %s1552
          %s1554 = smul.addr %s1550, 128
          %s1555 = scalar_lea.hbm %s6, %s1554
          %s1556 = sshll.u32 %s1510, 4
          %s1557 = int_to_ptr.vmem [resolvable:$true] %s1556
          %1562 = dma.vmem_to_hbm [thread:$0]  %s1557, 2304, %s1555, %s1507, 256, 512, 16
        $region68: #{tpu_custom_call.1} parent=39 // pred_fallthru
          _
        // Predicated region
        $region69: #{tpu_custom_call.1} parent=39 // pred_check
          %p1563 = pneg %p243
        $region70: #{tpu_custom_call.1} parent=39 // pred_check_branch
          %1565 = sbr.rel (%p1563) target = $region72
        $region71: #{tpu_custom_call.1} parent=39 // pred_region
          %s1566 = smul.u32 2, %s43
          %s1568 = ssub.s32 768, 768
          %1569 = vsyncadd %s1512, %s1568
          %s1570 = smul.addr %s1566, 128
          %s1571 = scalar_lea.hbm %s7, %s1570
          %s1572 = sshll.u32 %s1515, 4
          %s1573 = int_to_ptr.vmem [resolvable:$true] %s1572
          %1578 = dma.vmem_to_hbm [thread:$0]  %s1573, 768, %s1571, %s1512, 256, 512, 16
        $region72: #{tpu_custom_call.1} parent=39 // pred_fallthru
          _
        // Predicated region
        $region73: #{tpu_custom_call.1} parent=39 // pred_check
          %p1579 = pneg %p269
        $region74: #{tpu_custom_call.1} parent=39 // pred_check_branch
          %1581 = sbr.rel (%p1579) target = $region76
        $region75: #{tpu_custom_call.1} parent=39 // pred_region
          %s1582 = smul.u32 2, %s43
          %s1584 = ssub.s32 1024, 1024
          %1585 = vsyncadd %s1517, %s1584
          %s1586 = smul.addr %s1582, 128
          %s1587 = scalar_lea.hbm %s8, %s1586
          %s1588 = sshll.u32 %s1520, 4
          %s1589 = int_to_ptr.vmem [resolvable:$true] %s1588
          %1594 = dma.vmem_to_hbm [thread:$0]  %s1589, 1024, %s1587, %s1517, 256, 512, 16
        $region76: #{tpu_custom_call.1} parent=39 // pred_fallthru
          _
        // Predicated region
        $region77: #{tpu_custom_call.1} parent=39 // pred_check
          %p1595 = pneg %p295
        $region78: #{tpu_custom_call.1} parent=39 // pred_check_branch
          %1597 = sbr.rel (%p1595) target = $region80
        $region79: #{tpu_custom_call.1} parent=39 // pred_region
          %s1598 = smul.u32 2, %s43
          %s1600 = ssub.s32 768, 768
          %1601 = vsyncadd %s1522, %s1600
          %s1602 = smul.addr %s1598, 128
          %s1603 = scalar_lea.hbm %s9, %s1602
          %s1604 = sshll.u32 %s1525, 4
          %s1605 = int_to_ptr.vmem [resolvable:$true] %s1604
          %1610 = dma.vmem_to_hbm [thread:$0]  %s1605, 768, %s1603, %s1522, 256, 512, 16
        $region80: #{tpu_custom_call.1} parent=39 // pred_fallthru
          _
        // Predicated region
        $region81: #{tpu_custom_call.1} parent=39 // pred_check
          %p1611 = pneg %p321
        $region82: #{tpu_custom_call.1} parent=39 // pred_check_branch
          %1613 = sbr.rel (%p1611) target = $region84
        $region83: #{tpu_custom_call.1} parent=39 // pred_region
          %s1614 = smul.u32 2, %s43
          %s1616 = ssub.s32 1024, 1024
          %1617 = vsyncadd %s1527, %s1616
          %s1618 = smul.addr %s1614, 128
          %s1619 = scalar_lea.hbm %s10, %s1618
          %s1620 = sshll.u32 %s1530, 4
          %s1621 = int_to_ptr.vmem [resolvable:$true] %s1620
          %1626 = dma.vmem_to_hbm [thread:$0]  %s1621, 1024, %s1619, %s1527, 256, 512, 16
        $region84: #{tpu_custom_call.1} parent=39 // pred_fallthru
          _
      $region40: #{tpu_custom_call.1} parent=5 // pred_fallthru
        _
      %p1627 = scmp.le.s32.totalorder 2, %s38
      // Predicated region
      $region85: #{tpu_custom_call.1} parent=5 // pred_check
        %p1628 = pneg %p1627
      $region86: #{tpu_custom_call.1} parent=5 // pred_check_branch
        %1630 = sbr.rel (%p1628) target = $region88
      $region87: #{tpu_custom_call.1} parent=5 // pred_region
        %s1631 = ssub.s32 %s38, 2
        // Predicated region
        $region89: #{tpu_custom_call.1} parent=87 // pred_check
          %p1632 = pneg %p197
        $region90: #{tpu_custom_call.1} parent=87 // pred_check_branch
          %1634 = sbr.rel (%p1632) target = $region92
        $region91: #{tpu_custom_call.1} parent=87 // pred_region
          %s1635 = sand.u32 %s182, 1
          %s1636 = scalar_lea.sflag [#allocation4], %s1635
          %s1637 = sand.u32 %s182, 1
          %s1638 = smul.addr %s1637, 48
          %s1639 = scalar_lea.vmem [#allocation11], %s1638
          %1640 = dma.done %s1636, 768
        $region92: #{tpu_custom_call.1} parent=87 // pred_fallthru
          _
        // Predicated region
        $region93: #{tpu_custom_call.1} parent=87 // pred_check
          %p1641 = pneg %p223
        $region94: #{tpu_custom_call.1} parent=87 // pred_check_branch
          %1643 = sbr.rel (%p1641) target = $region96
        $region95: #{tpu_custom_call.1} parent=87 // pred_region
          %s1644 = sand.u32 %s44, 1
          %s1645 = scalar_lea.sflag [#allocation13], %s1644
          %s1646 = sand.u32 %s208, 1
          %s1647 = smul.addr %s1646, 144
          %s1648 = scalar_lea.vmem [#allocation12], %s1647
          %1649 = dma.done %s1645, 2304
        $region96: #{tpu_custom_call.1} parent=87 // pred_fallthru
          _
        // Predicated region
        $region97: #{tpu_custom_call.1} parent=87 // pred_check
          %p1650 = pneg %p249
        $region98: #{tpu_custom_call.1} parent=87 // pred_check_branch
          %1652 = sbr.rel (%p1650) target = $region100
        $region99: #{tpu_custom_call.1} parent=87 // pred_region
          %s1653 = sand.u32 %s44, 1
          %s1654 = scalar_lea.sflag [#allocation13], %s1653
          %s1655 = sand.u32 %s234, 1
          %s1656 = smul.addr %s1655, 48
          %s1657 = scalar_lea.vmem [#allocation14], %s1656
          %1658 = dma.done %s1654, 768
        $region100: #{tpu_custom_call.1} parent=87 // pred_fallthru
          _
        // Predicated region
        $region101: #{tpu_custom_call.1} parent=87 // pred_check
          %p1659 = pneg %p275
        $region102: #{tpu_custom_call.1} parent=87 // pred_check_branch
          %1661 = sbr.rel (%p1659) target = $region104
        $region103: #{tpu_custom_call.1} parent=87 // pred_region
          %s1662 = sand.u32 %s44, 1
          %s1663 = scalar_lea.sflag [#allocation16], %s1662
          %s1664 = sand.u32 %s260, 1
          %s1665 = smul.addr %s1664, 64
          %s1666 = scalar_lea.vmem [#allocation15], %s1665
          %1667 = dma.done %s1663, 1024
        $region104: #{tpu_custom_call.1} parent=87 // pred_fallthru
          _
        // Predicated region
        $region105: #{tpu_custom_call.1} parent=87 // pred_check
          %p1668 = pneg %p301
        $region106: #{tpu_custom_call.1} parent=87 // pred_check_branch
          %1670 = sbr.rel (%p1668) target = $region108
        $region107: #{tpu_custom_call.1} parent=87 // pred_region
          %s1671 = sand.u32 %s44, 1
          %s1672 = scalar_lea.sflag [#allocation16], %s1671
          %s1673 = sand.u32 %s286, 1
          %s1674 = smul.addr %s1673, 48
          %s1675 = scalar_lea.vmem [#allocation17], %s1674
          %1676 = dma.done %s1672, 768
        $region108: #{tpu_custom_call.1} parent=87 // pred_fallthru
          _
        // Predicated region
        $region109: #{tpu_custom_call.1} parent=87 // pred_check
          %p1677 = pneg %p327
        $region110: #{tpu_custom_call.1} parent=87 // pred_check_branch
          %1679 = sbr.rel (%p1677) target = $region112
        $region111: #{tpu_custom_call.1} parent=87 // pred_region
          %s1680 = sand.u32 %s312, 1
          %s1681 = scalar_lea.sflag [#allocation19], %s1680
          %s1682 = sand.u32 %s312, 1
          %s1683 = smul.addr %s1682, 64
          %s1684 = scalar_lea.vmem [#allocation18], %s1683
          %1685 = dma.done %s1681, 1024
        $region112: #{tpu_custom_call.1} parent=87 // pred_fallthru
          _
      $region88: #{tpu_custom_call.1} parent=5 // pred_fallthru
        _
    $region6: #{tpu_custom_call.1} parent=1 // loop_footer
      %s42 = sadd.s32 1, %s38
    $region7: #{tpu_custom_call.1} parent=1 // loop_footer_branch
      %37 = sbr.rel target = $region3
    $region8: #{tpu_custom_call.1} parent=1 // loop_exit
      _
    %1686 = vsyncpa [#allocation3], 1
    %s1687 = scalar_lea.sflag [#allocation3], 1
    %1688 = vsyncpa %s1687, 1
    %1689 = vsyncpa [#allocation6], 1
    %s1690 = scalar_lea.sflag [#allocation6], 1
    %1691 = vsyncpa %s1690, 1
    %1692 = vsyncpa [#allocation9], 1
    %s1693 = scalar_lea.sflag [#allocation9], 1
    %1694 = vsyncpa %s1693, 1
    %1695 = vsyncpa [#allocation4], 1
    %s1696 = scalar_lea.sflag [#allocation4], 1
    %1697 = vsyncpa %s1696, 1
    %1698 = vsyncpa [#allocation13], 1
    %s1699 = scalar_lea.sflag [#allocation13], 1
    %1700 = vsyncpa %s1699, 1
    %1701 = vsyncpa [#allocation16], 1
    %s1702 = scalar_lea.sflag [#allocation16], 1
    %1703 = vsyncpa %s1702, 1
    %1704 = vsyncpa [#allocation19], 1
    %s1705 = scalar_lea.sflag [#allocation19], 1
    %1706 = vsyncpa %s1705, 1

</llo_original>
